<compile_context>
chip_gen: v7x
topology: tpu7x:2x2x1
jax: 0.10.0
libtpu: 0.0.40
codegen_flags: <defaults>
</compile_context>

<pallas_src>
import jax
import jax.numpy as jnp
import numpy as np
from jax.experimental import pallas as pl
from jax.experimental.pallas import tpu as pltpu


def _dot(a, b):
    # Native single-pass bf16 MXU matmul, accumulate in f32.
    return jnp.dot(a, b, preferred_element_type=jnp.float32)


def acmf_kernel(rgb_ref, evt_ref,
                wf_ref, fbt_ref,
                w1l_ref, cab1_ref, w2l_ref, b2t_ref,
                b7_ref, sab_ref, exp_ref,
                wo_ref, finbt_ref,
                out_ref,
                pad_x, pad_s):
    _, H, WC = rgb_ref.shape           # WC = W * C  (lane-dense last dim)
    W = exp_ref.shape[0]
    C = WC // W
    WC2 = 2 * WC

    rgb = rgb_ref[0].astype(jnp.float32)          # (H, W*C)
    evt = evt_ref[0].astype(jnp.float32)

    # Refresh only the zero halo rows every grid step (scratch persists across
    # steps/cores; a one-time init under pl.when(program_id == 0) would be
    # unsafe with a "parallel" grid).  Interiors are fully overwritten below.
    pad_x[0:1, :] = jnp.zeros((1, WC2), jnp.float32)
    pad_x[H + 1:H + 2, :] = jnp.zeros((1, WC2), jnp.float32)
    pad_s[0:3, :] = jnp.zeros((3, WC2), jnp.float32)
    pad_s[H + 3:H + 6, :] = jnp.zeros((3, WC2), jnp.float32)

    # ---- fuse_conv: 3x3 over concat([rgb, evt]) == 3 banded matmuls --------
    pad_x[1:1 + H, 0:WC] = rgb
    pad_x[1:1 + H, WC:WC2] = evt
    fused = jnp.zeros((H, WC), jnp.float32) + fbt_ref[...]
    for kh in range(3):
        fused = fused + _dot(pad_x[kh:kh + H, :], wf_ref[kh])      # (H, W*C)

    # ---- channel attention (pure VPU: multiply + reduce + broadcast) -------
    row_sum = jnp.sum(fused, axis=0, keepdims=True)                # (1, W*C)
    ca_logit = b2t_ref[...]
    for j in range(w1l_ref.shape[0]):                              # C // 4 iters
        hj = jnp.sum(row_sum * w1l_ref[j:j + 1, :], axis=1, keepdims=True)
        hj = jnp.maximum(hj + cab1_ref[0:1, j:j + 1], 0.0)         # (1, 1)
        ca_logit = ca_logit + hj * w2l_ref[j:j + 1, :]
    ca = jax.nn.sigmoid(ca_logit)                                  # (1, W*C), tiled over w

    # ---- spatial attention: 7x7 conv over [mean_c, max_c] ------------------
    # pad_s[:, :W*C] <- fused   (channel mean is folded into the b7 bands)
    # pad_s[:, W*C:] <- shifted-window channel max; lane w*C of each group of
    #                   C lanes holds the true per-pixel channel max.
    pad_s[3:3 + H, 0:WC] = fused
    pad_s[3:3 + H, WC:WC + C] = jnp.zeros((H, C), jnp.float32)     # guard strip
    mx = fused
    for c in range(1, C):
        mx = jnp.maximum(mx, pad_s[3:3 + H, c:c + WC])
    pad_s[3:3 + H, WC:WC2] = mx

    sa_logit = jnp.zeros((H, W), jnp.float32) + sab_ref[...]
    for kh in range(7):
        sa_logit = sa_logit + _dot(pad_s[kh:kh + H, :], b7_ref[kh])
    sa = jax.nn.sigmoid(sa_logit)                                  # (H, W)
    sa_exp = _dot(sa, exp_ref[...])                                # (H, W*C)

    attn = sa_exp * ca                                             # (H, W*C)

    # ---- modulated final convs (rgb + evt folded along K, biases pre-summed)
    pad_x[1:1 + H, 0:WC] = rgb * attn
    pad_x[1:1 + H, WC:WC2] = evt * attn
    out = jnp.zeros((H, WC), jnp.float32) + finbt_ref[...]
    for kh in range(3):
        out = out + _dot(pad_x[kh:kh + H, :], wo_ref[kh])
    out_ref[0] = out.astype(out_ref.dtype)


def _prepare_weights(params, H, W, C):
    """Host-side precomputation of banded / W-tiled weights."""
    f32 = jnp.float32

    def band3(w9):
        """(9, Cin, Cout) 3x3 conv weights -> (3, W*Cin, W*Cout) band matrices."""
        cin, cout = w9.shape[1], w9.shape[2]
        w = w9.astype(f32).reshape(3, 3, cin, cout)
        return jnp.stack([
            sum(jnp.kron(jnp.eye(W, k=1 - kw, dtype=f32), w[kh, kw])
                for kw in range(3))
            for kh in range(3)])

    def band7(w49):
        """(49, 2) 7x7 conv weights -> (7, 2*W*C, W) band matrices.

        Rows [0, W*C) act on `fused` and fold in the channel mean; rows
        [W*C, 2*W*C) act on the channel-max map (only lane w*C of each group
        carries the true max, so only those rows get weight)."""
        w = w49.astype(f32).reshape(7, 7, 2)
        mean_col = jnp.full((C, 1), 1.0 / C, f32)
        max_col = jnp.zeros((C, 1), f32).at[0, 0].set(1.0)
        mats = []
        for kh in range(7):
            mean_band = sum(jnp.kron(jnp.eye(W, k=3 - kw, dtype=f32), mean_col)
                            * w[kh, kw, 0] for kw in range(7))
            max_band = sum(jnp.kron(jnp.eye(W, k=3 - kw, dtype=f32), max_col)
                           * w[kh, kw, 1] for kw in range(7))
            mats.append(jnp.concatenate([mean_band, max_band], axis=0))
        return jnp.stack(mats)

    def tile_w(v):                                   # (.., C) -> (1, W*C)
        return jnp.tile(v.astype(f32).reshape(1, C), (1, W))

    return dict(
        # fuse conv: rgb / evt halves K-concatenated -> (3, 2*W*C, W*C)
        wf=jnp.concatenate([band3(params['fw_rgb']),
                            band3(params['fw_evt'])], axis=1),
        fbt=tile_w(params['fuse_b']),
        # channel attention, W-tiled so it applies directly to (H, W*C) data
        w1l=jnp.tile(params['ca_w1'].astype(f32).T, (1, W)) / float(H * W),
        cab1=params['ca_b1'].astype(f32).reshape(1, -1),
        w2l=jnp.tile(params['ca_w2'].astype(f32), (1, W)),
        b2t=tile_w(params['ca_b2']),
        # spatial attention
        b7=band7(params['sa_w']),
        sab=params['sa_b'].astype(f32).reshape(1, 1),
        expand=jnp.kron(jnp.eye(W, dtype=f32), jnp.ones((1, C), f32)),  # (W, W*C)
        # final convs: rgb / evt K-concatenated, biases pre-summed
        wo=jnp.concatenate([band3(params['frgb_w']),
                            band3(params['fevt_w'])], axis=1),
        finbt=tile_w(params['frgb_b'] + params['fevt_b']),
    )


_WEIGHT_ORDER = ('wf', 'fbt', 'w1l', 'cab1', 'w2l', 'b2t',
                 'b7', 'sab', 'expand', 'wo', 'finbt')


def acmf_forward(rgb, evt, params):
    """rgb, evt: (B, H, W, C) NHWC feature maps."""
    B, H, W, C = rgb.shape
    WC = W * C
    wd = _prepare_weights(params, H, W, C)
    weights = [wd[k] for k in _WEIGHT_ORDER]

    feat_spec = pl.BlockSpec((1, H, WC), lambda b: (b, 0, 0))

    def full_spec(a):
        return pl.BlockSpec(a.shape, lambda b, nd=a.ndim: (0,) * nd)

    out = pl.pallas_call(
        acmf_kernel,
        out_shape=jax.ShapeDtypeStruct((B, H, WC), rgb.dtype),
        grid=(B,),
        in_specs=[feat_spec, feat_spec] + [full_spec(w) for w in weights],
        out_specs=feat_spec,
        scratch_shapes=[
            pltpu.VMEM((H + 2, 2 * WC), jnp.float32),   # padded [rgb | evt]
            pltpu.VMEM((H + 6, 2 * WC), jnp.float32),   # padded [fused | max]
        ],
        compiler_params=pltpu.CompilerParams(
            dimension_semantics=("parallel",)),
    )(rgb.reshape(B, H, WC), evt.reshape(B, H, WC), *weights)
    return out.reshape(B, H, W, C)


def ref_forward(rgb, evt, p):
    """Pure-JAX reference (same math as the PyTorch module, NHWC layout, f32)."""
    C = rgb.shape[-1]
    P = jax.lax.Precision.HIGHEST

    def conv(x, w_hwio, b):
        kh, kw = w_hwio.shape[0], w_hwio.shape[1]
        y = jax.lax.conv_general_dilated(
            x, w_hwio, window_strides=(1, 1),
            padding=[(kh // 2, kh // 2), (kw // 2, kw // 2)],
            dimension_numbers=('NHWC', 'HWIO', 'NHWC'),
            precision=P)
        return y + b.reshape(1, 1, 1, -1)

    fuse_w = jnp.concatenate([p['fw_rgb'].reshape(3, 3, C, C),
                              p['fw_evt'].reshape(3, 3, C, C)], axis=2)
    x = jnp.concatenate([rgb, evt], axis=-1)
    fused = conv(x, fuse_w, p['fuse_b'])

    avg = jnp.mean(fused, axis=(1, 2))                              # (B, C)
    h = jax.nn.relu(jnp.dot(avg, p['ca_w1'], precision=P) + p['ca_b1'])
    ca = jax.nn.sigmoid(jnp.dot(h, p['ca_w2'], precision=P)
                        + p['ca_b2'])[:, None, None, :]

    a_out = jnp.mean(fused, axis=-1, keepdims=True)
    m_out = jnp.max(fused, axis=-1, keepdims=True)
    cat = jnp.concatenate([a_out, m_out], axis=-1)
    sa = jax.nn.sigmoid(conv(cat, p['sa_w'].reshape(7, 7, 2, 1), p['sa_b']))

    attn = ca * sa
    rgb_mod = conv(rgb * attn, p['frgb_w'].reshape(3, 3, C, C), p['frgb_b'])
    evt_mod = conv(evt * attn, p['fevt_w'].reshape(3, 3, C, C), p['fevt_b'])
    return rgb_mod + evt_mod


if __name__ == "__main__":
    B, H, W, C = 2, 16, 16, 8        # feature_dim = 8; W * C = 128 (one lane tile)
    key = jax.random.PRNGKey(0)
    ks = jax.random.split(key, 16)

    def rnd(k, shape, scale=0.2):
        return jax.random.normal(k, shape, jnp.float32) * scale

    rgb = rnd(ks[0], (B, H, W, C), 1.0)
    evt = rnd(ks[1], (B, H, W, C), 1.0)

    params = {
        'fw_rgb': rnd(ks[2], (9, C, C)),        # fuse_conv weight, rgb half  [k, ci, co]
        'fw_evt': rnd(ks[3], (9, C, C)),        # fuse_conv weight, event half
        'fuse_b': rnd(ks[4], (1, C)),
        'ca_w1':  rnd(ks[5], (C, C // 4)),      # Linear(C -> C/4), stored (in, out)
        'ca_b1':  rnd(ks[6], (1, C // 4)),
        'ca_w2':  rnd(ks[7], (C // 4, C)),      # Linear(C/4 -> C)
        'ca_b2':  rnd(ks[8], (1, C)),
        'sa_w':   rnd(ks[9], (49, 2)),          # 7x7 conv, 2 -> 1 channels
        'sa_b':   rnd(ks[10], (1, 1)),
        'frgb_w': rnd(ks[11], (9, C, C)),
        'frgb_b': rnd(ks[12], (1, C)),
        'fevt_w': rnd(ks[13], (9, C, C)),
        'fevt_b': rnd(ks[14], (1, C)),
    }

    out = acmf_forward(rgb, evt, params)
    out = jax.block_until_ready(out)

    ref = ref_forward(rgb, evt, params)
    # The kernel runs its matmuls through the native bf16 MXU path (f32
    # accumulation), so it deviates from the full-f32 reference by O(0.1%) of
    # the activation scale; 5e-2 still catches any structural/indexing bug.
    np.testing.assert_allclose(np.asarray(out), np.asarray(ref),
                               atol=5e-2, rtol=5e-2)
    print("KERNEL_OK")
</pallas_src>

<mosaic_0001>
module attributes {stable_mosaic.version = 11 : i64} {
  func.func @acmf_kernel(%arg0: i32, %arg1: memref<1x16x128xf32, #tpu.memory_space<vmem>>, %arg2: memref<1x16x128xf32, #tpu.memory_space<vmem>>, %arg3: memref<3x256x128xf32, #tpu.memory_space<vmem>>, %arg4: memref<1x128xf32, #tpu.memory_space<vmem>>, %arg5: memref<2x128xf32, #tpu.memory_space<vmem>>, %arg6: memref<1x2xf32, #tpu.memory_space<vmem>>, %arg7: memref<2x128xf32, #tpu.memory_space<vmem>>, %arg8: memref<1x128xf32, #tpu.memory_space<vmem>>, %arg9: memref<7x256x16xf32, #tpu.memory_space<vmem>>, %arg10: memref<1x1xf32, #tpu.memory_space<vmem>>, %arg11: memref<16x128xf32, #tpu.memory_space<vmem>>, %arg12: memref<3x256x128xf32, #tpu.memory_space<vmem>>, %arg13: memref<1x128xf32, #tpu.memory_space<vmem>>, %arg14: memref<1x16x128xf32, #tpu.memory_space<vmem>>, %arg15: memref<18x256xf32, #tpu.memory_space<vmem>>, %arg16: memref<22x256xf32, #tpu.memory_space<vmem>>) attributes {dimension_semantics = [#tpu.dimension_semantics<parallel>], iteration_bounds = array<i64: 2>, scalar_prefetch = 0 : i64, scratch_operands = 2 : i64, tpu.core_type = #tpu.core_type<tc>, window_params = [{transform_indices = @transform_0, window_bounds = array<i64: 1, 16, 128>}, {transform_indices = @transform_1, window_bounds = array<i64: 1, 16, 128>}, {pipeline_mode = #tpu.pipeline_mode<synchronous>, transform_indices = @transform_2, window_bounds = array<i64: 3, 256, 128>}, {pipeline_mode = #tpu.pipeline_mode<synchronous>, transform_indices = @transform_3, window_bounds = array<i64: 1, 128>}, {pipeline_mode = #tpu.pipeline_mode<synchronous>, transform_indices = @transform_4, window_bounds = array<i64: 2, 128>}, {pipeline_mode = #tpu.pipeline_mode<synchronous>, transform_indices = @transform_5, window_bounds = array<i64: 1, 2>}, {pipeline_mode = #tpu.pipeline_mode<synchronous>, transform_indices = @transform_6, window_bounds = array<i64: 2, 128>}, {pipeline_mode = #tpu.pipeline_mode<synchronous>, transform_indices = @transform_7, window_bounds = array<i64: 1, 128>}, {pipeline_mode = #tpu.pipeline_mode<synchronous>, transform_indices = @transform_8, window_bounds = array<i64: 7, 256, 16>}, {pipeline_mode = #tpu.pipeline_mode<synchronous>, transform_indices = @transform_9, window_bounds = array<i64: 1, 1>}, {pipeline_mode = #tpu.pipeline_mode<synchronous>, transform_indices = @transform_10, window_bounds = array<i64: 16, 128>}, {pipeline_mode = #tpu.pipeline_mode<synchronous>, transform_indices = @transform_11, window_bounds = array<i64: 3, 256, 128>}, {pipeline_mode = #tpu.pipeline_mode<synchronous>, transform_indices = @transform_12, window_bounds = array<i64: 1, 128>}, {transform_indices = @transform_13, window_bounds = array<i64: 1, 16, 128>}]} {
    %c0 = arith.constant 0 : index
    %c0_0 = arith.constant 0 : index
    %c0_1 = arith.constant 0 : index
    %0 = vector.load %arg1[%c0, %c0_0, %c0_1] : memref<1x16x128xf32, #tpu.memory_space<vmem>>, vector<1x16x128xf32>
    %1 = vector.shape_cast %0 : vector<1x16x128xf32> to vector<16x128xf32>
    %c0_2 = arith.constant 0 : index
    %c0_3 = arith.constant 0 : index
    %c0_4 = arith.constant 0 : index
    %2 = vector.load %arg2[%c0_2, %c0_3, %c0_4] : memref<1x16x128xf32, #tpu.memory_space<vmem>>, vector<1x16x128xf32>
    %3 = vector.shape_cast %2 : vector<1x16x128xf32> to vector<16x128xf32>
    %cst = arith.constant 0.000000e+00 : f32
    %4 = vector.broadcast %cst : f32 to vector<1x256xf32>
    %c0_5 = arith.constant 0 : index
    %c0_6 = arith.constant 0 : index
    %5 = vector.load %arg15[%c0_5, %c0_6] : memref<18x256xf32, #tpu.memory_space<vmem>>, vector<1x256xf32>
    tpu.vector_store %arg15[%c0_5, %c0_6], %4 {strides = array<i32>} : memref<18x256xf32, #tpu.memory_space<vmem>>, vector<1x256xf32>,
    %cst_7 = arith.constant 0.000000e+00 : f32
    %6 = vector.broadcast %cst_7 : f32 to vector<1x256xf32>
    %c17 = arith.constant 17 : index
    %c0_8 = arith.constant 0 : index
    %7 = vector.load %arg15[%c17, %c0_8] : memref<18x256xf32, #tpu.memory_space<vmem>>, vector<1x256xf32>
    tpu.vector_store %arg15[%c17, %c0_8], %6 {strides = array<i32>} : memref<18x256xf32, #tpu.memory_space<vmem>>, vector<1x256xf32>,
    %cst_9 = arith.constant 0.000000e+00 : f32
    %8 = vector.broadcast %cst_9 : f32 to vector<3x256xf32>
    %c0_10 = arith.constant 0 : index
    %c0_11 = arith.constant 0 : index
    %9 = vector.load %arg16[%c0_10, %c0_11] : memref<22x256xf32, #tpu.memory_space<vmem>>, vector<3x256xf32>
    tpu.vector_store %arg16[%c0_10, %c0_11], %8 {strides = array<i32>} : memref<22x256xf32, #tpu.memory_space<vmem>>, vector<3x256xf32>,
    %cst_12 = arith.constant 0.000000e+00 : f32
    %10 = vector.broadcast %cst_12 : f32 to vector<3x256xf32>
    %c19 = arith.constant 19 : index
    %c0_13 = arith.constant 0 : index
    %11 = vector.load %arg16[%c19, %c0_13] : memref<22x256xf32, #tpu.memory_space<vmem>>, vector<3x256xf32>
    tpu.vector_store %arg16[%c19, %c0_13], %10 {strides = array<i32>} : memref<22x256xf32, #tpu.memory_space<vmem>>, vector<3x256xf32>,
    %c1 = arith.constant 1 : index
    %c0_14 = arith.constant 0 : index
    %12 = vector.load %arg15[%c1, %c0_14] : memref<18x256xf32, #tpu.memory_space<vmem>>, vector<16x128xf32>
    tpu.vector_store %arg15[%c1, %c0_14], %1 {strides = array<i32>} : memref<18x256xf32, #tpu.memory_space<vmem>>, vector<16x128xf32>,
    %c1_15 = arith.constant 1 : index
    %c128 = arith.constant 128 : index
    %13 = vector.load %arg15[%c1_15, %c128] : memref<18x256xf32, #tpu.memory_space<vmem>>, vector<16x128xf32>
    tpu.vector_store %arg15[%c1_15, %c128], %3 {strides = array<i32>} : memref<18x256xf32, #tpu.memory_space<vmem>>, vector<16x128xf32>,
    %cst_16 = arith.constant 0.000000e+00 : f32
    %14 = vector.broadcast %cst_16 : f32 to vector<16x128xf32>
    %c0_17 = arith.constant 0 : index
    %c0_18 = arith.constant 0 : index
    %15 = vector.load %arg4[%c0_17, %c0_18] : memref<1x128xf32, #tpu.memory_space<vmem>>, vector<1x128xf32>
    %16 = vector.broadcast %15 : vector<1x128xf32> to vector<16x128xf32>
    %17 = arith.addf %14, %16 : vector<16x128xf32>
    %c0_19 = arith.constant 0 : index
    %c0_20 = arith.constant 0 : index
    %18 = vector.load %arg15[%c0_19, %c0_20] : memref<18x256xf32, #tpu.memory_space<vmem>>, vector<16x256xf32>
    %c0_21 = arith.constant 0 : index
    %c0_22 = arith.constant 0 : index
    %c0_23 = arith.constant 0 : index
    %19 = vector.load %arg3[%c0_21, %c0_22, %c0_23] : memref<3x256x128xf32, #tpu.memory_space<vmem>>, vector<1x256x128xf32>
    %20 = vector.shape_cast %19 : vector<1x256x128xf32> to vector<256x128xf32>
    %cst_24 = arith.constant dense<0.000000e+00> : vector<16x128xf32>
    %21 = tpu.matmul %18, %20, %cst_24 {dimension_numbers = #tpu.dot_dimension_numbers<[1], [0], [0], [1], [0, 0, 1, 1], [], []>} : vector<16x256xf32>, vector<256x128xf32>, vector<16x128xf32> -> vector<16x128xf32>
    %22 = arith.addf %17, %21 : vector<16x128xf32>
    %c1_25 = arith.constant 1 : index
    %c0_26 = arith.constant 0 : index
    %23 = vector.load %arg15[%c1_25, %c0_26] : memref<18x256xf32, #tpu.memory_space<vmem>>, vector<16x256xf32>
    %c1_27 = arith.constant 1 : index
    %c0_28 = arith.constant 0 : index
    %c0_29 = arith.constant 0 : index
    %24 = vector.load %arg3[%c1_27, %c0_28, %c0_29] : memref<3x256x128xf32, #tpu.memory_space<vmem>>, vector<1x256x128xf32>
    %25 = vector.shape_cast %24 : vector<1x256x128xf32> to vector<256x128xf32>
    %cst_30 = arith.constant dense<0.000000e+00> : vector<16x128xf32>
    %26 = tpu.matmul %23, %25, %cst_30 {dimension_numbers = #tpu.dot_dimension_numbers<[1], [0], [0], [1], [0, 0, 1, 1], [], []>} : vector<16x256xf32>, vector<256x128xf32>, vector<16x128xf32> -> vector<16x128xf32>
    %27 = arith.addf %22, %26 : vector<16x128xf32>
    %c2 = arith.constant 2 : index
    %c0_31 = arith.constant 0 : index
    %28 = vector.load %arg15[%c2, %c0_31] : memref<18x256xf32, #tpu.memory_space<vmem>>, vector<16x256xf32>
    %c2_32 = arith.constant 2 : index
    %c0_33 = arith.constant 0 : index
    %c0_34 = arith.constant 0 : index
    %29 = vector.load %arg3[%c2_32, %c0_33, %c0_34] : memref<3x256x128xf32, #tpu.memory_space<vmem>>, vector<1x256x128xf32>
    %30 = vector.shape_cast %29 : vector<1x256x128xf32> to vector<256x128xf32>
    %cst_35 = arith.constant dense<0.000000e+00> : vector<16x128xf32>
    %31 = tpu.matmul %28, %30, %cst_35 {dimension_numbers = #tpu.dot_dimension_numbers<[1], [0], [0], [1], [0, 0, 1, 1], [], []>} : vector<16x256xf32>, vector<256x128xf32>, vector<16x128xf32> -> vector<16x128xf32>
    %32 = arith.addf %27, %31 : vector<16x128xf32>
    %cst_36 = arith.constant dense<0.000000e+00> : vector<128xf32>
    %33 = vector.multi_reduction <add>, %32, %cst_36 [0] : vector<16x128xf32> to vector<128xf32>
    %34 = vector.shape_cast %33 : vector<128xf32> to vector<1x128xf32>
    %c0_37 = arith.constant 0 : index
    %c0_38 = arith.constant 0 : index
    %35 = vector.load %arg8[%c0_37, %c0_38] : memref<1x128xf32, #tpu.memory_space<vmem>>, vector<1x128xf32>
    %c0_39 = arith.constant 0 : index
    %c0_40 = arith.constant 0 : index
    %36 = vector.load %arg5[%c0_39, %c0_40] : memref<2x128xf32, #tpu.memory_space<vmem>>, vector<1x128xf32>
    %37 = arith.mulf %34, %36 : vector<1x128xf32>
    %cst_41 = arith.constant dense<0.000000e+00> : vector<1xf32>
    %38 = vector.multi_reduction <add>, %37, %cst_41 [1] : vector<1x128xf32> to vector<1xf32>
    %39 = vector.shape_cast %38 : vector<1xf32> to vector<1x1xf32>
    %c0_42 = arith.constant 0 : index
    %c0_43 = arith.constant 0 : index
    %40 = vector.load %arg6[%c0_42, %c0_43] : memref<1x2xf32, #tpu.memory_space<vmem>>, vector<1x1xf32>
    %41 = arith.addf %39, %40 : vector<1x1xf32>
    %cst_44 = arith.constant 0.000000e+00 : f32
    %42 = vector.broadcast %cst_44 : f32 to vector<1x1xf32>
    %43 = arith.maximumf %41, %42 : vector<1x1xf32>
    %c0_45 = arith.constant 0 : index
    %c0_46 = arith.constant 0 : index
    %44 = vector.load %arg7[%c0_45, %c0_46] : memref<2x128xf32, #tpu.memory_space<vmem>>, vector<1x128xf32>
    %45 = vector.broadcast %43 : vector<1x1xf32> to vector<1x128xf32>
    %46 = arith.mulf %45, %44 : vector<1x128xf32>
    %47 = arith.addf %35, %46 : vector<1x128xf32>
    %c1_47 = arith.constant 1 : index
    %c0_48 = arith.constant 0 : index
    %48 = vector.load %arg5[%c1_47, %c0_48] : memref<2x128xf32, #tpu.memory_space<vmem>>, vector<1x128xf32>
    %49 = arith.mulf %34, %48 : vector<1x128xf32>
    %cst_49 = arith.constant dense<0.000000e+00> : vector<1xf32>
    %50 = vector.multi_reduction <add>, %49, %cst_49 [1] : vector<1x128xf32> to vector<1xf32>
    %51 = vector.shape_cast %50 : vector<1xf32> to vector<1x1xf32>
    %c0_50 = arith.constant 0 : index
    %c1_51 = arith.constant 1 : index
    %52 = vector.load %arg6[%c0_50, %c1_51] : memref<1x2xf32, #tpu.memory_space<vmem>>, vector<1x1xf32>
    %53 = arith.addf %51, %52 : vector<1x1xf32>
    %cst_52 = arith.constant 0.000000e+00 : f32
    %54 = vector.broadcast %cst_52 : f32 to vector<1x1xf32>
    %55 = arith.maximumf %53, %54 : vector<1x1xf32>
    %c1_53 = arith.constant 1 : index
    %c0_54 = arith.constant 0 : index
    %56 = vector.load %arg7[%c1_53, %c0_54] : memref<2x128xf32, #tpu.memory_space<vmem>>, vector<1x128xf32>
    %57 = vector.broadcast %55 : vector<1x1xf32> to vector<1x128xf32>
    %58 = arith.mulf %57, %56 : vector<1x128xf32>
    %59 = arith.addf %47, %58 : vector<1x128xf32>
    %60 = arith.negf %59 : vector<1x128xf32>
    %61 = math.exp %60 : vector<1x128xf32>
    %cst_55 = arith.constant 1.000000e+00 : f32
    %62 = vector.broadcast %cst_55 : f32 to vector<1x128xf32>
    %63 = arith.addf %62, %61 : vector<1x128xf32>
    %64 = arith.divf %62, %63 : vector<1x128xf32>
    %c3 = arith.constant 3 : index
    %c0_56 = arith.constant 0 : index
    %65 = vector.load %arg16[%c3, %c0_56] : memref<22x256xf32, #tpu.memory_space<vmem>>, vector<16x128xf32>
    tpu.vector_store %arg16[%c3, %c0_56], %32 {strides = array<i32>} : memref<22x256xf32, #tpu.memory_space<vmem>>, vector<16x128xf32>,
    %cst_57 = arith.constant 0.000000e+00 : f32
    %66 = vector.broadcast %cst_57 : f32 to vector<16x8xf32>
    %c3_58 = arith.constant 3 : index
    %c128_59 = arith.constant 128 : index
    %67 = vector.load %arg16[%c3_58, %c128_59] : memref<22x256xf32, #tpu.memory_space<vmem>>, vector<16x8xf32>
    tpu.vector_store %arg16[%c3_58, %c128_59], %66 {strides = array<i32>} : memref<22x256xf32, #tpu.memory_space<vmem>>, vector<16x8xf32>,
    %c3_60 = arith.constant 3 : index
    %c1_61 = arith.constant 1 : index
    %68 = vector.load %arg16[%c3_60, %c1_61] : memref<22x256xf32, #tpu.memory_space<vmem>>, vector<16x128xf32>
    %69 = arith.maximumf %32, %68 : vector<16x128xf32>
    %c3_62 = arith.constant 3 : index
    %c2_63 = arith.constant 2 : index
    %70 = vector.load %arg16[%c3_62, %c2_63] : memref<22x256xf32, #tpu.memory_space<vmem>>, vector<16x128xf32>
    %71 = arith.maximumf %69, %70 : vector<16x128xf32>
    %c3_64 = arith.constant 3 : index
    %c3_65 = arith.constant 3 : index
    %72 = vector.load %arg16[%c3_64, %c3_65] : memref<22x256xf32, #tpu.memory_space<vmem>>, vector<16x128xf32>
    %73 = arith.maximumf %71, %72 : vector<16x128xf32>
    %c3_66 = arith.constant 3 : index
    %c4 = arith.constant 4 : index
    %74 = vector.load %arg16[%c3_66, %c4] : memref<22x256xf32, #tpu.memory_space<vmem>>, vector<16x128xf32>
    %75 = arith.maximumf %73, %74 : vector<16x128xf32>
    %c3_67 = arith.constant 3 : index
    %c5 = arith.constant 5 : index
    %76 = vector.load %arg16[%c3_67, %c5] : memref<22x256xf32, #tpu.memory_space<vmem>>, vector<16x128xf32>
    %77 = arith.maximumf %75, %76 : vector<16x128xf32>
    %c3_68 = arith.constant 3 : index
    %c6 = arith.constant 6 : index
    %78 = vector.load %arg16[%c3_68, %c6] : memref<22x256xf32, #tpu.memory_space<vmem>>, vector<16x128xf32>
    %79 = arith.maximumf %77, %78 : vector<16x128xf32>
    %c3_69 = arith.constant 3 : index
    %c7 = arith.constant 7 : index
    %80 = vector.load %arg16[%c3_69, %c7] : memref<22x256xf32, #tpu.memory_space<vmem>>, vector<16x128xf32>
    %81 = arith.maximumf %79, %80 : vector<16x128xf32>
    %c3_70 = arith.constant 3 : index
    %c128_71 = arith.constant 128 : index
    %82 = vector.load %arg16[%c3_70, %c128_71] : memref<22x256xf32, #tpu.memory_space<vmem>>, vector<16x128xf32>
    tpu.vector_store %arg16[%c3_70, %c128_71], %81 {strides = array<i32>} : memref<22x256xf32, #tpu.memory_space<vmem>>, vector<16x128xf32>,
    %cst_72 = arith.constant 0.000000e+00 : f32
    %83 = vector.broadcast %cst_72 : f32 to vector<16x16xf32>
    %c0_73 = arith.constant 0 : index
    %c0_74 = arith.constant 0 : index
    %84 = vector.load %arg10[%c0_73, %c0_74] : memref<1x1xf32, #tpu.memory_space<vmem>>, vector<1x1xf32>
    %85 = vector.broadcast %84 : vector<1x1xf32> to vector<16x16xf32>
    %86 = arith.addf %83, %85 : vector<16x16xf32>
    %c0_75 = arith.constant 0 : index
    %c0_76 = arith.constant 0 : index
    %87 = vector.load %arg16[%c0_75, %c0_76] : memref<22x256xf32, #tpu.memory_space<vmem>>, vector<16x256xf32>
    %c0_77 = arith.constant 0 : index
    %c0_78 = arith.constant 0 : index
    %c0_79 = arith.constant 0 : index
    %88 = vector.load %arg9[%c0_77, %c0_78, %c0_79] : memref<7x256x16xf32, #tpu.memory_space<vmem>>, vector<1x256x16xf32>
    %89 = vector.shape_cast %88 : vector<1x256x16xf32> to vector<256x16xf32>
    %cst_80 = arith.constant dense<0.000000e+00> : vector<16x16xf32>
    %90 = tpu.matmul %87, %89, %cst_80 {dimension_numbers = #tpu.dot_dimension_numbers<[1], [0], [0], [1], [0, 0, 1, 1], [], []>} : vector<16x256xf32>, vector<256x16xf32>, vector<16x16xf32> -> vector<16x16xf32>
    %91 = arith.addf %86, %90 : vector<16x16xf32>
    %c1_81 = arith.constant 1 : index
    %c0_82 = arith.constant 0 : index
    %92 = vector.load %arg16[%c1_81, %c0_82] : memref<22x256xf32, #tpu.memory_space<vmem>>, vector<16x256xf32>
    %c1_83 = arith.constant 1 : index
    %c0_84 = arith.constant 0 : index
    %c0_85 = arith.constant 0 : index
    %93 = vector.load %arg9[%c1_83, %c0_84, %c0_85] : memref<7x256x16xf32, #tpu.memory_space<vmem>>, vector<1x256x16xf32>
    %94 = vector.shape_cast %93 : vector<1x256x16xf32> to vector<256x16xf32>
    %cst_86 = arith.constant dense<0.000000e+00> : vector<16x16xf32>
    %95 = tpu.matmul %92, %94, %cst_86 {dimension_numbers = #tpu.dot_dimension_numbers<[1], [0], [0], [1], [0, 0, 1, 1], [], []>} : vector<16x256xf32>, vector<256x16xf32>, vector<16x16xf32> -> vector<16x16xf32>
    %96 = arith.addf %91, %95 : vector<16x16xf32>
    %c2_87 = arith.constant 2 : index
    %c0_88 = arith.constant 0 : index
    %97 = vector.load %arg16[%c2_87, %c0_88] : memref<22x256xf32, #tpu.memory_space<vmem>>, vector<16x256xf32>
    %c2_89 = arith.constant 2 : index
    %c0_90 = arith.constant 0 : index
    %c0_91 = arith.constant 0 : index
    %98 = vector.load %arg9[%c2_89, %c0_90, %c0_91] : memref<7x256x16xf32, #tpu.memory_space<vmem>>, vector<1x256x16xf32>
    %99 = vector.shape_cast %98 : vector<1x256x16xf32> to vector<256x16xf32>
    %cst_92 = arith.constant dense<0.000000e+00> : vector<16x16xf32>
    %100 = tpu.matmul %97, %99, %cst_92 {dimension_numbers = #tpu.dot_dimension_numbers<[1], [0], [0], [1], [0, 0, 1, 1], [], []>} : vector<16x256xf32>, vector<256x16xf32>, vector<16x16xf32> -> vector<16x16xf32>
    %101 = arith.addf %96, %100 : vector<16x16xf32>
    %c3_93 = arith.constant 3 : index
    %c0_94 = arith.constant 0 : index
    %102 = vector.load %arg16[%c3_93, %c0_94] : memref<22x256xf32, #tpu.memory_space<vmem>>, vector<16x256xf32>
    %c3_95 = arith.constant 3 : index
    %c0_96 = arith.constant 0 : index
    %c0_97 = arith.constant 0 : index
    %103 = vector.load %arg9[%c3_95, %c0_96, %c0_97] : memref<7x256x16xf32, #tpu.memory_space<vmem>>, vector<1x256x16xf32>
    %104 = vector.shape_cast %103 : vector<1x256x16xf32> to vector<256x16xf32>
    %cst_98 = arith.constant dense<0.000000e+00> : vector<16x16xf32>
    %105 = tpu.matmul %102, %104, %cst_98 {dimension_numbers = #tpu.dot_dimension_numbers<[1], [0], [0], [1], [0, 0, 1, 1], [], []>} : vector<16x256xf32>, vector<256x16xf32>, vector<16x16xf32> -> vector<16x16xf32>
    %106 = arith.addf %101, %105 : vector<16x16xf32>
    %c4_99 = arith.constant 4 : index
    %c0_100 = arith.constant 0 : index
    %107 = vector.load %arg16[%c4_99, %c0_100] : memref<22x256xf32, #tpu.memory_space<vmem>>, vector<16x256xf32>
    %c4_101 = arith.constant 4 : index
    %c0_102 = arith.constant 0 : index
    %c0_103 = arith.constant 0 : index
    %108 = vector.load %arg9[%c4_101, %c0_102, %c0_103] : memref<7x256x16xf32, #tpu.memory_space<vmem>>, vector<1x256x16xf32>
    %109 = vector.shape_cast %108 : vector<1x256x16xf32> to vector<256x16xf32>
    %cst_104 = arith.constant dense<0.000000e+00> : vector<16x16xf32>
    %110 = tpu.matmul %107, %109, %cst_104 {dimension_numbers = #tpu.dot_dimension_numbers<[1], [0], [0], [1], [0, 0, 1, 1], [], []>} : vector<16x256xf32>, vector<256x16xf32>, vector<16x16xf32> -> vector<16x16xf32>
    %111 = arith.addf %106, %110 : vector<16x16xf32>
    %c5_105 = arith.constant 5 : index
    %c0_106 = arith.constant 0 : index
    %112 = vector.load %arg16[%c5_105, %c0_106] : memref<22x256xf32, #tpu.memory_space<vmem>>, vector<16x256xf32>
    %c5_107 = arith.constant 5 : index
    %c0_108 = arith.constant 0 : index
    %c0_109 = arith.constant 0 : index
    %113 = vector.load %arg9[%c5_107, %c0_108, %c0_109] : memref<7x256x16xf32, #tpu.memory_space<vmem>>, vector<1x256x16xf32>
    %114 = vector.shape_cast %113 : vector<1x256x16xf32> to vector<256x16xf32>
    %cst_110 = arith.constant dense<0.000000e+00> : vector<16x16xf32>
    %115 = tpu.matmul %112, %114, %cst_110 {dimension_numbers = #tpu.dot_dimension_numbers<[1], [0], [0], [1], [0, 0, 1, 1], [], []>} : vector<16x256xf32>, vector<256x16xf32>, vector<16x16xf32> -> vector<16x16xf32>
    %116 = arith.addf %111, %115 : vector<16x16xf32>
    %c6_111 = arith.constant 6 : index
    %c0_112 = arith.constant 0 : index
    %117 = vector.load %arg16[%c6_111, %c0_112] : memref<22x256xf32, #tpu.memory_space<vmem>>, vector<16x256xf32>
    %c6_113 = arith.constant 6 : index
    %c0_114 = arith.constant 0 : index
    %c0_115 = arith.constant 0 : index
    %118 = vector.load %arg9[%c6_113, %c0_114, %c0_115] : memref<7x256x16xf32, #tpu.memory_space<vmem>>, vector<1x256x16xf32>
    %119 = vector.shape_cast %118 : vector<1x256x16xf32> to vector<256x16xf32>
    %cst_116 = arith.constant dense<0.000000e+00> : vector<16x16xf32>
    %120 = tpu.matmul %117, %119, %cst_116 {dimension_numbers = #tpu.dot_dimension_numbers<[1], [0], [0], [1], [0, 0, 1, 1], [], []>} : vector<16x256xf32>, vector<256x16xf32>, vector<16x16xf32> -> vector<16x16xf32>
    %121 = arith.addf %116, %120 : vector<16x16xf32>
    %122 = arith.negf %121 : vector<16x16xf32>
    %123 = math.exp %122 : vector<16x16xf32>
    %cst_117 = arith.constant 1.000000e+00 : f32
    %124 = vector.broadcast %cst_117 : f32 to vector<16x16xf32>
    %125 = arith.addf %124, %123 : vector<16x16xf32>
    %126 = arith.divf %124, %125 : vector<16x16xf32>
    %c0_118 = arith.constant 0 : index
    %c0_119 = arith.constant 0 : index
    %127 = vector.load %arg11[%c0_118, %c0_119] : memref<16x128xf32, #tpu.memory_space<vmem>>, vector<16x128xf32>
    %cst_120 = arith.constant dense<0.000000e+00> : vector<16x128xf32>
    %128 = tpu.matmul %126, %127, %cst_120 {dimension_numbers = #tpu.dot_dimension_numbers<[1], [0], [0], [1], [0, 0, 1, 1], [], []>} : vector<16x16xf32>, vector<16x128xf32>, vector<16x128xf32> -> vector<16x128xf32>
    %129 = vector.broadcast %64 : vector<1x128xf32> to vector<16x128xf32>
    %130 = arith.mulf %128, %129 : vector<16x128xf32>
    %131 = arith.mulf %1, %130 : vector<16x128xf32>
    %c1_121 = arith.constant 1 : index
    %c0_122 = arith.constant 0 : index
    %132 = vector.load %arg15[%c1_121, %c0_122] : memref<18x256xf32, #tpu.memory_space<vmem>>, vector<16x128xf32>
    tpu.vector_store %arg15[%c1_121, %c0_122], %131 {strides = array<i32>} : memref<18x256xf32, #tpu.memory_space<vmem>>, vector<16x128xf32>,
    %133 = arith.mulf %3, %130 : vector<16x128xf32>
    %c1_123 = arith.constant 1 : index
    %c128_124 = arith.constant 128 : index
    %134 = vector.load %arg15[%c1_123, %c128_124] : memref<18x256xf32, #tpu.memory_space<vmem>>, vector<16x128xf32>
    tpu.vector_store %arg15[%c1_123, %c128_124], %133 {strides = array<i32>} : memref<18x256xf32, #tpu.memory_space<vmem>>, vector<16x128xf32>,
    %cst_125 = arith.constant 0.000000e+00 : f32
    %135 = vector.broadcast %cst_125 : f32 to vector<16x128xf32>
    %c0_126 = arith.constant 0 : index
    %c0_127 = arith.constant 0 : index
    %136 = vector.load %arg13[%c0_126, %c0_127] : memref<1x128xf32, #tpu.memory_space<vmem>>, vector<1x128xf32>
    %137 = vector.broadcast %136 : vector<1x128xf32> to vector<16x128xf32>
    %138 = arith.addf %135, %137 : vector<16x128xf32>
    %c0_128 = arith.constant 0 : index
    %c0_129 = arith.constant 0 : index
    %139 = vector.load %arg15[%c0_128, %c0_129] : memref<18x256xf32, #tpu.memory_space<vmem>>, vector<16x256xf32>
    %c0_130 = arith.constant 0 : index
    %c0_131 = arith.constant 0 : index
    %c0_132 = arith.constant 0 : index
    %140 = vector.load %arg12[%c0_130, %c0_131, %c0_132] : memref<3x256x128xf32, #tpu.memory_space<vmem>>, vector<1x256x128xf32>
    %141 = vector.shape_cast %140 : vector<1x256x128xf32> to vector<256x128xf32>
    %cst_133 = arith.constant dense<0.000000e+00> : vector<16x128xf32>
    %142 = tpu.matmul %139, %141, %cst_133 {dimension_numbers = #tpu.dot_dimension_numbers<[1], [0], [0], [1], [0, 0, 1, 1], [], []>} : vector<16x256xf32>, vector<256x128xf32>, vector<16x128xf32> -> vector<16x128xf32>
    %143 = arith.addf %138, %142 : vector<16x128xf32>
    %c1_134 = arith.constant 1 : index
    %c0_135 = arith.constant 0 : index
    %144 = vector.load %arg15[%c1_134, %c0_135] : memref<18x256xf32, #tpu.memory_space<vmem>>, vector<16x256xf32>
    %c1_136 = arith.constant 1 : index
    %c0_137 = arith.constant 0 : index
    %c0_138 = arith.constant 0 : index
    %145 = vector.load %arg12[%c1_136, %c0_137, %c0_138] : memref<3x256x128xf32, #tpu.memory_space<vmem>>, vector<1x256x128xf32>
    %146 = vector.shape_cast %145 : vector<1x256x128xf32> to vector<256x128xf32>
    %cst_139 = arith.constant dense<0.000000e+00> : vector<16x128xf32>
    %147 = tpu.matmul %144, %146, %cst_139 {dimension_numbers = #tpu.dot_dimension_numbers<[1], [0], [0], [1], [0, 0, 1, 1], [], []>} : vector<16x256xf32>, vector<256x128xf32>, vector<16x128xf32> -> vector<16x128xf32>
    %148 = arith.addf %143, %147 : vector<16x128xf32>
    %c2_140 = arith.constant 2 : index
    %c0_141 = arith.constant 0 : index
    %149 = vector.load %arg15[%c2_140, %c0_141] : memref<18x256xf32, #tpu.memory_space<vmem>>, vector<16x256xf32>
    %c2_142 = arith.constant 2 : index
    %c0_143 = arith.constant 0 : index
    %c0_144 = arith.constant 0 : index
    %150 = vector.load %arg12[%c2_142, %c0_143, %c0_144] : memref<3x256x128xf32, #tpu.memory_space<vmem>>, vector<1x256x128xf32>
    %151 = vector.shape_cast %150 : vector<1x256x128xf32> to vector<256x128xf32>
    %cst_145 = arith.constant dense<0.000000e+00> : vector<16x128xf32>
    %152 = tpu.matmul %149, %151, %cst_145 {dimension_numbers = #tpu.dot_dimension_numbers<[1], [0], [0], [1], [0, 0, 1, 1], [], []>} : vector<16x256xf32>, vector<256x128xf32>, vector<16x128xf32> -> vector<16x128xf32>
    %153 = arith.addf %148, %152 : vector<16x128xf32>
    %c0_146 = arith.constant 0 : index
    %c0_147 = arith.constant 0 : index
    %c0_148 = arith.constant 0 : index
    %154 = vector.load %arg14[%c0_146, %c0_147, %c0_148] : memref<1x16x128xf32, #tpu.memory_space<vmem>>, vector<1x16x128xf32>
    %155 = vector.shape_cast %154 : vector<1x16x128xf32> to vector<16x128xf32>
    %156 = vector.shape_cast %153 : vector<16x128xf32> to vector<1x16x128xf32>
    tpu.vector_store %arg14[%c0_146, %c0_147, %c0_148], %156 {strides = array<i32>} : memref<1x16x128xf32, #tpu.memory_space<vmem>>, vector<1x16x128xf32>,
    return
  }
  func.func @transform_0(%arg0: i32) -> (i32, i32, i32) {
    %c0_i32 = arith.constant 0 : i32
    %c0_i32_0 = arith.constant 0 : i32
    %c0_i32_1 = arith.constant 0 : i32
    return %arg0, %c0_i32, %c0_i32_0 : i32, i32, i32
  }
  func.func @transform_1(%arg0: i32) -> (i32, i32, i32) {
    %c0_i32 = arith.constant 0 : i32
    %c0_i32_0 = arith.constant 0 : i32
    %c0_i32_1 = arith.constant 0 : i32
    return %arg0, %c0_i32, %c0_i32_0 : i32, i32, i32
  }
  func.func @transform_2(%arg0: i32) -> (i32, i32, i32) {
    %c0_i32 = arith.constant 0 : i32
    %c0_i32_0 = arith.constant 0 : i32
    %c0_i32_1 = arith.constant 0 : i32
    %c0_i32_2 = arith.constant 0 : i32
    return %c0_i32, %c0_i32_0, %c0_i32_1 : i32, i32, i32
  }
  func.func @transform_3(%arg0: i32) -> (i32, i32) {
    %c0_i32 = arith.constant 0 : i32
    %c0_i32_0 = arith.constant 0 : i32
    %c0_i32_1 = arith.constant 0 : i32
    return %c0_i32, %c0_i32_0 : i32, i32
  }
  func.func @transform_4(%arg0: i32) -> (i32, i32) {
    %c0_i32 = arith.constant 0 : i32
    %c0_i32_0 = arith.constant 0 : i32
    %c0_i32_1 = arith.constant 0 : i32
    return %c0_i32, %c0_i32_0 : i32, i32
  }
  func.func @transform_5(%arg0: i32) -> (i32, i32) {
    %c0_i32 = arith.constant 0 : i32
    %c0_i32_0 = arith.constant 0 : i32
    %c0_i32_1 = arith.constant 0 : i32
    return %c0_i32, %c0_i32_0 : i32, i32
  }
  func.func @transform_6(%arg0: i32) -> (i32, i32) {
    %c0_i32 = arith.constant 0 : i32
    %c0_i32_0 = arith.constant 0 : i32
    %c0_i32_1 = arith.constant 0 : i32
    return %c0_i32, %c0_i32_0 : i32, i32
  }
  func.func @transform_7(%arg0: i32) -> (i32, i32) {
    %c0_i32 = arith.constant 0 : i32
    %c0_i32_0 = arith.constant 0 : i32
    %c0_i32_1 = arith.constant 0 : i32
    return %c0_i32, %c0_i32_0 : i32, i32
  }
  func.func @transform_8(%arg0: i32) -> (i32, i32, i32) {
    %c0_i32 = arith.constant 0 : i32
    %c0_i32_0 = arith.constant 0 : i32
    %c0_i32_1 = arith.constant 0 : i32
    %c0_i32_2 = arith.constant 0 : i32
    return %c0_i32, %c0_i32_0, %c0_i32_1 : i32, i32, i32
  }
  func.func @transform_9(%arg0: i32) -> (i32, i32) {
    %c0_i32 = arith.constant 0 : i32
    %c0_i32_0 = arith.constant 0 : i32
    %c0_i32_1 = arith.constant 0 : i32
    return %c0_i32, %c0_i32_0 : i32, i32
  }
  func.func @transform_10(%arg0: i32) -> (i32, i32) {
    %c0_i32 = arith.constant 0 : i32
    %c0_i32_0 = arith.constant 0 : i32
    %c0_i32_1 = arith.constant 0 : i32
    return %c0_i32, %c0_i32_0 : i32, i32
  }
  func.func @transform_11(%arg0: i32) -> (i32, i32, i32) {
    %c0_i32 = arith.constant 0 : i32
    %c0_i32_0 = arith.constant 0 : i32
    %c0_i32_1 = arith.constant 0 : i32
    %c0_i32_2 = arith.constant 0 : i32
    return %c0_i32, %c0_i32_0, %c0_i32_1 : i32, i32, i32
  }
  func.func @transform_12(%arg0: i32) -> (i32, i32) {
    %c0_i32 = arith.constant 0 : i32
    %c0_i32_0 = arith.constant 0 : i32
    %c0_i32_1 = arith.constant 0 : i32
    return %c0_i32, %c0_i32_0 : i32, i32
  }
  func.func @transform_13(%arg0: i32) -> (i32, i32, i32) {
    %c0_i32 = arith.constant 0 : i32
    %c0_i32_0 = arith.constant 0 : i32
    %c0_i32_1 = arith.constant 0 : i32
    return %arg0, %c0_i32, %c0_i32_0 : i32, i32, i32
  }
}

</mosaic_0001>

<llo_original>
// kernel: tpu_custom_call.1
$region0: #{tpu_custom_call.1}
  #allocation0 [shape = 'u32[]', space=smem, size = 0x4, offset = 0x4, fixed_abs, tag = 'smem constant byte address 0x4 - core index']
  #allocation1 [shape = 'u32[144,128]{1,0:T(1,128)}', space=vmem, size = 0x12000, scoped, tag = 'internal scratch']
  #allocation2 [shape = 'f32[18,256]{1,0:T(8,128)}', space=vmem, size = 0x6000, scoped, tag = 'scratch operand']
  #allocation3 [shape = 'f32[22,256]{1,0:T(8,128)}', space=vmem, size = 0x6000, scoped, tag = 'scratch operand']
  #allocation4 [shape = 'f32[1,1]{1,0:T(1,128)S(1)}', space=vmem, size = 0x200, scoped, tag = 'scoped memory for tpu_custom_call.1']
  %s0 = inlined_call_operand.vmem [shape: f32[2,16,128], index: 0, kind: input, shape index: {}]
  %s1 = inlined_call_operand.vmem [shape: f32[2,16,128], index: 1, kind: input, shape index: {}]
  %s2 = inlined_call_operand.vmem [shape: f32[3,256,128], index: 2, kind: input, shape index: {}]
  %s3 = inlined_call_operand.vmem [shape: f32[1,128], index: 3, kind: input, shape index: {}]
  %s4 = inlined_call_operand.vmem [shape: f32[2,128], index: 4, kind: input, shape index: {}]
  %s5 = inlined_call_operand.vmem [shape: f32[1,2], index: 5, kind: input, shape index: {}]
  %s6 = inlined_call_operand.vmem [shape: f32[2,128], index: 6, kind: input, shape index: {}]
  %s7 = inlined_call_operand.vmem [shape: f32[1,128], index: 7, kind: input, shape index: {}]
  %s8 = inlined_call_operand.vmem [shape: f32[7,256,16], index: 8, kind: input, shape index: {}]
  %s9 = inlined_call_operand.<no memory space> [shape: f32[1,1], index: 9, kind: input, shape index: {}]
  %s10 = inlined_call_operand.vmem [shape: f32[16,128], index: 10, kind: input, shape index: {}]
  %s11 = inlined_call_operand.vmem [shape: f32[3,256,128], index: 11, kind: input, shape index: {}]
  %s12 = inlined_call_operand.vmem [shape: f32[1,128], index: 12, kind: input, shape index: {}]
  %s13 = inlined_call_operand.hbm [shape: f32[2,16,128], index: 13, kind: output, shape index: {}]
  %s14 = sld [smem:[#allocation0]]
  $region85: #{tpu_custom_call.1} parent=0
    _
  %s16 = ssub.s32 1, %s14
  %s17 = scalar_select 0, %s16, %s14
  %v18 = vstv %s9
  %19 = vst [vmem:[#allocation4] sm:$0x1] %v18
  $region1: #{tpu_custom_call.1} parent=0
    #allocation5 [shape = 'u8[16384]{0}', space=vmem, size = 0x4000, scoped, tag = 'output window, operand 0']
    #allocation6 [shape = 's32[2]{0}', space=sflag, size = 0x8, scoped, tag = 'scoped memory for tpu_custom_call.1']
    %20 = vsyncpa [#allocation6], 0
    %s21 = scalar_lea.sflag [#allocation6], 1
    %22 = vsyncpa %s21, 0
    loop: start=0, step=1, limit=4
    $region2: #{tpu_custom_call.1} parent=1 // loop_pre_header
      _
    $region3: #{tpu_custom_call.1} parent=1 // loop_header
      %s24 = sphi 0, %s28
      %p25 = scmp.ge.s32.totalorder %s24, 4
      %s34 = sphi 0, %s36
      %s37 = sphi 0, %s34
      %s38 = sphi 0, %s37
      %s54 = sphi 0, %s38
      %s60 = sphi 0, %s62
      %s63 = sphi 0, %s60
      %s64 = sphi 0, %s63
      %s80 = sphi 0, %s64
      %s84 = sphi 0, %s84
      %s86 = sphi 0, %s84
      %s87 = sphi 0, %s86
      %s101 = sphi 0, %s87
      %s105 = sphi 0, %s105
      %s107 = sphi 0, %s105
      %s108 = sphi 0, %s107
      %s122 = sphi 0, %s108
      %s126 = sphi 0, %s126
      %s128 = sphi 0, %s126
      %s129 = sphi 0, %s128
      %s143 = sphi 0, %s129
      %s147 = sphi 0, %s147
      %s149 = sphi 0, %s147
      %s150 = sphi 0, %s149
      %s164 = sphi 0, %s150
      %s168 = sphi 0, %s168
      %s170 = sphi 0, %s168
      %s171 = sphi 0, %s170
      %s185 = sphi 0, %s171
      %s189 = sphi 0, %s189
      %s191 = sphi 0, %s189
      %s192 = sphi 0, %s191
      %s206 = sphi 0, %s192
      %s210 = sphi 0, %s210
      %s212 = sphi 0, %s210
      %s213 = sphi 0, %s212
      %s227 = sphi 0, %s213
      %s231 = sphi 0, %s231
      %s233 = sphi 0, %s231
      %s234 = sphi 0, %s233
      %s248 = sphi 0, %s234
      %s252 = sphi 0, %s252
      %s254 = sphi 0, %s252
      %s255 = sphi 0, %s254
      %s269 = sphi 0, %s255
      %s273 = sphi 0, %s273
      %s275 = sphi 0, %s273
      %s276 = sphi 0, %s275
      %s290 = sphi 0, %s276
      %s294 = sphi 0, %s294
      %s296 = sphi 0, %s294
      %s297 = sphi 0, %s296
      %s311 = sphi 0, %s297
      %s317 = sphi 0, %s319
      %s320 = sphi 0, %s317
      %s321 = sphi 0, %s320
      %s337 = sphi 0, %s321
    $region4: #{tpu_custom_call.1} parent=1 // loop_header_branch
      %27 = sbr.rel (%p25) target = $region8
    $region5: #{tpu_custom_call.1} parent=1 // loop_body
      %s29 = ssub.s32 %s24, 1
      %s30 = ssub.s32 %s24, 2
      %s31 = sadd.s32 %s24, 1
      %s32 = ssub.s32 %s24, %s31
      %p33 = scmp.eq.s32.totalorder %s32, 0
      %s35 = sadd.s32 %s34, 1
      %s36 = scalar_select %p33, %s34, %s35
      %p39 = pneg %p33
      %p40 = scmp.eq.s32.totalorder %s24, 1
      %p41 = por %p39, %p40
      %p42 = scmp.ne.s32.totalorder %s34, %s37
      %p43 = scmp.eq.s32.totalorder %s24, 0
      %p44 = por %p42, %p43
      %p45 = scmp.ne.s32.totalorder %s34, %s37
      %p46 = scmp.eq.s32.totalorder %s29, 1
      %p47 = por %p45, %p46
      %p48 = scmp.ne.s32.totalorder %s37, %s38
      %p49 = scmp.eq.s32.totalorder %s29, 0
      %p50 = por %p48, %p49
      %p51 = scmp.ne.s32.totalorder %s37, %s38
      %p52 = scmp.eq.s32.totalorder %s30, 1
      %p53 = por %p51, %p52
      %p55 = scmp.ne.s32.totalorder %s38, %s54
      %p56 = scmp.eq.s32.totalorder %s30, 0
      %p57 = por %p55, %p56
      %s58 = ssub.s32 %s24, %s31
      %p59 = scmp.eq.s32.totalorder %s58, 0
      %s61 = sadd.s32 %s60, 1
      %s62 = scalar_select %p59, %s60, %s61
      %p65 = pneg %p59
      %p66 = scmp.eq.s32.totalorder %s24, 1
      %p67 = por %p65, %p66
      %p68 = scmp.ne.s32.totalorder %s60, %s63
      %p69 = scmp.eq.s32.totalorder %s24, 0
      %p70 = por %p68, %p69
      %p71 = scmp.ne.s32.totalorder %s60, %s63
      %p72 = scmp.eq.s32.totalorder %s29, 1
      %p73 = por %p71, %p72
      %p74 = scmp.ne.s32.totalorder %s63, %s64
      %p75 = scmp.eq.s32.totalorder %s29, 0
      %p76 = por %p74, %p75
      %p77 = scmp.ne.s32.totalorder %s63, %s64
      %p78 = scmp.eq.s32.totalorder %s30, 1
      %p79 = por %p77, %p78
      %p81 = scmp.ne.s32.totalorder %s64, %s80
      %p82 = scmp.eq.s32.totalorder %s30, 0
      %p83 = por %p81, %p82
      %s85 = sadd.s32 %s84, 1
      %p88 = scmp.eq.s32.totalorder %s24, 1
      %p89 = scmp.ne.s32.totalorder %s84, %s86
      %p90 = scmp.eq.s32.totalorder %s24, 0
      %p91 = por %p89, %p90
      %p92 = scmp.ne.s32.totalorder %s84, %s86
      %p93 = scmp.eq.s32.totalorder %s29, 1
      %p94 = por %p92, %p93
      %p95 = scmp.ne.s32.totalorder %s86, %s87
      %p96 = scmp.eq.s32.totalorder %s29, 0
      %p97 = por %p95, %p96
      %p98 = scmp.ne.s32.totalorder %s86, %s87
      %p99 = scmp.eq.s32.totalorder %s30, 1
      %p100 = por %p98, %p99
      %p102 = scmp.ne.s32.totalorder %s87, %s101
      %p103 = scmp.eq.s32.totalorder %s30, 0
      %p104 = por %p102, %p103
      %s106 = sadd.s32 %s105, 1
      %p109 = scmp.eq.s32.totalorder %s24, 1
      %p110 = scmp.ne.s32.totalorder %s105, %s107
      %p111 = scmp.eq.s32.totalorder %s24, 0
      %p112 = por %p110, %p111
      %p113 = scmp.ne.s32.totalorder %s105, %s107
      %p114 = scmp.eq.s32.totalorder %s29, 1
      %p115 = por %p113, %p114
      %p116 = scmp.ne.s32.totalorder %s107, %s108
      %p117 = scmp.eq.s32.totalorder %s29, 0
      %p118 = por %p116, %p117
      %p119 = scmp.ne.s32.totalorder %s107, %s108
      %p120 = scmp.eq.s32.totalorder %s30, 1
      %p121 = por %p119, %p120
      %p123 = scmp.ne.s32.totalorder %s108, %s122
      %p124 = scmp.eq.s32.totalorder %s30, 0
      %p125 = por %p123, %p124
      %s127 = sadd.s32 %s126, 1
      %p130 = scmp.eq.s32.totalorder %s24, 1
      %p131 = scmp.ne.s32.totalorder %s126, %s128
      %p132 = scmp.eq.s32.totalorder %s24, 0
      %p133 = por %p131, %p132
      %p134 = scmp.ne.s32.totalorder %s126, %s128
      %p135 = scmp.eq.s32.totalorder %s29, 1
      %p136 = por %p134, %p135
      %p137 = scmp.ne.s32.totalorder %s128, %s129
      %p138 = scmp.eq.s32.totalorder %s29, 0
      %p139 = por %p137, %p138
      %p140 = scmp.ne.s32.totalorder %s128, %s129
      %p141 = scmp.eq.s32.totalorder %s30, 1
      %p142 = por %p140, %p141
      %p144 = scmp.ne.s32.totalorder %s129, %s143
      %p145 = scmp.eq.s32.totalorder %s30, 0
      %p146 = por %p144, %p145
      %s148 = sadd.s32 %s147, 1
      %p151 = scmp.eq.s32.totalorder %s24, 1
      %p152 = scmp.ne.s32.totalorder %s147, %s149
      %p153 = scmp.eq.s32.totalorder %s24, 0
      %p154 = por %p152, %p153
      %p155 = scmp.ne.s32.totalorder %s147, %s149
      %p156 = scmp.eq.s32.totalorder %s29, 1
      %p157 = por %p155, %p156
      %p158 = scmp.ne.s32.totalorder %s149, %s150
      %p159 = scmp.eq.s32.totalorder %s29, 0
      %p160 = por %p158, %p159
      %p161 = scmp.ne.s32.totalorder %s149, %s150
      %p162 = scmp.eq.s32.totalorder %s30, 1
      %p163 = por %p161, %p162
      %p165 = scmp.ne.s32.totalorder %s150, %s164
      %p166 = scmp.eq.s32.totalorder %s30, 0
      %p167 = por %p165, %p166
      %s169 = sadd.s32 %s168, 1
      %p172 = scmp.eq.s32.totalorder %s24, 1
      %p173 = scmp.ne.s32.totalorder %s168, %s170
      %p174 = scmp.eq.s32.totalorder %s24, 0
      %p175 = por %p173, %p174
      %p176 = scmp.ne.s32.totalorder %s168, %s170
      %p177 = scmp.eq.s32.totalorder %s29, 1
      %p178 = por %p176, %p177
      %p179 = scmp.ne.s32.totalorder %s170, %s171
      %p180 = scmp.eq.s32.totalorder %s29, 0
      %p181 = por %p179, %p180
      %p182 = scmp.ne.s32.totalorder %s170, %s171
      %p183 = scmp.eq.s32.totalorder %s30, 1
      %p184 = por %p182, %p183
      %p186 = scmp.ne.s32.totalorder %s171, %s185
      %p187 = scmp.eq.s32.totalorder %s30, 0
      %p188 = por %p186, %p187
      %s190 = sadd.s32 %s189, 1
      %p193 = scmp.eq.s32.totalorder %s24, 1
      %p194 = scmp.ne.s32.totalorder %s189, %s191
      %p195 = scmp.eq.s32.totalorder %s24, 0
      %p196 = por %p194, %p195
      %p197 = scmp.ne.s32.totalorder %s189, %s191
      %p198 = scmp.eq.s32.totalorder %s29, 1
      %p199 = por %p197, %p198
      %p200 = scmp.ne.s32.totalorder %s191, %s192
      %p201 = scmp.eq.s32.totalorder %s29, 0
      %p202 = por %p200, %p201
      %p203 = scmp.ne.s32.totalorder %s191, %s192
      %p204 = scmp.eq.s32.totalorder %s30, 1
      %p205 = por %p203, %p204
      %p207 = scmp.ne.s32.totalorder %s192, %s206
      %p208 = scmp.eq.s32.totalorder %s30, 0
      %p209 = por %p207, %p208
      %s211 = sadd.s32 %s210, 1
      %p214 = scmp.eq.s32.totalorder %s24, 1
      %p215 = scmp.ne.s32.totalorder %s210, %s212
      %p216 = scmp.eq.s32.totalorder %s24, 0
      %p217 = por %p215, %p216
      %p218 = scmp.ne.s32.totalorder %s210, %s212
      %p219 = scmp.eq.s32.totalorder %s29, 1
      %p220 = por %p218, %p219
      %p221 = scmp.ne.s32.totalorder %s212, %s213
      %p222 = scmp.eq.s32.totalorder %s29, 0
      %p223 = por %p221, %p222
      %p224 = scmp.ne.s32.totalorder %s212, %s213
      %p225 = scmp.eq.s32.totalorder %s30, 1
      %p226 = por %p224, %p225
      %p228 = scmp.ne.s32.totalorder %s213, %s227
      %p229 = scmp.eq.s32.totalorder %s30, 0
      %p230 = por %p228, %p229
      %s232 = sadd.s32 %s231, 1
      %p235 = scmp.eq.s32.totalorder %s24, 1
      %p236 = scmp.ne.s32.totalorder %s231, %s233
      %p237 = scmp.eq.s32.totalorder %s24, 0
      %p238 = por %p236, %p237
      %p239 = scmp.ne.s32.totalorder %s231, %s233
      %p240 = scmp.eq.s32.totalorder %s29, 1
      %p241 = por %p239, %p240
      %p242 = scmp.ne.s32.totalorder %s233, %s234
      %p243 = scmp.eq.s32.totalorder %s29, 0
      %p244 = por %p242, %p243
      %p245 = scmp.ne.s32.totalorder %s233, %s234
      %p246 = scmp.eq.s32.totalorder %s30, 1
      %p247 = por %p245, %p246
      %p249 = scmp.ne.s32.totalorder %s234, %s248
      %p250 = scmp.eq.s32.totalorder %s30, 0
      %p251 = por %p249, %p250
      %s253 = sadd.s32 %s252, 1
      %p256 = scmp.eq.s32.totalorder %s24, 1
      %p257 = scmp.ne.s32.totalorder %s252, %s254
      %p258 = scmp.eq.s32.totalorder %s24, 0
      %p259 = por %p257, %p258
      %p260 = scmp.ne.s32.totalorder %s252, %s254
      %p261 = scmp.eq.s32.totalorder %s29, 1
      %p262 = por %p260, %p261
      %p263 = scmp.ne.s32.totalorder %s254, %s255
      %p264 = scmp.eq.s32.totalorder %s29, 0
      %p265 = por %p263, %p264
      %p266 = scmp.ne.s32.totalorder %s254, %s255
      %p267 = scmp.eq.s32.totalorder %s30, 1
      %p268 = por %p266, %p267
      %p270 = scmp.ne.s32.totalorder %s255, %s269
      %p271 = scmp.eq.s32.totalorder %s30, 0
      %p272 = por %p270, %p271
      %s274 = sadd.s32 %s273, 1
      %p277 = scmp.eq.s32.totalorder %s24, 1
      %p278 = scmp.ne.s32.totalorder %s273, %s275
      %p279 = scmp.eq.s32.totalorder %s24, 0
      %p280 = por %p278, %p279
      %p281 = scmp.ne.s32.totalorder %s273, %s275
      %p282 = scmp.eq.s32.totalorder %s29, 1
      %p283 = por %p281, %p282
      %p284 = scmp.ne.s32.totalorder %s275, %s276
      %p285 = scmp.eq.s32.totalorder %s29, 0
      %p286 = por %p284, %p285
      %p287 = scmp.ne.s32.totalorder %s275, %s276
      %p288 = scmp.eq.s32.totalorder %s30, 1
      %p289 = por %p287, %p288
      %p291 = scmp.ne.s32.totalorder %s276, %s290
      %p292 = scmp.eq.s32.totalorder %s30, 0
      %p293 = por %p291, %p292
      %s295 = sadd.s32 %s294, 1
      %p298 = scmp.eq.s32.totalorder %s24, 1
      %p299 = scmp.ne.s32.totalorder %s294, %s296
      %p300 = scmp.eq.s32.totalorder %s24, 0
      %p301 = por %p299, %p300
      %p302 = scmp.ne.s32.totalorder %s294, %s296
      %p303 = scmp.eq.s32.totalorder %s29, 1
      %p304 = por %p302, %p303
      %p305 = scmp.ne.s32.totalorder %s296, %s297
      %p306 = scmp.eq.s32.totalorder %s29, 0
      %p307 = por %p305, %p306
      %p308 = scmp.ne.s32.totalorder %s296, %s297
      %p309 = scmp.eq.s32.totalorder %s30, 1
      %p310 = por %p308, %p309
      %p312 = scmp.ne.s32.totalorder %s297, %s311
      %p313 = scmp.eq.s32.totalorder %s30, 0
      %p314 = por %p312, %p313
      %s315 = ssub.s32 %s24, %s31
      %p316 = scmp.eq.s32.totalorder %s315, 0
      %s318 = sadd.s32 %s317, 1
      %s319 = scalar_select %p316, %s317, %s318
      %p322 = pneg %p316
      %p323 = scmp.eq.s32.totalorder %s24, 1
      %p324 = por %p322, %p323
      %p325 = scmp.ne.s32.totalorder %s317, %s320
      %p326 = scmp.eq.s32.totalorder %s24, 0
      %p327 = por %p325, %p326
      %p328 = scmp.ne.s32.totalorder %s317, %s320
      %p329 = scmp.eq.s32.totalorder %s29, 1
      %p330 = por %p328, %p329
      %p331 = scmp.ne.s32.totalorder %s320, %s321
      %p332 = scmp.eq.s32.totalorder %s29, 0
      %p333 = por %p331, %p332
      %p334 = scmp.ne.s32.totalorder %s320, %s321
      %p335 = scmp.eq.s32.totalorder %s30, 1
      %p336 = por %p334, %p335
      %p338 = scmp.ne.s32.totalorder %s321, %s337
      %p339 = scmp.eq.s32.totalorder %s30, 0
      %p340 = por %p338, %p339
      %p341 = scmp.le.s32.totalorder 1, %s24
      %p342 = scmp.lt.s32.totalorder %s24, 3
      %p343 = pnand %p341, %p342
      %p344 = pneg %p343
      // Predicated region
      $region9: #{tpu_custom_call.1} parent=5 // pred_check
        _
      $region10: #{tpu_custom_call.1} parent=5 // pred_check_branch
        %346 = sbr.rel (%p343) target = $region12
      $region11: #{tpu_custom_call.1} parent=5 // pred_region
        %s347 = ssub.s32 %s24, 1
        // Predicated region
        $region13: #{tpu_custom_call.1} parent=11 // pred_check
          %p348 = pneg %p97
        $region14: #{tpu_custom_call.1} parent=11 // pred_check_branch
          %350 = sbr.rel (%p348) target = $region16
        $region15: #{tpu_custom_call.1} parent=11 // pred_region
          _
        $region16: #{tpu_custom_call.1} parent=11 // pred_fallthru
          _
        // Predicated region
        $region17: #{tpu_custom_call.1} parent=11 // pred_check
          %p351 = pneg %p118
        $region18: #{tpu_custom_call.1} parent=11 // pred_check_branch
          %353 = sbr.rel (%p351) target = $region20
        $region19: #{tpu_custom_call.1} parent=11 // pred_region
          _
        $region20: #{tpu_custom_call.1} parent=11 // pred_fallthru
          _
        // Predicated region
        $region21: #{tpu_custom_call.1} parent=11 // pred_check
          %p354 = pneg %p139
        $region22: #{tpu_custom_call.1} parent=11 // pred_check_branch
          %356 = sbr.rel (%p354) target = $region24
        $region23: #{tpu_custom_call.1} parent=11 // pred_region
          _
        $region24: #{tpu_custom_call.1} parent=11 // pred_fallthru
          _
        // Predicated region
        $region25: #{tpu_custom_call.1} parent=11 // pred_check
          %p357 = pneg %p160
        $region26: #{tpu_custom_call.1} parent=11 // pred_check_branch
          %359 = sbr.rel (%p357) target = $region28
        $region27: #{tpu_custom_call.1} parent=11 // pred_region
          _
        $region28: #{tpu_custom_call.1} parent=11 // pred_fallthru
          _
        // Predicated region
        $region29: #{tpu_custom_call.1} parent=11 // pred_check
          %p360 = pneg %p181
        $region30: #{tpu_custom_call.1} parent=11 // pred_check_branch
          %362 = sbr.rel (%p360) target = $region32
        $region31: #{tpu_custom_call.1} parent=11 // pred_region
          _
        $region32: #{tpu_custom_call.1} parent=11 // pred_fallthru
          _
        // Predicated region
        $region33: #{tpu_custom_call.1} parent=11 // pred_check
          %p363 = pneg %p202
        $region34: #{tpu_custom_call.1} parent=11 // pred_check_branch
          %365 = sbr.rel (%p363) target = $region36
        $region35: #{tpu_custom_call.1} parent=11 // pred_region
          _
        $region36: #{tpu_custom_call.1} parent=11 // pred_fallthru
          _
        // Predicated region
        $region37: #{tpu_custom_call.1} parent=11 // pred_check
          %p366 = pneg %p223
        $region38: #{tpu_custom_call.1} parent=11 // pred_check_branch
          %368 = sbr.rel (%p366) target = $region40
        $region39: #{tpu_custom_call.1} parent=11 // pred_region
          _
        $region40: #{tpu_custom_call.1} parent=11 // pred_fallthru
          _
        // Predicated region
        $region41: #{tpu_custom_call.1} parent=11 // pred_check
          %p369 = pneg %p244
        $region42: #{tpu_custom_call.1} parent=11 // pred_check_branch
          %371 = sbr.rel (%p369) target = $region44
        $region43: #{tpu_custom_call.1} parent=11 // pred_region
          _
        $region44: #{tpu_custom_call.1} parent=11 // pred_fallthru
          _
        // Predicated region
        $region45: #{tpu_custom_call.1} parent=11 // pred_check
          %p372 = pneg %p265
        $region46: #{tpu_custom_call.1} parent=11 // pred_check_branch
          %374 = sbr.rel (%p372) target = $region48
        $region47: #{tpu_custom_call.1} parent=11 // pred_region
          _
        $region48: #{tpu_custom_call.1} parent=11 // pred_fallthru
          _
        // Predicated region
        $region49: #{tpu_custom_call.1} parent=11 // pred_check
          %p375 = pneg %p286
        $region50: #{tpu_custom_call.1} parent=11 // pred_check_branch
          %377 = sbr.rel (%p375) target = $region52
        $region51: #{tpu_custom_call.1} parent=11 // pred_region
          _
        $region52: #{tpu_custom_call.1} parent=11 // pred_fallthru
          _
        // Predicated region
        $region53: #{tpu_custom_call.1} parent=11 // pred_check
          %p378 = pneg %p307
        $region54: #{tpu_custom_call.1} parent=11 // pred_check_branch
          %380 = sbr.rel (%p378) target = $region56
        $region55: #{tpu_custom_call.1} parent=11 // pred_region
          _
        $region56: #{tpu_custom_call.1} parent=11 // pred_fallthru
          _
      $region12: #{tpu_custom_call.1} parent=5 // pred_fallthru
        _
      %p381 = scmp.lt.s32.totalorder %s24, 2
      // Predicated region
      $region57: #{tpu_custom_call.1} parent=5 // pred_check
        %p382 = pneg %p381
      $region58: #{tpu_custom_call.1} parent=5 // pred_check_branch
        %384 = sbr.rel (%p382) target = $region60
      $region59: #{tpu_custom_call.1} parent=5 // pred_region
        // Predicated region
        $region61: #{tpu_custom_call.1} parent=59 // pred_check
          %p385 = pneg %p44
        $region62: #{tpu_custom_call.1} parent=59 // pred_check_branch
          %387 = sbr.rel (%p385) target = $region64
        $region63: #{tpu_custom_call.1} parent=59 // pred_region
          %p388 = scmp.lt.s32.totalorder %s24, 1
          %s389 = scalar_select %p388, %s24, 1
          %s390 = smul.addr %s389, 2
          %s391 = smul.addr %s390, 8
          %s392 = scalar_lea.vmem %s0, %s391
        $region64: #{tpu_custom_call.1} parent=59 // pred_fallthru
          _
        // Predicated region
        $region65: #{tpu_custom_call.1} parent=59 // pred_check
          %p393 = pneg %p70
        $region66: #{tpu_custom_call.1} parent=59 // pred_check_branch
          %395 = sbr.rel (%p393) target = $region68
        $region67: #{tpu_custom_call.1} parent=59 // pred_region
          %p396 = scmp.lt.s32.totalorder %s24, 1
          %s397 = scalar_select %p396, %s24, 1
          %s398 = smul.addr %s397, 2
          %s399 = smul.addr %s398, 8
          %s400 = scalar_lea.vmem %s1, %s399
        $region68: #{tpu_custom_call.1} parent=59 // pred_fallthru
          _
      $region60: #{tpu_custom_call.1} parent=5 // pred_fallthru
        _
      %p401 = scmp.le.s32.totalorder 1, %s24
      %p402 = scmp.lt.s32.totalorder %s24, 3
      %p403 = pnand %p401, %p402
      %p404 = pneg %p403
      // Predicated region
      $region69: #{tpu_custom_call.1} parent=5 // pred_check
        _
      $region70: #{tpu_custom_call.1} parent=5 // pred_check_branch
        %406 = sbr.rel (%p403) target = $region72
      $region71: #{tpu_custom_call.1} parent=5 // pred_region
        %s407 = ssub.s32 %s24, 1
        %p408 = scmp.lt.s32.totalorder %s29, 1
        %s409 = scalar_select %p408, %s29, 1
        %s410 = smul.addr %s409, 2
        %s411 = smul.addr %s410, 8
        %s412 = scalar_lea.vmem %s0, %s411
        %p413 = pneg %p50
        %p414 = pneg %p47
        %p415 = scmp.lt.s32.totalorder %s29, 1
        %s416 = scalar_select %p415, %s29, 1
        %s417 = smul.addr %s416, 2
        %s418 = smul.addr %s417, 8
        %s419 = scalar_lea.vmem %s1, %s418
        %p420 = pneg %p76
        %p421 = pneg %p73
        %p422 = pneg %p97
        %p423 = pneg %p94
        %p424 = pneg %p118
        %p425 = pneg %p115
        %p426 = pneg %p139
        %p427 = pneg %p136
        %p428 = pneg %p160
        %p429 = pneg %p157
        %p430 = pneg %p181
        %p431 = pneg %p178
        %p432 = pneg %p202
        %p433 = pneg %p199
        %p434 = pneg %p223
        %p435 = pneg %p220
        %p436 = pneg %p244
        %p437 = pneg %p241
        %p438 = pneg %p265
        %p439 = pneg %p262
        %p440 = pneg %p286
        %p441 = pneg %p283
        %p442 = pneg %p307
        %p443 = pneg %p304
        %p444 = pneg %p333
        %p445 = pneg %p330
        %s446 = sand.u32 %s320, 1
        %s447 = scalar_lea.sflag [#allocation6], %s446
        %s448 = sand.u32 %s320, 1
        %s449 = smul.addr %s448, 16
        %s450 = scalar_lea.vmem [#allocation5], %s449
        %p451 = scmp.lt.s32.totalorder %s29, 1
        %s452 = scalar_select %p451, %s29, 1
        %s453 = smul.addr %s452, 2
        %s454 = smul.addr %s453, 8
        %s455 = scalar_lea.vmem %s0, %s454
        %p456 = scmp.lt.s32.totalorder %s29, 1
        %s457 = scalar_select %p456, %s29, 1
        %s458 = smul.addr %s457, 2
        %s459 = smul.addr %s458, 8
        %s460 = scalar_lea.vmem %s1, %s459
        %v461 = vld [vmem:[%s455] sm:$0xff]
        %v462 = vld [vmem:[%s455 + $0x8] sm:$0xff]
        %v463 = vld [vmem:[%s460] sm:$0xff]
        %v464 = vld [vmem:[%s460 + $0x8] sm:$0xff]
        %v465 = vlaneseq
        %vm466 = vcmp.ge.s32.totalorder %v465, 0
        %vm467 = vcmp.lt.s32.totalorder %v465, 256
        %vm468 = vmand %vm466, %vm467
        %469 = vst.msk [vmem:[#allocation2] ss:$8 sm:$0x3] %vm468, 0.0
        %470 = vst.msk [vmem:[#allocation2] ss:$8 sm:$0x0] %vm468, 0.0
        %s471 = scalar_lea.vmem [#allocation2], 33
        %472 = vst.msk [vmem:[%s471] ss:$8 sm:$0x3] %vm468, 0.0
        %473 = vst.msk [vmem:[%s471] ss:$8 sm:$0x0] %vm468, 0.0
        %474 = vst [vmem:[#allocation3] sm:$0x7] 0.0
        %475 = vst [vmem:[#allocation3 + $0x8] sm:$0x7] 0.0
        %476 = vst [vmem:[#allocation3 + $0x20] sm:$0x38] 0.0
        %477 = vst [vmem:[#allocation3 + $0x28] sm:$0x38] 0.0
        %vm480 = vcmask 1040384
        %v481 = vrot.slane %v461, 7
        %v482 = vrot.slane %v462, 7
        %v483 = vsel %vm480, %v481, %v482
        %487 = vst [vmem:[#allocation2] sm:$0xfe] %v481
        %488 = vst [vmem:[#allocation2 + $0x10] sm:$0xff] %v483
        %489 = vst [vmem:[#allocation2 + $0x20] sm:$0x1] %v482
        %v492 = vrot.slane %v463, 7
        %v493 = vrot.slane %v464, 7
        %v494 = vsel %vm480, %v492, %v493
        %498 = vst [vmem:[#allocation2 + $0x8] sm:$0xfe] %v492
        %499 = vst [vmem:[#allocation2 + $0x18] sm:$0xff] %v494
        %500 = vst [vmem:[#allocation2 + $0x28] sm:$0x1] %v493
        %v501 = vld [vmem:[%s3] sm:$0x1]
        %v503 = vlaneseq
        %v504 = vshrl.u32 %v503, 7
        %v505 = vsub.s32 0, %v504
        %v506 = vrot.slane %v501, %v505
        %v508 = vadd.f32 %v506, 0.0
        %v509 = vld [vmem:[#allocation2] sm:$0xff]
        %v510 = vld [vmem:[#allocation2 + $0x8] sm:$0xff]
        %v511 = vld [vmem:[#allocation2 + $0x10] sm:$0xff]
        %v512 = vld [vmem:[#allocation2 + $0x18] sm:$0xff]
        %v513 = vld [vmem:[%s2] sm:$0xff]
        %v514 = vld [vmem:[%s2 + $0x8] sm:$0xff]
        %v515 = vld [vmem:[%s2 + $0x10] sm:$0xff]
        %v516 = vld [vmem:[%s2 + $0x18] sm:$0xff]
        %v517 = vld [vmem:[%s2 + $0x20] sm:$0xff]
        %v518 = vld [vmem:[%s2 + $0x28] sm:$0xff]
        %v519 = vld [vmem:[%s2 + $0x30] sm:$0xff]
        %v520 = vld [vmem:[%s2 + $0x38] sm:$0xff]
        %v521 = vld [vmem:[%s2 + $0x40] sm:$0xff]
        %v522 = vld [vmem:[%s2 + $0x48] sm:$0xff]
        %v523 = vld [vmem:[%s2 + $0x50] sm:$0xff]
        %v524 = vld [vmem:[%s2 + $0x58] sm:$0xff]
        %v525 = vld [vmem:[%s2 + $0x60] sm:$0xff]
        %v526 = vld [vmem:[%s2 + $0x68] sm:$0xff]
        %v527 = vld [vmem:[%s2 + $0x70] sm:$0xff]
        %v528 = vld [vmem:[%s2 + $0x78] sm:$0xff]
        %v529 = vld [vmem:[%s2 + $0x80] sm:$0xff]
        %v530 = vld [vmem:[%s2 + $0x88] sm:$0xff]
        %v531 = vld [vmem:[%s2 + $0x90] sm:$0xff]
        %v532 = vld [vmem:[%s2 + $0x98] sm:$0xff]
        %v533 = vld [vmem:[%s2 + $0xa0] sm:$0xff]
        %v534 = vld [vmem:[%s2 + $0xa8] sm:$0xff]
        %v535 = vld [vmem:[%s2 + $0xb0] sm:$0xff]
        %v536 = vld [vmem:[%s2 + $0xb8] sm:$0xff]
        %v537 = vld [vmem:[%s2 + $0xc0] sm:$0xff]
        %v538 = vld [vmem:[%s2 + $0xc8] sm:$0xff]
        %v539 = vld [vmem:[%s2 + $0xd0] sm:$0xff]
        %v540 = vld [vmem:[%s2 + $0xd8] sm:$0xff]
        %v541 = vld [vmem:[%s2 + $0xe0] sm:$0xff]
        %v542 = vld [vmem:[%s2 + $0xe8] sm:$0xff]
        %v543 = vld [vmem:[%s2 + $0xf0] sm:$0xff]
        %v544 = vld [vmem:[%s2 + $0xf8] sm:$0xff]
        %545 = vmatprep.subr.mxu0 0.0
        %546 = vmatpush1.msra.mxu0 %v513
        %547 = vmatprep.subr.mxu0 0.0
        %548 = vmatpush1.msra.mxu0 %v514
        %549 = vmatprep.subr.mxu0 0.0
        %550 = vmatpush1.msra.mxu0 %v515
        %551 = vmatprep.subr.mxu0 0.0
        %552 = vmatpush1.msra.mxu0 %v516
        %553 = vmatprep.subr.mxu0 0.0
        %554 = vmatpush1.msra.mxu0 %v517
        %555 = vmatprep.subr.mxu0 0.0
        %556 = vmatpush1.msra.mxu0 %v518
        %557 = vmatprep.subr.mxu0 0.0
        %558 = vmatpush1.msra.mxu0 %v519
        %559 = vmatprep.subr.mxu0 0.0
        %560 = vmatpush1.msra.mxu0 %v520
        %561 = vmatprep.subr.mxu0 0.0
        %562 = vmatpush1.msra.mxu0 %v521
        %563 = vmatprep.subr.mxu0 0.0
        %564 = vmatpush1.msra.mxu0 %v522
        %565 = vmatprep.subr.mxu0 0.0
        %566 = vmatpush1.msra.mxu0 %v523
        %567 = vmatprep.subr.mxu0 0.0
        %568 = vmatpush1.msra.mxu0 %v524
        %569 = vmatprep.subr.mxu0 0.0
        %570 = vmatpush1.msra.mxu0 %v525
        %571 = vmatprep.subr.mxu0 0.0
        %572 = vmatpush1.msra.mxu0 %v526
        %573 = vmatprep.subr.mxu0 0.0
        %574 = vmatpush1.msra.mxu0 %v527
        %575 = vmatprep.subr.mxu0 0.0
        %576 = vmatpush1.msra.mxu0 %v528
        %577 = vmatprep.subr.mxu0 0.0
        %578 = vmatpush1.msra.mxu0 %v529
        %579 = vmatprep.subr.mxu0 0.0
        %580 = vmatpush1.msra.mxu0 %v530
        %581 = vmatprep.subr.mxu0 0.0
        %582 = vmatpush1.msra.mxu0 %v531
        %583 = vmatprep.subr.mxu0 0.0
        %584 = vmatpush1.msra.mxu0 %v532
        %585 = vmatprep.subr.mxu0 0.0
        %586 = vmatpush1.msra.mxu0 %v533
        %587 = vmatprep.subr.mxu0 0.0
        %588 = vmatpush1.msra.mxu0 %v534
        %589 = vmatprep.subr.mxu0 0.0
        %590 = vmatpush1.msra.mxu0 %v535
        %591 = vmatprep.subr.mxu0 0.0
        %592 = vmatpush1.msra.mxu0 %v536
        %593 = vmatprep.subr.mxu0 0.0
        %594 = vmatpush1.msra.mxu0 %v537
        %595 = vmatprep.subr.mxu0 0.0
        %596 = vmatpush1.msra.mxu0 %v538
        %597 = vmatprep.subr.mxu0 0.0
        %598 = vmatpush1.msra.mxu0 %v539
        %599 = vmatprep.subr.mxu0 0.0
        %600 = vmatpush1.msra.mxu0 %v540
        %601 = vmatprep.subr.mxu0 0.0
        %602 = vmatpush1.msra.mxu0 %v541
        %603 = vmatprep.subr.mxu0 0.0
        %604 = vmatpush1.msra.mxu0 %v542
        %605 = vmatprep.subr.mxu0 0.0
        %606 = vmatpush1.msra.mxu0 %v543
        %607 = vmatprep.subr.mxu0 0.0
        %608 = vmatpush1.msra.mxu0 %v544
        %609 = vmatprep.mubr.f32.mxu0 %v510
        %610 = vmatmul.mubr.f32.gmra.mrb[0].mxu0 %v509
        %v611 = vpop.f32.mrb[0].mxu0
        %v612 = vadd.f32 0.0, %v611
        %v613 = vpop.f32.mrb[0].mxu0
        %614 = vmatprep.mubr.f32.mxu0 %v512
        %615 = vmatmul.mubr.f32.gmra.mrb[0].mxu0 %v511
        %v616 = vpop.f32.mrb[0].mxu0
        %v617 = vadd.f32 0.0, %v616
        %v618 = vpop.f32.mrb[0].mxu0
        %619 = vdwg.mxu0
        %v620 = vadd.f32 %v508, %v612
        %v621 = vadd.f32 %v508, %v617
        %v622 = vld [vmem:[#allocation2] sm:$0xfe]
        %v623 = vld [vmem:[#allocation2 + $0x8] sm:$0xfe]
        %v624 = vld [vmem:[#allocation2 + $0x10] sm:$0xff]
        %v625 = vld [vmem:[#allocation2 + $0x18] sm:$0xff]
        %v626 = vld [vmem:[#allocation2 + $0x20] sm:$0x1]
        %v627 = vld [vmem:[#allocation2 + $0x28] sm:$0x1]
        %s628 = scalar_lea.vmem %s2, 256
        %v629 = vld [vmem:[%s628] sm:$0xff]
        %v630 = vld [vmem:[%s628 + $0x8] sm:$0xff]
        %v631 = vld [vmem:[%s628 + $0x10] sm:$0xff]
        %v632 = vld [vmem:[%s628 + $0x18] sm:$0xff]
        %v633 = vld [vmem:[%s628 + $0x20] sm:$0xff]
        %v634 = vld [vmem:[%s628 + $0x28] sm:$0xff]
        %v635 = vld [vmem:[%s628 + $0x30] sm:$0xff]
        %v636 = vld [vmem:[%s628 + $0x38] sm:$0xff]
        %v637 = vld [vmem:[%s628 + $0x40] sm:$0xff]
        %v638 = vld [vmem:[%s628 + $0x48] sm:$0xff]
        %v639 = vld [vmem:[%s628 + $0x50] sm:$0xff]
        %v640 = vld [vmem:[%s628 + $0x58] sm:$0xff]
        %v641 = vld [vmem:[%s628 + $0x60] sm:$0xff]
        %v642 = vld [vmem:[%s628 + $0x68] sm:$0xff]
        %v643 = vld [vmem:[%s628 + $0x70] sm:$0xff]
        %v644 = vld [vmem:[%s628 + $0x78] sm:$0xff]
        %v645 = vld [vmem:[%s628 + $0x80] sm:$0xff]
        %v646 = vld [vmem:[%s628 + $0x88] sm:$0xff]
        %v647 = vld [vmem:[%s628 + $0x90] sm:$0xff]
        %v648 = vld [vmem:[%s628 + $0x98] sm:$0xff]
        %v649 = vld [vmem:[%s628 + $0xa0] sm:$0xff]
        %v650 = vld [vmem:[%s628 + $0xa8] sm:$0xff]
        %v651 = vld [vmem:[%s628 + $0xb0] sm:$0xff]
        %v652 = vld [vmem:[%s628 + $0xb8] sm:$0xff]
        %v653 = vld [vmem:[%s628 + $0xc0] sm:$0xff]
        %v654 = vld [vmem:[%s628 + $0xc8] sm:$0xff]
        %v655 = vld [vmem:[%s628 + $0xd0] sm:$0xff]
        %v656 = vld [vmem:[%s628 + $0xd8] sm:$0xff]
        %v657 = vld [vmem:[%s628 + $0xe0] sm:$0xff]
        %v658 = vld [vmem:[%s628 + $0xe8] sm:$0xff]
        %v659 = vld [vmem:[%s628 + $0xf0] sm:$0xff]
        %v660 = vld [vmem:[%s628 + $0xf8] sm:$0xff]
        %vm667 = vcmask 1046528
        %v668 = vrot.slane %v622, 1
        %v669 = vrot.slane %v624, 1
        %v670 = vsel %vm667, %v668, %v669
        %v671 = vrot.slane %v623, 1
        %v672 = vrot.slane %v625, 1
        %v673 = vsel %vm667, %v671, %v672
        %v674 = vrot.slane %v626, 1
        %v675 = vsel %vm667, %v669, %v674
        %v676 = vrot.slane %v627, 1
        %v677 = vsel %vm667, %v672, %v676
        %682 = vmatprep.subr.mxu0 0.0
        %683 = vmatpush1.msra.mxu0 %v629
        %684 = vmatprep.subr.mxu0 0.0
        %685 = vmatpush1.msra.mxu0 %v630
        %686 = vmatprep.subr.mxu0 0.0
        %687 = vmatpush1.msra.mxu0 %v631
        %688 = vmatprep.subr.mxu0 0.0
        %689 = vmatpush1.msra.mxu0 %v632
        %690 = vmatprep.subr.mxu0 0.0
        %691 = vmatpush1.msra.mxu0 %v633
        %692 = vmatprep.subr.mxu0 0.0
        %693 = vmatpush1.msra.mxu0 %v634
        %694 = vmatprep.subr.mxu0 0.0
        %695 = vmatpush1.msra.mxu0 %v635
        %696 = vmatprep.subr.mxu0 0.0
        %697 = vmatpush1.msra.mxu0 %v636
        %698 = vmatprep.subr.mxu0 0.0
        %699 = vmatpush1.msra.mxu0 %v637
        %700 = vmatprep.subr.mxu0 0.0
        %701 = vmatpush1.msra.mxu0 %v638
        %702 = vmatprep.subr.mxu0 0.0
        %703 = vmatpush1.msra.mxu0 %v639
        %704 = vmatprep.subr.mxu0 0.0
        %705 = vmatpush1.msra.mxu0 %v640
        %706 = vmatprep.subr.mxu0 0.0
        %707 = vmatpush1.msra.mxu0 %v641
        %708 = vmatprep.subr.mxu0 0.0
        %709 = vmatpush1.msra.mxu0 %v642
        %710 = vmatprep.subr.mxu0 0.0
        %711 = vmatpush1.msra.mxu0 %v643
        %712 = vmatprep.subr.mxu0 0.0
        %713 = vmatpush1.msra.mxu0 %v644
        %714 = vmatprep.subr.mxu0 0.0
        %715 = vmatpush1.msra.mxu0 %v645
        %716 = vmatprep.subr.mxu0 0.0
        %717 = vmatpush1.msra.mxu0 %v646
        %718 = vmatprep.subr.mxu0 0.0
        %719 = vmatpush1.msra.mxu0 %v647
        %720 = vmatprep.subr.mxu0 0.0
        %721 = vmatpush1.msra.mxu0 %v648
        %722 = vmatprep.subr.mxu0 0.0
        %723 = vmatpush1.msra.mxu0 %v649
        %724 = vmatprep.subr.mxu0 0.0
        %725 = vmatpush1.msra.mxu0 %v650
        %726 = vmatprep.subr.mxu0 0.0
        %727 = vmatpush1.msra.mxu0 %v651
        %728 = vmatprep.subr.mxu0 0.0
        %729 = vmatpush1.msra.mxu0 %v652
        %730 = vmatprep.subr.mxu0 0.0
        %731 = vmatpush1.msra.mxu0 %v653
        %732 = vmatprep.subr.mxu0 0.0
        %733 = vmatpush1.msra.mxu0 %v654
        %734 = vmatprep.subr.mxu0 0.0
        %735 = vmatpush1.msra.mxu0 %v655
        %736 = vmatprep.subr.mxu0 0.0
        %737 = vmatpush1.msra.mxu0 %v656
        %738 = vmatprep.subr.mxu0 0.0
        %739 = vmatpush1.msra.mxu0 %v657
        %740 = vmatprep.subr.mxu0 0.0
        %741 = vmatpush1.msra.mxu0 %v658
        %742 = vmatprep.subr.mxu0 0.0
        %743 = vmatpush1.msra.mxu0 %v659
        %744 = vmatprep.subr.mxu0 0.0
        %745 = vmatpush1.msra.mxu0 %v660
        %746 = vmatprep.mubr.f32.mxu0 %v673
        %747 = vmatmul.mubr.f32.gmra.mrb[0].mxu0 %v670
        %v748 = vpop.f32.mrb[0].mxu0
        %v749 = vadd.f32 0.0, %v748
        %v750 = vpop.f32.mrb[0].mxu0
        %751 = vmatprep.mubr.f32.mxu0 %v677
        %752 = vmatmul.mubr.f32.gmra.mrb[0].mxu0 %v675
        %v753 = vpop.f32.mrb[0].mxu0
        %v754 = vadd.f32 0.0, %v753
        %v755 = vpop.f32.mrb[0].mxu0
        %756 = vdwg.mxu0
        %v757 = vadd.f32 %v620, %v749
        %v758 = vadd.f32 %v621, %v754
        %v759 = vld [vmem:[#allocation2] sm:$0xfc]
        %v760 = vld [vmem:[#allocation2 + $0x8] sm:$0xfc]
        %v761 = vld [vmem:[#allocation2 + $0x20] sm:$0x3]
        %v762 = vld [vmem:[#allocation2 + $0x28] sm:$0x3]
        %s763 = scalar_lea.vmem %s2, 512
        %v764 = vld [vmem:[%s763] sm:$0xff]
        %v765 = vld [vmem:[%s763 + $0x8] sm:$0xff]
        %v766 = vld [vmem:[%s763 + $0x10] sm:$0xff]
        %v767 = vld [vmem:[%s763 + $0x18] sm:$0xff]
        %v768 = vld [vmem:[%s763 + $0x20] sm:$0xff]
        %v769 = vld [vmem:[%s763 + $0x28] sm:$0xff]
        %v770 = vld [vmem:[%s763 + $0x30] sm:$0xff]
        %v771 = vld [vmem:[%s763 + $0x38] sm:$0xff]
        %v772 = vld [vmem:[%s763 + $0x40] sm:$0xff]
        %v773 = vld [vmem:[%s763 + $0x48] sm:$0xff]
        %v774 = vld [vmem:[%s763 + $0x50] sm:$0xff]
        %v775 = vld [vmem:[%s763 + $0x58] sm:$0xff]
        %v776 = vld [vmem:[%s763 + $0x60] sm:$0xff]
        %v777 = vld [vmem:[%s763 + $0x68] sm:$0xff]
        %v778 = vld [vmem:[%s763 + $0x70] sm:$0xff]
        %v779 = vld [vmem:[%s763 + $0x78] sm:$0xff]
        %v780 = vld [vmem:[%s763 + $0x80] sm:$0xff]
        %v781 = vld [vmem:[%s763 + $0x88] sm:$0xff]
        %v782 = vld [vmem:[%s763 + $0x90] sm:$0xff]
        %v783 = vld [vmem:[%s763 + $0x98] sm:$0xff]
        %v784 = vld [vmem:[%s763 + $0xa0] sm:$0xff]
        %v785 = vld [vmem:[%s763 + $0xa8] sm:$0xff]
        %v786 = vld [vmem:[%s763 + $0xb0] sm:$0xff]
        %v787 = vld [vmem:[%s763 + $0xb8] sm:$0xff]
        %v788 = vld [vmem:[%s763 + $0xc0] sm:$0xff]
        %v789 = vld [vmem:[%s763 + $0xc8] sm:$0xff]
        %v790 = vld [vmem:[%s763 + $0xd0] sm:$0xff]
        %v791 = vld [vmem:[%s763 + $0xd8] sm:$0xff]
        %v792 = vld [vmem:[%s763 + $0xe0] sm:$0xff]
        %v793 = vld [vmem:[%s763 + $0xe8] sm:$0xff]
        %v794 = vld [vmem:[%s763 + $0xf0] sm:$0xff]
        %v795 = vld [vmem:[%s763 + $0xf8] sm:$0xff]
        %vm800 = vcmask 1045504
        %v801 = vrot.slane %v759, 2
        %v802 = vrot.slane %v624, 2
        %v803 = vsel %vm800, %v801, %v802
        %v804 = vrot.slane %v760, 2
        %v805 = vrot.slane %v625, 2
        %v806 = vsel %vm800, %v804, %v805
        %v807 = vrot.slane %v761, 2
        %v808 = vsel %vm800, %v802, %v807
        %v809 = vrot.slane %v762, 2
        %v810 = vsel %vm800, %v805, %v809
        %815 = vmatprep.subr.mxu0 0.0
        %816 = vmatpush1.msra.mxu0 %v764
        %817 = vmatprep.subr.mxu0 0.0
        %818 = vmatpush1.msra.mxu0 %v765
        %819 = vmatprep.subr.mxu0 0.0
        %820 = vmatpush1.msra.mxu0 %v766
        %821 = vmatprep.subr.mxu0 0.0
        %822 = vmatpush1.msra.mxu0 %v767
        %823 = vmatprep.subr.mxu0 0.0
        %824 = vmatpush1.msra.mxu0 %v768
        %825 = vmatprep.subr.mxu0 0.0
        %826 = vmatpush1.msra.mxu0 %v769
        %827 = vmatprep.subr.mxu0 0.0
        %828 = vmatpush1.msra.mxu0 %v770
        %829 = vmatprep.subr.mxu0 0.0
        %830 = vmatpush1.msra.mxu0 %v771
        %831 = vmatprep.subr.mxu0 0.0
        %832 = vmatpush1.msra.mxu0 %v772
        %833 = vmatprep.subr.mxu0 0.0
        %834 = vmatpush1.msra.mxu0 %v773
        %835 = vmatprep.subr.mxu0 0.0
        %836 = vmatpush1.msra.mxu0 %v774
        %837 = vmatprep.subr.mxu0 0.0
        %838 = vmatpush1.msra.mxu0 %v775
        %839 = vmatprep.subr.mxu0 0.0
        %840 = vmatpush1.msra.mxu0 %v776
        %841 = vmatprep.subr.mxu0 0.0
        %842 = vmatpush1.msra.mxu0 %v777
        %843 = vmatprep.subr.mxu0 0.0
        %844 = vmatpush1.msra.mxu0 %v778
        %845 = vmatprep.subr.mxu0 0.0
        %846 = vmatpush1.msra.mxu0 %v779
        %847 = vmatprep.subr.mxu0 0.0
        %848 = vmatpush1.msra.mxu0 %v780
        %849 = vmatprep.subr.mxu0 0.0
        %850 = vmatpush1.msra.mxu0 %v781
        %851 = vmatprep.subr.mxu0 0.0
        %852 = vmatpush1.msra.mxu0 %v782
        %853 = vmatprep.subr.mxu0 0.0
        %854 = vmatpush1.msra.mxu0 %v783
        %855 = vmatprep.subr.mxu0 0.0
        %856 = vmatpush1.msra.mxu0 %v784
        %857 = vmatprep.subr.mxu0 0.0
        %858 = vmatpush1.msra.mxu0 %v785
        %859 = vmatprep.subr.mxu0 0.0
        %860 = vmatpush1.msra.mxu0 %v786
        %861 = vmatprep.subr.mxu0 0.0
        %862 = vmatpush1.msra.mxu0 %v787
        %863 = vmatprep.subr.mxu0 0.0
        %864 = vmatpush1.msra.mxu0 %v788
        %865 = vmatprep.subr.mxu0 0.0
        %866 = vmatpush1.msra.mxu0 %v789
        %867 = vmatprep.subr.mxu0 0.0
        %868 = vmatpush1.msra.mxu0 %v790
        %869 = vmatprep.subr.mxu0 0.0
        %870 = vmatpush1.msra.mxu0 %v791
        %871 = vmatprep.subr.mxu0 0.0
        %872 = vmatpush1.msra.mxu0 %v792
        %873 = vmatprep.subr.mxu0 0.0
        %874 = vmatpush1.msra.mxu0 %v793
        %875 = vmatprep.subr.mxu0 0.0
        %876 = vmatpush1.msra.mxu0 %v794
        %877 = vmatprep.subr.mxu0 0.0
        %878 = vmatpush1.msra.mxu0 %v795
        %879 = vmatprep.mubr.f32.mxu0 %v806
        %880 = vmatmul.mubr.f32.gmra.mrb[0].mxu0 %v803
        %v881 = vpop.f32.mrb[0].mxu0
        %v882 = vadd.f32 0.0, %v881
        %v883 = vpop.f32.mrb[0].mxu0
        %884 = vmatprep.mubr.f32.mxu0 %v810
        %885 = vmatmul.mubr.f32.gmra.mrb[0].mxu0 %v808
        %v886 = vpop.f32.mrb[0].mxu0
        %v887 = vadd.f32 0.0, %v886
        %v888 = vpop.f32.mrb[0].mxu0
        %889 = vdwg.mxu0
        %v890 = vadd.f32 %v757, %v882
        %v891 = vadd.f32 %v758, %v887
        %v892 = vadd.f32 %v890, %v891
        %v893 = vrot.slane %v892, 4
        %v894 = vadd.f32 %v892, %v893
        %v895 = vrot.slane %v894, 2
        %v896 = vadd.f32 %v894, %v895
        %v897 = vrot.slane %v896, 1
        %v898 = vadd.f32 %v896, %v897
        %v899 = vld [vmem:[%s7] sm:$0x1]
        %v900 = vld [vmem:[%s4] sm:$0x1]
        %v901 = vmul.f32 %v898, %v900
        %v902 = vsel %vm480, %v901, 0.0
        %903 = vadd.xlane.f32.xlu0 %v902
        %v904 = vpop.xlane.xlu0 %903
        %v905 = vld [vmem:[%s5] sm:$0x1]
        %v906 = vadd.f32 %v904, %v905
        %v907 = vmax.f32 %v906, 0.0
        %v908 = vld [vmem:[%s6] sm:$0x1]
        %910 = vset.pattern.permute.xlu0 0
        %911 = vperm.xlu0 %910, %v907
        %v912 = vpop.permute.xlu0 %911
        %v914 = vmul.f32 %v912, %v908
        %v915 = vadd.f32 %v899, %v914
        %v916 = vld [vmem:[%s4 + $0x1] sm:$0x1]
        %v917 = vmul.f32 %v898, %v916
        %v918 = vsel %vm480, %v917, 0.0
        %919 = vadd.xlane.f32.xlu0 %v918
        %v920 = vpop.xlane.xlu0 %919
        %v922 = vlaneseq
        %v923 = vshrl.u32 %v922, 7
        %v924 = vsub.s32 0, %v923
        %v925 = vrot.slane %v905, %v924
        %926 = vrot.lane.b32.xlu0 %v925, 127
        %v927 = vpop.permute.xlu0 %926
        %v929 = vadd.f32 %v920, %v927
        %v930 = vmax.f32 %v929, 0.0
        %v931 = vld [vmem:[%s6 + $0x1] sm:$0x1]
        %933 = vset.pattern.permute.xlu0 0
        %934 = vperm.xlu0 %933, %v930
        %v935 = vpop.permute.xlu0 %934
        %v937 = vmul.f32 %v935, %v931
        %v938 = vadd.f32 %v915, %v937
        %v939 = vxor.u32 %v938, 2147483648
        %v940 = vmul.f32 %v939, 1.442695
        %v941 = vpow.pop %v940
        %v942 = vadd.f32 %v941, 1.0
        %v943 = vrcp.pop %v942
        %v944 = vmul.f32 1.0, %v943
        %vm947 = vcmask 1042432
        %v948 = vrot.slane %v890, 5
        %v949 = vrot.slane %v891, 5
        %v950 = vsel %vm947, %v948, %v949
        %954 = vst [vmem:[#allocation3] sm:$0xf8] %v948
        %955 = vst [vmem:[#allocation3 + $0x10] sm:$0xff] %v950
        %956 = vst [vmem:[#allocation3 + $0x20] sm:$0x7] %v949
        %vm957 = vcmask 64515
        %958 = vst.msk [vmem:[#allocation3 + $0x8] sm:$0xf8] %vm957, 0.0
        %vm959 = vcmask 64512
        %960 = vst.msk [vmem:[#allocation3 + $0x18] sm:$0xff] %vm959, 0.0
        %vm961 = vcmask 59392
        %962 = vst.msk [vmem:[#allocation3 + $0x28] sm:$0x7] %vm961, 0.0
        %v963 = vld [vmem:[#allocation3] sm:$0xf8]
        %v964 = vld [vmem:[#allocation3 + $0x8] sm:$0xf8]
        %v965 = vld [vmem:[#allocation3 + $0x10] sm:$0xff]
        %v966 = vld [vmem:[#allocation3 + $0x18] sm:$0xff]
        %v967 = vld [vmem:[#allocation3 + $0x20] sm:$0x7]
        %v968 = vld [vmem:[#allocation3 + $0x28] sm:$0x7]
        %vm975 = vcmask 1044480
        %v976 = vrot.slane %v963, 3
        %v977 = vrot.slane %v965, 3
        %v978 = vsel %vm975, %v976, %v977
        %v979 = vrot.slane %v964, 3
        %v980 = vrot.slane %v966, 3
        %v981 = vsel %vm975, %v979, %v980
        %v982 = vrot.slane %v967, 3
        %v983 = vsel %vm975, %v977, %v982
        %v984 = vrot.slane %v968, 3
        %v985 = vsel %vm975, %v980, %v984
        %986 = vrot.lane.b32.xlu0 %v978, 127
        %v987 = vpop.permute.xlu0 %986
        %988 = vrot.lane.b32.xlu0 %v981, 127
        %v989 = vpop.permute.xlu0 %988
        %990 = vrot.lane.b32.xlu0 %v983, 127
        %v991 = vpop.permute.xlu0 %990
        %992 = vrot.lane.b32.xlu0 %v985, 127
        %v993 = vpop.permute.xlu0 %992
        %vm994 = vcmask 1039360
        %v995 = vsel %vm994, %v987, %v989
        %v996 = vsel %vm994, %v991, %v993
        %v999 = vmax.f32 %v890, %v995
        %v1000 = vmax.f32 %v891, %v996
        %1001 = vrot.lane.b32.xlu0 %v978, 126
        %v1002 = vpop.permute.xlu0 %1001
        %1003 = vrot.lane.b32.xlu0 %v981, 126
        %v1004 = vpop.permute.xlu0 %1003
        %1005 = vrot.lane.b32.xlu0 %v983, 126
        %v1006 = vpop.permute.xlu0 %1005
        %1007 = vrot.lane.b32.xlu0 %v985, 126
        %v1008 = vpop.permute.xlu0 %1007
        %vm1009 = vcmask 1031168
        %v1010 = vsel %vm1009, %v1002, %v1004
        %v1011 = vsel %vm1009, %v1006, %v1008
        %v1014 = vmax.f32 %v999, %v1010
        %v1015 = vmax.f32 %v1000, %v1011
        %1016 = vrot.lane.b32.xlu0 %v978, 125
        %v1017 = vpop.permute.xlu0 %1016
        %1018 = vrot.lane.b32.xlu0 %v981, 125
        %v1019 = vpop.permute.xlu0 %1018
        %1020 = vrot.lane.b32.xlu0 %v983, 125
        %v1021 = vpop.permute.xlu0 %1020
        %1022 = vrot.lane.b32.xlu0 %v985, 125
        %v1023 = vpop.permute.xlu0 %1022
        %vm1024 = vcmask 1022976
        %v1025 = vsel %vm1024, %v1017, %v1019
        %v1026 = vsel %vm1024, %v1021, %v1023
        %v1029 = vmax.f32 %v1014, %v1025
        %v1030 = vmax.f32 %v1015, %v1026
        %1031 = vrot.lane.b32.xlu0 %v978, 124
        %v1032 = vpop.permute.xlu0 %1031
        %1033 = vrot.lane.b32.xlu0 %v981, 124
        %v1034 = vpop.permute.xlu0 %1033
        %1035 = vrot.lane.b32.xlu0 %v983, 124
        %v1036 = vpop.permute.xlu0 %1035
        %1037 = vrot.lane.b32.xlu0 %v985, 124
        %v1038 = vpop.permute.xlu0 %1037
        %vm1039 = vcmask 1014784
        %v1040 = vsel %vm1039, %v1032, %v1034
        %v1041 = vsel %vm1039, %v1036, %v1038
        %v1044 = vmax.f32 %v1029, %v1040
        %v1045 = vmax.f32 %v1030, %v1041
        %1046 = vrot.lane.b32.xlu0 %v978, 123
        %v1047 = vpop.permute.xlu0 %1046
        %1048 = vrot.lane.b32.xlu0 %v981, 123
        %v1049 = vpop.permute.xlu0 %1048
        %1050 = vrot.lane.b32.xlu0 %v983, 123
        %v1051 = vpop.permute.xlu0 %1050
        %1052 = vrot.lane.b32.xlu0 %v985, 123
        %v1053 = vpop.permute.xlu0 %1052
        %vm1054 = vcmask 1006592
        %v1055 = vsel %vm1054, %v1047, %v1049
        %v1056 = vsel %vm1054, %v1051, %v1053
        %v1059 = vmax.f32 %v1044, %v1055
        %v1060 = vmax.f32 %v1045, %v1056
        %1061 = vrot.lane.b32.xlu0 %v978, 122
        %v1062 = vpop.permute.xlu0 %1061
        %1063 = vrot.lane.b32.xlu0 %v981, 122
        %v1064 = vpop.permute.xlu0 %1063
        %1065 = vrot.lane.b32.xlu0 %v983, 122
        %v1066 = vpop.permute.xlu0 %1065
        %1067 = vrot.lane.b32.xlu0 %v985, 122
        %v1068 = vpop.permute.xlu0 %1067
        %vm1069 = vcmask 998400
        %v1070 = vsel %vm1069, %v1062, %v1064
        %v1071 = vsel %vm1069, %v1066, %v1068
        %v1074 = vmax.f32 %v1059, %v1070
        %v1075 = vmax.f32 %v1060, %v1071
        %1076 = vrot.lane.b32.xlu0 %v978, 121
        %v1077 = vpop.permute.xlu0 %1076
        %1078 = vrot.lane.b32.xlu0 %v981, 121
        %v1079 = vpop.permute.xlu0 %1078
        %1080 = vrot.lane.b32.xlu0 %v983, 121
        %v1081 = vpop.permute.xlu0 %1080
        %1082 = vrot.lane.b32.xlu0 %v985, 121
        %v1083 = vpop.permute.xlu0 %1082
        %vm1084 = vcmask 990208
        %v1085 = vsel %vm1084, %v1077, %v1079
        %v1086 = vsel %vm1084, %v1081, %v1083
        %v1089 = vmax.f32 %v1074, %v1085
        %v1090 = vmax.f32 %v1075, %v1086
        %v1093 = vrot.slane %v1089, 5
        %v1094 = vrot.slane %v1090, 5
        %v1095 = vsel %vm947, %v1093, %v1094
        %1099 = vst [vmem:[#allocation3 + $0x8] sm:$0xf8] %v1093
        %1100 = vst [vmem:[#allocation3 + $0x18] sm:$0xff] %v1095
        %1101 = vst [vmem:[#allocation3 + $0x28] sm:$0x7] %v1094
        %v1102 = vld [vmem:[#allocation4] sm:$0x1]
        %v1104 = vlaneseq
        %v1105 = vshrl.u32 %v1104, 7
        %v1106 = vsub.s32 0, %v1105
        %v1107 = vrot.slane %v1102, %v1106
        %1108 = vset.pattern.permute.xlu0 0
        %1109 = vperm.xlu0 %1108, %v1107
        %v1110 = vpop.permute.xlu0 %1109
        %v1112 = vadd.f32 %v1110, 0.0
        %v1113 = vld [vmem:[#allocation3] sm:$0xff]
        %v1114 = vld [vmem:[#allocation3 + $0x8] sm:$0xff]
        %v1115 = vld [vmem:[#allocation3 + $0x10] sm:$0xff]
        %v1116 = vld [vmem:[#allocation3 + $0x18] sm:$0xff]
        %v1117 = vld [vmem:[%s8] sm:$0xff]
        %v1118 = vld [vmem:[%s8 + $0x8] sm:$0xff]
        %v1119 = vld [vmem:[%s8 + $0x10] sm:$0xff]
        %v1120 = vld [vmem:[%s8 + $0x18] sm:$0xff]
        %v1121 = vld [vmem:[%s8 + $0x20] sm:$0xff]
        %v1122 = vld [vmem:[%s8 + $0x28] sm:$0xff]
        %v1123 = vld [vmem:[%s8 + $0x30] sm:$0xff]
        %v1124 = vld [vmem:[%s8 + $0x38] sm:$0xff]
        %v1125 = vld [vmem:[%s8 + $0x40] sm:$0xff]
        %v1126 = vld [vmem:[%s8 + $0x48] sm:$0xff]
        %v1127 = vld [vmem:[%s8 + $0x50] sm:$0xff]
        %v1128 = vld [vmem:[%s8 + $0x58] sm:$0xff]
        %v1129 = vld [vmem:[%s8 + $0x60] sm:$0xff]
        %v1130 = vld [vmem:[%s8 + $0x68] sm:$0xff]
        %v1131 = vld [vmem:[%s8 + $0x70] sm:$0xff]
        %v1132 = vld [vmem:[%s8 + $0x78] sm:$0xff]
        %v1133 = vld [vmem:[%s8 + $0x80] sm:$0xff]
        %v1134 = vld [vmem:[%s8 + $0x88] sm:$0xff]
        %v1135 = vld [vmem:[%s8 + $0x90] sm:$0xff]
        %v1136 = vld [vmem:[%s8 + $0x98] sm:$0xff]
        %v1137 = vld [vmem:[%s8 + $0xa0] sm:$0xff]
        %v1138 = vld [vmem:[%s8 + $0xa8] sm:$0xff]
        %v1139 = vld [vmem:[%s8 + $0xb0] sm:$0xff]
        %v1140 = vld [vmem:[%s8 + $0xb8] sm:$0xff]
        %v1141 = vld [vmem:[%s8 + $0xc0] sm:$0xff]
        %v1142 = vld [vmem:[%s8 + $0xc8] sm:$0xff]
        %v1143 = vld [vmem:[%s8 + $0xd0] sm:$0xff]
        %v1144 = vld [vmem:[%s8 + $0xd8] sm:$0xff]
        %v1145 = vld [vmem:[%s8 + $0xe0] sm:$0xff]
        %v1146 = vld [vmem:[%s8 + $0xe8] sm:$0xff]
        %v1147 = vld [vmem:[%s8 + $0xf0] sm:$0xff]
        %v1148 = vld [vmem:[%s8 + $0xf8] sm:$0xff]
        %1149 = vmatprep.subr.mxu0 0.0
        %1150 = vmatpush1.msra.mxu0 %v1117
        %1151 = vmatprep.subr.mxu0 0.0
        %1152 = vmatpush1.msra.mxu0 %v1118
        %1153 = vmatprep.subr.mxu0 0.0
        %1154 = vmatpush1.msra.mxu0 %v1119
        %1155 = vmatprep.subr.mxu0 0.0
        %1156 = vmatpush1.msra.mxu0 %v1120
        %1157 = vmatprep.subr.mxu0 0.0
        %1158 = vmatpush1.msra.mxu0 %v1121
        %1159 = vmatprep.subr.mxu0 0.0
        %1160 = vmatpush1.msra.mxu0 %v1122
        %1161 = vmatprep.subr.mxu0 0.0
        %1162 = vmatpush1.msra.mxu0 %v1123
        %1163 = vmatprep.subr.mxu0 0.0
        %1164 = vmatpush1.msra.mxu0 %v1124
        %1165 = vmatprep.subr.mxu0 0.0
        %1166 = vmatpush1.msra.mxu0 %v1125
        %1167 = vmatprep.subr.mxu0 0.0
        %1168 = vmatpush1.msra.mxu0 %v1126
        %1169 = vmatprep.subr.mxu0 0.0
        %1170 = vmatpush1.msra.mxu0 %v1127
        %1171 = vmatprep.subr.mxu0 0.0
        %1172 = vmatpush1.msra.mxu0 %v1128
        %1173 = vmatprep.subr.mxu0 0.0
        %1174 = vmatpush1.msra.mxu0 %v1129
        %1175 = vmatprep.subr.mxu0 0.0
        %1176 = vmatpush1.msra.mxu0 %v1130
        %1177 = vmatprep.subr.mxu0 0.0
        %1178 = vmatpush1.msra.mxu0 %v1131
        %1179 = vmatprep.subr.mxu0 0.0
        %1180 = vmatpush1.msra.mxu0 %v1132
        %1181 = vmatprep.subr.mxu0 0.0
        %1182 = vmatpush1.msra.mxu0 %v1133
        %1183 = vmatprep.subr.mxu0 0.0
        %1184 = vmatpush1.msra.mxu0 %v1134
        %1185 = vmatprep.subr.mxu0 0.0
        %1186 = vmatpush1.msra.mxu0 %v1135
        %1187 = vmatprep.subr.mxu0 0.0
        %1188 = vmatpush1.msra.mxu0 %v1136
        %1189 = vmatprep.subr.mxu0 0.0
        %1190 = vmatpush1.msra.mxu0 %v1137
        %1191 = vmatprep.subr.mxu0 0.0
        %1192 = vmatpush1.msra.mxu0 %v1138
        %1193 = vmatprep.subr.mxu0 0.0
        %1194 = vmatpush1.msra.mxu0 %v1139
        %1195 = vmatprep.subr.mxu0 0.0
        %1196 = vmatpush1.msra.mxu0 %v1140
        %1197 = vmatprep.subr.mxu0 0.0
        %1198 = vmatpush1.msra.mxu0 %v1141
        %1199 = vmatprep.subr.mxu0 0.0
        %1200 = vmatpush1.msra.mxu0 %v1142
        %1201 = vmatprep.subr.mxu0 0.0
        %1202 = vmatpush1.msra.mxu0 %v1143
        %1203 = vmatprep.subr.mxu0 0.0
        %1204 = vmatpush1.msra.mxu0 %v1144
        %1205 = vmatprep.subr.mxu0 0.0
        %1206 = vmatpush1.msra.mxu0 %v1145
        %1207 = vmatprep.subr.mxu0 0.0
        %1208 = vmatpush1.msra.mxu0 %v1146
        %1209 = vmatprep.subr.mxu0 0.0
        %1210 = vmatpush1.msra.mxu0 %v1147
        %1211 = vmatprep.subr.mxu0 0.0
        %1212 = vmatpush1.msra.mxu0 %v1148
        %1213 = vmatprep.mubr.f32.mxu0 %v1114
        %1214 = vmatmul.mubr.f32.gmra.mrb[0].mxu0 %v1113
        %v1215 = vpop.f32.mrb[0].mxu0
        %v1216 = vadd.f32 0.0, %v1215
        %v1217 = vpop.f32.mrb[0].mxu0
        %1218 = vmatprep.mubr.f32.mxu0 %v1116
        %1219 = vmatmul.mubr.f32.gmra.mrb[0].mxu0 %v1115
        %v1220 = vpop.f32.mrb[0].mxu0
        %v1221 = vadd.f32 0.0, %v1220
        %v1222 = vpop.f32.mrb[0].mxu0
        %1223 = vdwg.mxu0
        %v1224 = vadd.f32 %v1112, %v1216
        %v1225 = vadd.f32 %v1112, %v1221
        %v1226 = vld [vmem:[#allocation3] sm:$0xfe]
        %v1227 = vld [vmem:[#allocation3 + $0x8] sm:$0xfe]
        %v1228 = vld [vmem:[#allocation3 + $0x10] sm:$0xff]
        %v1229 = vld [vmem:[#allocation3 + $0x18] sm:$0xff]
        %v1230 = vld [vmem:[#allocation3 + $0x20] sm:$0x1]
        %v1231 = vld [vmem:[#allocation3 + $0x28] sm:$0x1]
        %s1232 = scalar_lea.vmem %s8, 256
        %v1233 = vld [vmem:[%s1232] sm:$0xff]
        %v1234 = vld [vmem:[%s1232 + $0x8] sm:$0xff]
        %v1235 = vld [vmem:[%s1232 + $0x10] sm:$0xff]
        %v1236 = vld [vmem:[%s1232 + $0x18] sm:$0xff]
        %v1237 = vld [vmem:[%s1232 + $0x20] sm:$0xff]
        %v1238 = vld [vmem:[%s1232 + $0x28] sm:$0xff]
        %v1239 = vld [vmem:[%s1232 + $0x30] sm:$0xff]
        %v1240 = vld [vmem:[%s1232 + $0x38] sm:$0xff]
        %v1241 = vld [vmem:[%s1232 + $0x40] sm:$0xff]
        %v1242 = vld [vmem:[%s1232 + $0x48] sm:$0xff]
        %v1243 = vld [vmem:[%s1232 + $0x50] sm:$0xff]
        %v1244 = vld [vmem:[%s1232 + $0x58] sm:$0xff]
        %v1245 = vld [vmem:[%s1232 + $0x60] sm:$0xff]
        %v1246 = vld [vmem:[%s1232 + $0x68] sm:$0xff]
        %v1247 = vld [vmem:[%s1232 + $0x70] sm:$0xff]
        %v1248 = vld [vmem:[%s1232 + $0x78] sm:$0xff]
        %v1249 = vld [vmem:[%s1232 + $0x80] sm:$0xff]
        %v1250 = vld [vmem:[%s1232 + $0x88] sm:$0xff]
        %v1251 = vld [vmem:[%s1232 + $0x90] sm:$0xff]
        %v1252 = vld [vmem:[%s1232 + $0x98] sm:$0xff]
        %v1253 = vld [vmem:[%s1232 + $0xa0] sm:$0xff]
        %v1254 = vld [vmem:[%s1232 + $0xa8] sm:$0xff]
        %v1255 = vld [vmem:[%s1232 + $0xb0] sm:$0xff]
        %v1256 = vld [vmem:[%s1232 + $0xb8] sm:$0xff]
        %v1257 = vld [vmem:[%s1232 + $0xc0] sm:$0xff]
        %v1258 = vld [vmem:[%s1232 + $0xc8] sm:$0xff]
        %v1259 = vld [vmem:[%s1232 + $0xd0] sm:$0xff]
        %v1260 = vld [vmem:[%s1232 + $0xd8] sm:$0xff]
        %v1261 = vld [vmem:[%s1232 + $0xe0] sm:$0xff]
        %v1262 = vld [vmem:[%s1232 + $0xe8] sm:$0xff]
        %v1263 = vld [vmem:[%s1232 + $0xf0] sm:$0xff]
        %v1264 = vld [vmem:[%s1232 + $0xf8] sm:$0xff]
        %v1271 = vrot.slane %v1226, 1
        %v1272 = vrot.slane %v1228, 1
        %v1273 = vsel %vm667, %v1271, %v1272
        %v1274 = vrot.slane %v1227, 1
        %v1275 = vrot.slane %v1229, 1
        %v1276 = vsel %vm667, %v1274, %v1275
        %v1277 = vrot.slane %v1230, 1
        %v1278 = vsel %vm667, %v1272, %v1277
        %v1279 = vrot.slane %v1231, 1
        %v1280 = vsel %vm667, %v1275, %v1279
        %1285 = vmatprep.subr.mxu0 0.0
        %1286 = vmatpush1.msra.mxu0 %v1233
        %1287 = vmatprep.subr.mxu0 0.0
        %1288 = vmatpush1.msra.mxu0 %v1234
        %1289 = vmatprep.subr.mxu0 0.0
        %1290 = vmatpush1.msra.mxu0 %v1235
        %1291 = vmatprep.subr.mxu0 0.0
        %1292 = vmatpush1.msra.mxu0 %v1236
        %1293 = vmatprep.subr.mxu0 0.0
        %1294 = vmatpush1.msra.mxu0 %v1237
        %1295 = vmatprep.subr.mxu0 0.0
        %1296 = vmatpush1.msra.mxu0 %v1238
        %1297 = vmatprep.subr.mxu0 0.0
        %1298 = vmatpush1.msra.mxu0 %v1239
        %1299 = vmatprep.subr.mxu0 0.0
        %1300 = vmatpush1.msra.mxu0 %v1240
        %1301 = vmatprep.subr.mxu0 0.0
        %1302 = vmatpush1.msra.mxu0 %v1241
        %1303 = vmatprep.subr.mxu0 0.0
        %1304 = vmatpush1.msra.mxu0 %v1242
        %1305 = vmatprep.subr.mxu0 0.0
        %1306 = vmatpush1.msra.mxu0 %v1243
        %1307 = vmatprep.subr.mxu0 0.0
        %1308 = vmatpush1.msra.mxu0 %v1244
        %1309 = vmatprep.subr.mxu0 0.0
        %1310 = vmatpush1.msra.mxu0 %v1245
        %1311 = vmatprep.subr.mxu0 0.0
        %1312 = vmatpush1.msra.mxu0 %v1246
        %1313 = vmatprep.subr.mxu0 0.0
        %1314 = vmatpush1.msra.mxu0 %v1247
        %1315 = vmatprep.subr.mxu0 0.0
        %1316 = vmatpush1.msra.mxu0 %v1248
        %1317 = vmatprep.subr.mxu0 0.0
        %1318 = vmatpush1.msra.mxu0 %v1249
        %1319 = vmatprep.subr.mxu0 0.0
        %1320 = vmatpush1.msra.mxu0 %v1250
        %1321 = vmatprep.subr.mxu0 0.0
        %1322 = vmatpush1.msra.mxu0 %v1251
        %1323 = vmatprep.subr.mxu0 0.0
        %1324 = vmatpush1.msra.mxu0 %v1252
        %1325 = vmatprep.subr.mxu0 0.0
        %1326 = vmatpush1.msra.mxu0 %v1253
        %1327 = vmatprep.subr.mxu0 0.0
        %1328 = vmatpush1.msra.mxu0 %v1254
        %1329 = vmatprep.subr.mxu0 0.0
        %1330 = vmatpush1.msra.mxu0 %v1255
        %1331 = vmatprep.subr.mxu0 0.0
        %1332 = vmatpush1.msra.mxu0 %v1256
        %1333 = vmatprep.subr.mxu0 0.0
        %1334 = vmatpush1.msra.mxu0 %v1257
        %1335 = vmatprep.subr.mxu0 0.0
        %1336 = vmatpush1.msra.mxu0 %v1258
        %1337 = vmatprep.subr.mxu0 0.0
        %1338 = vmatpush1.msra.mxu0 %v1259
        %1339 = vmatprep.subr.mxu0 0.0
        %1340 = vmatpush1.msra.mxu0 %v1260
        %1341 = vmatprep.subr.mxu0 0.0
        %1342 = vmatpush1.msra.mxu0 %v1261
        %1343 = vmatprep.subr.mxu0 0.0
        %1344 = vmatpush1.msra.mxu0 %v1262
        %1345 = vmatprep.subr.mxu0 0.0
        %1346 = vmatpush1.msra.mxu0 %v1263
        %1347 = vmatprep.subr.mxu0 0.0
        %1348 = vmatpush1.msra.mxu0 %v1264
        %1349 = vmatprep.mubr.f32.mxu0 %v1276
        %1350 = vmatmul.mubr.f32.gmra.mrb[0].mxu0 %v1273
        %v1351 = vpop.f32.mrb[0].mxu0
        %v1352 = vadd.f32 0.0, %v1351
        %v1353 = vpop.f32.mrb[0].mxu0
        %1354 = vmatprep.mubr.f32.mxu0 %v1280
        %1355 = vmatmul.mubr.f32.gmra.mrb[0].mxu0 %v1278
        %v1356 = vpop.f32.mrb[0].mxu0
        %v1357 = vadd.f32 0.0, %v1356
        %v1358 = vpop.f32.mrb[0].mxu0
        %1359 = vdwg.mxu0
        %v1360 = vadd.f32 %v1224, %v1352
        %v1361 = vadd.f32 %v1225, %v1357
        %v1362 = vld [vmem:[#allocation3] sm:$0xfc]
        %v1363 = vld [vmem:[#allocation3 + $0x8] sm:$0xfc]
        %v1364 = vld [vmem:[#allocation3 + $0x20] sm:$0x3]
        %v1365 = vld [vmem:[#allocation3 + $0x28] sm:$0x3]
        %s1366 = scalar_lea.vmem %s8, 512
        %v1367 = vld [vmem:[%s1366] sm:$0xff]
        %v1368 = vld [vmem:[%s1366 + $0x8] sm:$0xff]
        %v1369 = vld [vmem:[%s1366 + $0x10] sm:$0xff]
        %v1370 = vld [vmem:[%s1366 + $0x18] sm:$0xff]
        %v1371 = vld [vmem:[%s1366 + $0x20] sm:$0xff]
        %v1372 = vld [vmem:[%s1366 + $0x28] sm:$0xff]
        %v1373 = vld [vmem:[%s1366 + $0x30] sm:$0xff]
        %v1374 = vld [vmem:[%s1366 + $0x38] sm:$0xff]
        %v1375 = vld [vmem:[%s1366 + $0x40] sm:$0xff]
        %v1376 = vld [vmem:[%s1366 + $0x48] sm:$0xff]
        %v1377 = vld [vmem:[%s1366 + $0x50] sm:$0xff]
        %v1378 = vld [vmem:[%s1366 + $0x58] sm:$0xff]
        %v1379 = vld [vmem:[%s1366 + $0x60] sm:$0xff]
        %v1380 = vld [vmem:[%s1366 + $0x68] sm:$0xff]
        %v1381 = vld [vmem:[%s1366 + $0x70] sm:$0xff]
        %v1382 = vld [vmem:[%s1366 + $0x78] sm:$0xff]
        %v1383 = vld [vmem:[%s1366 + $0x80] sm:$0xff]
        %v1384 = vld [vmem:[%s1366 + $0x88] sm:$0xff]
        %v1385 = vld [vmem:[%s1366 + $0x90] sm:$0xff]
        %v1386 = vld [vmem:[%s1366 + $0x98] sm:$0xff]
        %v1387 = vld [vmem:[%s1366 + $0xa0] sm:$0xff]
        %v1388 = vld [vmem:[%s1366 + $0xa8] sm:$0xff]
        %v1389 = vld [vmem:[%s1366 + $0xb0] sm:$0xff]
        %v1390 = vld [vmem:[%s1366 + $0xb8] sm:$0xff]
        %v1391 = vld [vmem:[%s1366 + $0xc0] sm:$0xff]
        %v1392 = vld [vmem:[%s1366 + $0xc8] sm:$0xff]
        %v1393 = vld [vmem:[%s1366 + $0xd0] sm:$0xff]
        %v1394 = vld [vmem:[%s1366 + $0xd8] sm:$0xff]
        %v1395 = vld [vmem:[%s1366 + $0xe0] sm:$0xff]
        %v1396 = vld [vmem:[%s1366 + $0xe8] sm:$0xff]
        %v1397 = vld [vmem:[%s1366 + $0xf0] sm:$0xff]
        %v1398 = vld [vmem:[%s1366 + $0xf8] sm:$0xff]
        %v1403 = vrot.slane %v1362, 2
        %v1404 = vrot.slane %v1228, 2
        %v1405 = vsel %vm800, %v1403, %v1404
        %v1406 = vrot.slane %v1363, 2
        %v1407 = vrot.slane %v1229, 2
        %v1408 = vsel %vm800, %v1406, %v1407
        %v1409 = vrot.slane %v1364, 2
        %v1410 = vsel %vm800, %v1404, %v1409
        %v1411 = vrot.slane %v1365, 2
        %v1412 = vsel %vm800, %v1407, %v1411
        %1417 = vmatprep.subr.mxu0 0.0
        %1418 = vmatpush1.msra.mxu0 %v1367
        %1419 = vmatprep.subr.mxu0 0.0
        %1420 = vmatpush1.msra.mxu0 %v1368
        %1421 = vmatprep.subr.mxu0 0.0
        %1422 = vmatpush1.msra.mxu0 %v1369
        %1423 = vmatprep.subr.mxu0 0.0
        %1424 = vmatpush1.msra.mxu0 %v1370
        %1425 = vmatprep.subr.mxu0 0.0
        %1426 = vmatpush1.msra.mxu0 %v1371
        %1427 = vmatprep.subr.mxu0 0.0
        %1428 = vmatpush1.msra.mxu0 %v1372
        %1429 = vmatprep.subr.mxu0 0.0
        %1430 = vmatpush1.msra.mxu0 %v1373
        %1431 = vmatprep.subr.mxu0 0.0
        %1432 = vmatpush1.msra.mxu0 %v1374
        %1433 = vmatprep.subr.mxu0 0.0
        %1434 = vmatpush1.msra.mxu0 %v1375
        %1435 = vmatprep.subr.mxu0 0.0
        %1436 = vmatpush1.msra.mxu0 %v1376
        %1437 = vmatprep.subr.mxu0 0.0
        %1438 = vmatpush1.msra.mxu0 %v1377
        %1439 = vmatprep.subr.mxu0 0.0
        %1440 = vmatpush1.msra.mxu0 %v1378
        %1441 = vmatprep.subr.mxu0 0.0
        %1442 = vmatpush1.msra.mxu0 %v1379
        %1443 = vmatprep.subr.mxu0 0.0
        %1444 = vmatpush1.msra.mxu0 %v1380
        %1445 = vmatprep.subr.mxu0 0.0
        %1446 = vmatpush1.msra.mxu0 %v1381
        %1447 = vmatprep.subr.mxu0 0.0
        %1448 = vmatpush1.msra.mxu0 %v1382
        %1449 = vmatprep.subr.mxu0 0.0
        %1450 = vmatpush1.msra.mxu0 %v1383
        %1451 = vmatprep.subr.mxu0 0.0
        %1452 = vmatpush1.msra.mxu0 %v1384
        %1453 = vmatprep.subr.mxu0 0.0
        %1454 = vmatpush1.msra.mxu0 %v1385
        %1455 = vmatprep.subr.mxu0 0.0
        %1456 = vmatpush1.msra.mxu0 %v1386
        %1457 = vmatprep.subr.mxu0 0.0
        %1458 = vmatpush1.msra.mxu0 %v1387
        %1459 = vmatprep.subr.mxu0 0.0
        %1460 = vmatpush1.msra.mxu0 %v1388
        %1461 = vmatprep.subr.mxu0 0.0
        %1462 = vmatpush1.msra.mxu0 %v1389
        %1463 = vmatprep.subr.mxu0 0.0
        %1464 = vmatpush1.msra.mxu0 %v1390
        %1465 = vmatprep.subr.mxu0 0.0
        %1466 = vmatpush1.msra.mxu0 %v1391
        %1467 = vmatprep.subr.mxu0 0.0
        %1468 = vmatpush1.msra.mxu0 %v1392
        %1469 = vmatprep.subr.mxu0 0.0
        %1470 = vmatpush1.msra.mxu0 %v1393
        %1471 = vmatprep.subr.mxu0 0.0
        %1472 = vmatpush1.msra.mxu0 %v1394
        %1473 = vmatprep.subr.mxu0 0.0
        %1474 = vmatpush1.msra.mxu0 %v1395
        %1475 = vmatprep.subr.mxu0 0.0
        %1476 = vmatpush1.msra.mxu0 %v1396
        %1477 = vmatprep.subr.mxu0 0.0
        %1478 = vmatpush1.msra.mxu0 %v1397
        %1479 = vmatprep.subr.mxu0 0.0
        %1480 = vmatpush1.msra.mxu0 %v1398
        %1481 = vmatprep.mubr.f32.mxu0 %v1408
        %1482 = vmatmul.mubr.f32.gmra.mrb[0].mxu0 %v1405
        %v1483 = vpop.f32.mrb[0].mxu0
        %v1484 = vadd.f32 0.0, %v1483
        %v1485 = vpop.f32.mrb[0].mxu0
        %1486 = vmatprep.mubr.f32.mxu0 %v1412
        %1487 = vmatmul.mubr.f32.gmra.mrb[0].mxu0 %v1410
        %v1488 = vpop.f32.mrb[0].mxu0
        %v1489 = vadd.f32 0.0, %v1488
        %v1490 = vpop.f32.mrb[0].mxu0
        %1491 = vdwg.mxu0
        %v1492 = vadd.f32 %v1360, %v1484
        %v1493 = vadd.f32 %v1361, %v1489
        %v1494 = vld [vmem:[#allocation3] sm:$0xf8]
        %v1495 = vld [vmem:[#allocation3 + $0x8] sm:$0xf8]
        %v1496 = vld [vmem:[#allocation3 + $0x20] sm:$0x7]
        %v1497 = vld [vmem:[#allocation3 + $0x28] sm:$0x7]
        %s1498 = scalar_lea.vmem %s8, 768
        %v1499 = vld [vmem:[%s1498] sm:$0xff]
        %v1500 = vld [vmem:[%s1498 + $0x8] sm:$0xff]
        %v1501 = vld [vmem:[%s1498 + $0x10] sm:$0xff]
        %v1502 = vld [vmem:[%s1498 + $0x18] sm:$0xff]
        %v1503 = vld [vmem:[%s1498 + $0x20] sm:$0xff]
        %v1504 = vld [vmem:[%s1498 + $0x28] sm:$0xff]
        %v1505 = vld [vmem:[%s1498 + $0x30] sm:$0xff]
        %v1506 = vld [vmem:[%s1498 + $0x38] sm:$0xff]
        %v1507 = vld [vmem:[%s1498 + $0x40] sm:$0xff]
        %v1508 = vld [vmem:[%s1498 + $0x48] sm:$0xff]
        %v1509 = vld [vmem:[%s1498 + $0x50] sm:$0xff]
        %v1510 = vld [vmem:[%s1498 + $0x58] sm:$0xff]
        %v1511 = vld [vmem:[%s1498 + $0x60] sm:$0xff]
        %v1512 = vld [vmem:[%s1498 + $0x68] sm:$0xff]
        %v1513 = vld [vmem:[%s1498 + $0x70] sm:$0xff]
        %v1514 = vld [vmem:[%s1498 + $0x78] sm:$0xff]
        %v1515 = vld [vmem:[%s1498 + $0x80] sm:$0xff]
        %v1516 = vld [vmem:[%s1498 + $0x88] sm:$0xff]
        %v1517 = vld [vmem:[%s1498 + $0x90] sm:$0xff]
        %v1518 = vld [vmem:[%s1498 + $0x98] sm:$0xff]
        %v1519 = vld [vmem:[%s1498 + $0xa0] sm:$0xff]
        %v1520 = vld [vmem:[%s1498 + $0xa8] sm:$0xff]
        %v1521 = vld [vmem:[%s1498 + $0xb0] sm:$0xff]
        %v1522 = vld [vmem:[%s1498 + $0xb8] sm:$0xff]
        %v1523 = vld [vmem:[%s1498 + $0xc0] sm:$0xff]
        %v1524 = vld [vmem:[%s1498 + $0xc8] sm:$0xff]
        %v1525 = vld [vmem:[%s1498 + $0xd0] sm:$0xff]
        %v1526 = vld [vmem:[%s1498 + $0xd8] sm:$0xff]
        %v1527 = vld [vmem:[%s1498 + $0xe0] sm:$0xff]
        %v1528 = vld [vmem:[%s1498 + $0xe8] sm:$0xff]
        %v1529 = vld [vmem:[%s1498 + $0xf0] sm:$0xff]
        %v1530 = vld [vmem:[%s1498 + $0xf8] sm:$0xff]
        %v1535 = vrot.slane %v1494, 3
        %v1536 = vrot.slane %v1228, 3
        %v1537 = vsel %vm975, %v1535, %v1536
        %v1538 = vrot.slane %v1495, 3
        %v1539 = vrot.slane %v1229, 3
        %v1540 = vsel %vm975, %v1538, %v1539
        %v1541 = vrot.slane %v1496, 3
        %v1542 = vsel %vm975, %v1536, %v1541
        %v1543 = vrot.slane %v1497, 3
        %v1544 = vsel %vm975, %v1539, %v1543
        %1549 = vmatprep.subr.mxu0 0.0
        %1550 = vmatpush1.msra.mxu0 %v1499
        %1551 = vmatprep.subr.mxu0 0.0
        %1552 = vmatpush1.msra.mxu0 %v1500
        %1553 = vmatprep.subr.mxu0 0.0
        %1554 = vmatpush1.msra.mxu0 %v1501
        %1555 = vmatprep.subr.mxu0 0.0
        %1556 = vmatpush1.msra.mxu0 %v1502
        %1557 = vmatprep.subr.mxu0 0.0
        %1558 = vmatpush1.msra.mxu0 %v1503
        %1559 = vmatprep.subr.mxu0 0.0
        %1560 = vmatpush1.msra.mxu0 %v1504
        %1561 = vmatprep.subr.mxu0 0.0
        %1562 = vmatpush1.msra.mxu0 %v1505
        %1563 = vmatprep.subr.mxu0 0.0
        %1564 = vmatpush1.msra.mxu0 %v1506
        %1565 = vmatprep.subr.mxu0 0.0
        %1566 = vmatpush1.msra.mxu0 %v1507
        %1567 = vmatprep.subr.mxu0 0.0
        %1568 = vmatpush1.msra.mxu0 %v1508
        %1569 = vmatprep.subr.mxu0 0.0
        %1570 = vmatpush1.msra.mxu0 %v1509
        %1571 = vmatprep.subr.mxu0 0.0
        %1572 = vmatpush1.msra.mxu0 %v1510
        %1573 = vmatprep.subr.mxu0 0.0
        %1574 = vmatpush1.msra.mxu0 %v1511
        %1575 = vmatprep.subr.mxu0 0.0
        %1576 = vmatpush1.msra.mxu0 %v1512
        %1577 = vmatprep.subr.mxu0 0.0
        %1578 = vmatpush1.msra.mxu0 %v1513
        %1579 = vmatprep.subr.mxu0 0.0
        %1580 = vmatpush1.msra.mxu0 %v1514
        %1581 = vmatprep.subr.mxu0 0.0
        %1582 = vmatpush1.msra.mxu0 %v1515
        %1583 = vmatprep.subr.mxu0 0.0
        %1584 = vmatpush1.msra.mxu0 %v1516
        %1585 = vmatprep.subr.mxu0 0.0
        %1586 = vmatpush1.msra.mxu0 %v1517
        %1587 = vmatprep.subr.mxu0 0.0
        %1588 = vmatpush1.msra.mxu0 %v1518
        %1589 = vmatprep.subr.mxu0 0.0
        %1590 = vmatpush1.msra.mxu0 %v1519
        %1591 = vmatprep.subr.mxu0 0.0
        %1592 = vmatpush1.msra.mxu0 %v1520
        %1593 = vmatprep.subr.mxu0 0.0
        %1594 = vmatpush1.msra.mxu0 %v1521
        %1595 = vmatprep.subr.mxu0 0.0
        %1596 = vmatpush1.msra.mxu0 %v1522
        %1597 = vmatprep.subr.mxu0 0.0
        %1598 = vmatpush1.msra.mxu0 %v1523
        %1599 = vmatprep.subr.mxu0 0.0
        %1600 = vmatpush1.msra.mxu0 %v1524
        %1601 = vmatprep.subr.mxu0 0.0
        %1602 = vmatpush1.msra.mxu0 %v1525
        %1603 = vmatprep.subr.mxu0 0.0
        %1604 = vmatpush1.msra.mxu0 %v1526
        %1605 = vmatprep.subr.mxu0 0.0
        %1606 = vmatpush1.msra.mxu0 %v1527
        %1607 = vmatprep.subr.mxu0 0.0
        %1608 = vmatpush1.msra.mxu0 %v1528
        %1609 = vmatprep.subr.mxu0 0.0
        %1610 = vmatpush1.msra.mxu0 %v1529
        %1611 = vmatprep.subr.mxu0 0.0
        %1612 = vmatpush1.msra.mxu0 %v1530
        %1613 = vmatprep.mubr.f32.mxu0 %v1540
        %1614 = vmatmul.mubr.f32.gmra.mrb[0].mxu0 %v1537
        %v1615 = vpop.f32.mrb[0].mxu0
        %v1616 = vadd.f32 0.0, %v1615
        %v1617 = vpop.f32.mrb[0].mxu0
        %1618 = vmatprep.mubr.f32.mxu0 %v1544
        %1619 = vmatmul.mubr.f32.gmra.mrb[0].mxu0 %v1542
        %v1620 = vpop.f32.mrb[0].mxu0
        %v1621 = vadd.f32 0.0, %v1620
        %v1622 = vpop.f32.mrb[0].mxu0
        %1623 = vdwg.mxu0
        %v1624 = vadd.f32 %v1492, %v1616
        %v1625 = vadd.f32 %v1493, %v1621
        %v1626 = vld [vmem:[#allocation3] sm:$0xf0]
        %v1627 = vld [vmem:[#allocation3 + $0x8] sm:$0xf0]
        %v1628 = vld [vmem:[#allocation3 + $0x20] sm:$0xf]
        %v1629 = vld [vmem:[#allocation3 + $0x28] sm:$0xf]
        %s1630 = scalar_lea.vmem %s8, 1024
        %v1631 = vld [vmem:[%s1630] sm:$0xff]
        %v1632 = vld [vmem:[%s1630 + $0x8] sm:$0xff]
        %v1633 = vld [vmem:[%s1630 + $0x10] sm:$0xff]
        %v1634 = vld [vmem:[%s1630 + $0x18] sm:$0xff]
        %v1635 = vld [vmem:[%s1630 + $0x20] sm:$0xff]
        %v1636 = vld [vmem:[%s1630 + $0x28] sm:$0xff]
        %v1637 = vld [vmem:[%s1630 + $0x30] sm:$0xff]
        %v1638 = vld [vmem:[%s1630 + $0x38] sm:$0xff]
        %v1639 = vld [vmem:[%s1630 + $0x40] sm:$0xff]
        %v1640 = vld [vmem:[%s1630 + $0x48] sm:$0xff]
        %v1641 = vld [vmem:[%s1630 + $0x50] sm:$0xff]
        %v1642 = vld [vmem:[%s1630 + $0x58] sm:$0xff]
        %v1643 = vld [vmem:[%s1630 + $0x60] sm:$0xff]
        %v1644 = vld [vmem:[%s1630 + $0x68] sm:$0xff]
        %v1645 = vld [vmem:[%s1630 + $0x70] sm:$0xff]
        %v1646 = vld [vmem:[%s1630 + $0x78] sm:$0xff]
        %v1647 = vld [vmem:[%s1630 + $0x80] sm:$0xff]
        %v1648 = vld [vmem:[%s1630 + $0x88] sm:$0xff]
        %v1649 = vld [vmem:[%s1630 + $0x90] sm:$0xff]
        %v1650 = vld [vmem:[%s1630 + $0x98] sm:$0xff]
        %v1651 = vld [vmem:[%s1630 + $0xa0] sm:$0xff]
        %v1652 = vld [vmem:[%s1630 + $0xa8] sm:$0xff]
        %v1653 = vld [vmem:[%s1630 + $0xb0] sm:$0xff]
        %v1654 = vld [vmem:[%s1630 + $0xb8] sm:$0xff]
        %v1655 = vld [vmem:[%s1630 + $0xc0] sm:$0xff]
        %v1656 = vld [vmem:[%s1630 + $0xc8] sm:$0xff]
        %v1657 = vld [vmem:[%s1630 + $0xd0] sm:$0xff]
        %v1658 = vld [vmem:[%s1630 + $0xd8] sm:$0xff]
        %v1659 = vld [vmem:[%s1630 + $0xe0] sm:$0xff]
        %v1660 = vld [vmem:[%s1630 + $0xe8] sm:$0xff]
        %v1661 = vld [vmem:[%s1630 + $0xf0] sm:$0xff]
        %v1662 = vld [vmem:[%s1630 + $0xf8] sm:$0xff]
        %vm1667 = vcmask 1043456
        %v1668 = vrot.slane %v1626, 4
        %v1669 = vrot.slane %v1228, 4
        %v1670 = vsel %vm1667, %v1668, %v1669
        %v1671 = vrot.slane %v1627, 4
        %v1672 = vrot.slane %v1229, 4
        %v1673 = vsel %vm1667, %v1671, %v1672
        %v1674 = vrot.slane %v1628, 4
        %v1675 = vsel %vm1667, %v1669, %v1674
        %v1676 = vrot.slane %v1629, 4
        %v1677 = vsel %vm1667, %v1672, %v1676
        %1682 = vmatprep.subr.mxu0 0.0
        %1683 = vmatpush1.msra.mxu0 %v1631
        %1684 = vmatprep.subr.mxu0 0.0
        %1685 = vmatpush1.msra.mxu0 %v1632
        %1686 = vmatprep.subr.mxu0 0.0
        %1687 = vmatpush1.msra.mxu0 %v1633
        %1688 = vmatprep.subr.mxu0 0.0
        %1689 = vmatpush1.msra.mxu0 %v1634
        %1690 = vmatprep.subr.mxu0 0.0
        %1691 = vmatpush1.msra.mxu0 %v1635
        %1692 = vmatprep.subr.mxu0 0.0
        %1693 = vmatpush1.msra.mxu0 %v1636
        %1694 = vmatprep.subr.mxu0 0.0
        %1695 = vmatpush1.msra.mxu0 %v1637
        %1696 = vmatprep.subr.mxu0 0.0
        %1697 = vmatpush1.msra.mxu0 %v1638
        %1698 = vmatprep.subr.mxu0 0.0
        %1699 = vmatpush1.msra.mxu0 %v1639
        %1700 = vmatprep.subr.mxu0 0.0
        %1701 = vmatpush1.msra.mxu0 %v1640
        %1702 = vmatprep.subr.mxu0 0.0
        %1703 = vmatpush1.msra.mxu0 %v1641
        %1704 = vmatprep.subr.mxu0 0.0
        %1705 = vmatpush1.msra.mxu0 %v1642
        %1706 = vmatprep.subr.mxu0 0.0
        %1707 = vmatpush1.msra.mxu0 %v1643
        %1708 = vmatprep.subr.mxu0 0.0
        %1709 = vmatpush1.msra.mxu0 %v1644
        %1710 = vmatprep.subr.mxu0 0.0
        %1711 = vmatpush1.msra.mxu0 %v1645
        %1712 = vmatprep.subr.mxu0 0.0
        %1713 = vmatpush1.msra.mxu0 %v1646
        %1714 = vmatprep.subr.mxu0 0.0
        %1715 = vmatpush1.msra.mxu0 %v1647
        %1716 = vmatprep.subr.mxu0 0.0
        %1717 = vmatpush1.msra.mxu0 %v1648
        %1718 = vmatprep.subr.mxu0 0.0
        %1719 = vmatpush1.msra.mxu0 %v1649
        %1720 = vmatprep.subr.mxu0 0.0
        %1721 = vmatpush1.msra.mxu0 %v1650
        %1722 = vmatprep.subr.mxu0 0.0
        %1723 = vmatpush1.msra.mxu0 %v1651
        %1724 = vmatprep.subr.mxu0 0.0
        %1725 = vmatpush1.msra.mxu0 %v1652
        %1726 = vmatprep.subr.mxu0 0.0
        %1727 = vmatpush1.msra.mxu0 %v1653
        %1728 = vmatprep.subr.mxu0 0.0
        %1729 = vmatpush1.msra.mxu0 %v1654
        %1730 = vmatprep.subr.mxu0 0.0
        %1731 = vmatpush1.msra.mxu0 %v1655
        %1732 = vmatprep.subr.mxu0 0.0
        %1733 = vmatpush1.msra.mxu0 %v1656
        %1734 = vmatprep.subr.mxu0 0.0
        %1735 = vmatpush1.msra.mxu0 %v1657
        %1736 = vmatprep.subr.mxu0 0.0
        %1737 = vmatpush1.msra.mxu0 %v1658
        %1738 = vmatprep.subr.mxu0 0.0
        %1739 = vmatpush1.msra.mxu0 %v1659
        %1740 = vmatprep.subr.mxu0 0.0
        %1741 = vmatpush1.msra.mxu0 %v1660
        %1742 = vmatprep.subr.mxu0 0.0
        %1743 = vmatpush1.msra.mxu0 %v1661
        %1744 = vmatprep.subr.mxu0 0.0
        %1745 = vmatpush1.msra.mxu0 %v1662
        %1746 = vmatprep.mubr.f32.mxu0 %v1673
        %1747 = vmatmul.mubr.f32.gmra.mrb[0].mxu0 %v1670
        %v1748 = vpop.f32.mrb[0].mxu0
        %v1749 = vadd.f32 0.0, %v1748
        %v1750 = vpop.f32.mrb[0].mxu0
        %1751 = vmatprep.mubr.f32.mxu0 %v1677
        %1752 = vmatmul.mubr.f32.gmra.mrb[0].mxu0 %v1675
        %v1753 = vpop.f32.mrb[0].mxu0
        %v1754 = vadd.f32 0.0, %v1753
        %v1755 = vpop.f32.mrb[0].mxu0
        %1756 = vdwg.mxu0
        %v1757 = vadd.f32 %v1624, %v1749
        %v1758 = vadd.f32 %v1625, %v1754
        %v1759 = vld [vmem:[#allocation3] sm:$0xe0]
        %v1760 = vld [vmem:[#allocation3 + $0x8] sm:$0xe0]
        %v1761 = vld [vmem:[#allocation3 + $0x20] sm:$0x1f]
        %v1762 = vld [vmem:[#allocation3 + $0x28] sm:$0x1f]
        %s1763 = scalar_lea.vmem %s8, 1280
        %v1764 = vld [vmem:[%s1763] sm:$0xff]
        %v1765 = vld [vmem:[%s1763 + $0x8] sm:$0xff]
        %v1766 = vld [vmem:[%s1763 + $0x10] sm:$0xff]
        %v1767 = vld [vmem:[%s1763 + $0x18] sm:$0xff]
        %v1768 = vld [vmem:[%s1763 + $0x20] sm:$0xff]
        %v1769 = vld [vmem:[%s1763 + $0x28] sm:$0xff]
        %v1770 = vld [vmem:[%s1763 + $0x30] sm:$0xff]
        %v1771 = vld [vmem:[%s1763 + $0x38] sm:$0xff]
        %v1772 = vld [vmem:[%s1763 + $0x40] sm:$0xff]
        %v1773 = vld [vmem:[%s1763 + $0x48] sm:$0xff]
        %v1774 = vld [vmem:[%s1763 + $0x50] sm:$0xff]
        %v1775 = vld [vmem:[%s1763 + $0x58] sm:$0xff]
        %v1776 = vld [vmem:[%s1763 + $0x60] sm:$0xff]
        %v1777 = vld [vmem:[%s1763 + $0x68] sm:$0xff]
        %v1778 = vld [vmem:[%s1763 + $0x70] sm:$0xff]
        %v1779 = vld [vmem:[%s1763 + $0x78] sm:$0xff]
        %v1780 = vld [vmem:[%s1763 + $0x80] sm:$0xff]
        %v1781 = vld [vmem:[%s1763 + $0x88] sm:$0xff]
        %v1782 = vld [vmem:[%s1763 + $0x90] sm:$0xff]
        %v1783 = vld [vmem:[%s1763 + $0x98] sm:$0xff]
        %v1784 = vld [vmem:[%s1763 + $0xa0] sm:$0xff]
        %v1785 = vld [vmem:[%s1763 + $0xa8] sm:$0xff]
        %v1786 = vld [vmem:[%s1763 + $0xb0] sm:$0xff]
        %v1787 = vld [vmem:[%s1763 + $0xb8] sm:$0xff]
        %v1788 = vld [vmem:[%s1763 + $0xc0] sm:$0xff]
        %v1789 = vld [vmem:[%s1763 + $0xc8] sm:$0xff]
        %v1790 = vld [vmem:[%s1763 + $0xd0] sm:$0xff]
        %v1791 = vld [vmem:[%s1763 + $0xd8] sm:$0xff]
        %v1792 = vld [vmem:[%s1763 + $0xe0] sm:$0xff]
        %v1793 = vld [vmem:[%s1763 + $0xe8] sm:$0xff]
        %v1794 = vld [vmem:[%s1763 + $0xf0] sm:$0xff]
        %v1795 = vld [vmem:[%s1763 + $0xf8] sm:$0xff]
        %v1800 = vrot.slane %v1759, 5
        %v1801 = vrot.slane %v1228, 5
        %v1802 = vsel %vm947, %v1800, %v1801
        %v1803 = vrot.slane %v1760, 5
        %v1804 = vrot.slane %v1229, 5
        %v1805 = vsel %vm947, %v1803, %v1804
        %v1806 = vrot.slane %v1761, 5
        %v1807 = vsel %vm947, %v1801, %v1806
        %v1808 = vrot.slane %v1762, 5
        %v1809 = vsel %vm947, %v1804, %v1808
        %1814 = vmatprep.subr.mxu0 0.0
        %1815 = vmatpush1.msra.mxu0 %v1764
        %1816 = vmatprep.subr.mxu0 0.0
        %1817 = vmatpush1.msra.mxu0 %v1765
        %1818 = vmatprep.subr.mxu0 0.0
        %1819 = vmatpush1.msra.mxu0 %v1766
        %1820 = vmatprep.subr.mxu0 0.0
        %1821 = vmatpush1.msra.mxu0 %v1767
        %1822 = vmatprep.subr.mxu0 0.0
        %1823 = vmatpush1.msra.mxu0 %v1768
        %1824 = vmatprep.subr.mxu0 0.0
        %1825 = vmatpush1.msra.mxu0 %v1769
        %1826 = vmatprep.subr.mxu0 0.0
        %1827 = vmatpush1.msra.mxu0 %v1770
        %1828 = vmatprep.subr.mxu0 0.0
        %1829 = vmatpush1.msra.mxu0 %v1771
        %1830 = vmatprep.subr.mxu0 0.0
        %1831 = vmatpush1.msra.mxu0 %v1772
        %1832 = vmatprep.subr.mxu0 0.0
        %1833 = vmatpush1.msra.mxu0 %v1773
        %1834 = vmatprep.subr.mxu0 0.0
        %1835 = vmatpush1.msra.mxu0 %v1774
        %1836 = vmatprep.subr.mxu0 0.0
        %1837 = vmatpush1.msra.mxu0 %v1775
        %1838 = vmatprep.subr.mxu0 0.0
        %1839 = vmatpush1.msra.mxu0 %v1776
        %1840 = vmatprep.subr.mxu0 0.0
        %1841 = vmatpush1.msra.mxu0 %v1777
        %1842 = vmatprep.subr.mxu0 0.0
        %1843 = vmatpush1.msra.mxu0 %v1778
        %1844 = vmatprep.subr.mxu0 0.0
        %1845 = vmatpush1.msra.mxu0 %v1779
        %1846 = vmatprep.subr.mxu0 0.0
        %1847 = vmatpush1.msra.mxu0 %v1780
        %1848 = vmatprep.subr.mxu0 0.0
        %1849 = vmatpush1.msra.mxu0 %v1781
        %1850 = vmatprep.subr.mxu0 0.0
        %1851 = vmatpush1.msra.mxu0 %v1782
        %1852 = vmatprep.subr.mxu0 0.0
        %1853 = vmatpush1.msra.mxu0 %v1783
        %1854 = vmatprep.subr.mxu0 0.0
        %1855 = vmatpush1.msra.mxu0 %v1784
        %1856 = vmatprep.subr.mxu0 0.0
        %1857 = vmatpush1.msra.mxu0 %v1785
        %1858 = vmatprep.subr.mxu0 0.0
        %1859 = vmatpush1.msra.mxu0 %v1786
        %1860 = vmatprep.subr.mxu0 0.0
        %1861 = vmatpush1.msra.mxu0 %v1787
        %1862 = vmatprep.subr.mxu0 0.0
        %1863 = vmatpush1.msra.mxu0 %v1788
        %1864 = vmatprep.subr.mxu0 0.0
        %1865 = vmatpush1.msra.mxu0 %v1789
        %1866 = vmatprep.subr.mxu0 0.0
        %1867 = vmatpush1.msra.mxu0 %v1790
        %1868 = vmatprep.subr.mxu0 0.0
        %1869 = vmatpush1.msra.mxu0 %v1791
        %1870 = vmatprep.subr.mxu0 0.0
        %1871 = vmatpush1.msra.mxu0 %v1792
        %1872 = vmatprep.subr.mxu0 0.0
        %1873 = vmatpush1.msra.mxu0 %v1793
        %1874 = vmatprep.subr.mxu0 0.0
        %1875 = vmatpush1.msra.mxu0 %v1794
        %1876 = vmatprep.subr.mxu0 0.0
        %1877 = vmatpush1.msra.mxu0 %v1795
        %1878 = vmatprep.mubr.f32.mxu0 %v1805
        %1879 = vmatmul.mubr.f32.gmra.mrb[0].mxu0 %v1802
        %v1880 = vpop.f32.mrb[0].mxu0
        %v1881 = vadd.f32 0.0, %v1880
        %v1882 = vpop.f32.mrb[0].mxu0
        %1883 = vmatprep.mubr.f32.mxu0 %v1809
        %1884 = vmatmul.mubr.f32.gmra.mrb[0].mxu0 %v1807
        %v1885 = vpop.f32.mrb[0].mxu0
        %v1886 = vadd.f32 0.0, %v1885
        %v1887 = vpop.f32.mrb[0].mxu0
        %1888 = vdwg.mxu0
        %v1889 = vadd.f32 %v1757, %v1881
        %v1890 = vadd.f32 %v1758, %v1886
        %v1891 = vld [vmem:[#allocation3] sm:$0xc0]
        %v1892 = vld [vmem:[#allocation3 + $0x8] sm:$0xc0]
        %v1893 = vld [vmem:[#allocation3 + $0x20] sm:$0x3f]
        %v1894 = vld [vmem:[#allocation3 + $0x28] sm:$0x3f]
        %s1895 = scalar_lea.vmem %s8, 1536
        %v1896 = vld [vmem:[%s1895] sm:$0xff]
        %v1897 = vld [vmem:[%s1895 + $0x8] sm:$0xff]
        %v1898 = vld [vmem:[%s1895 + $0x10] sm:$0xff]
        %v1899 = vld [vmem:[%s1895 + $0x18] sm:$0xff]
        %v1900 = vld [vmem:[%s1895 + $0x20] sm:$0xff]
        %v1901 = vld [vmem:[%s1895 + $0x28] sm:$0xff]
        %v1902 = vld [vmem:[%s1895 + $0x30] sm:$0xff]
        %v1903 = vld [vmem:[%s1895 + $0x38] sm:$0xff]
        %v1904 = vld [vmem:[%s1895 + $0x40] sm:$0xff]
        %v1905 = vld [vmem:[%s1895 + $0x48] sm:$0xff]
        %v1906 = vld [vmem:[%s1895 + $0x50] sm:$0xff]
        %v1907 = vld [vmem:[%s1895 + $0x58] sm:$0xff]
        %v1908 = vld [vmem:[%s1895 + $0x60] sm:$0xff]
        %v1909 = vld [vmem:[%s1895 + $0x68] sm:$0xff]
        %v1910 = vld [vmem:[%s1895 + $0x70] sm:$0xff]
        %v1911 = vld [vmem:[%s1895 + $0x78] sm:$0xff]
        %v1912 = vld [vmem:[%s1895 + $0x80] sm:$0xff]
        %v1913 = vld [vmem:[%s1895 + $0x88] sm:$0xff]
        %v1914 = vld [vmem:[%s1895 + $0x90] sm:$0xff]
        %v1915 = vld [vmem:[%s1895 + $0x98] sm:$0xff]
        %v1916 = vld [vmem:[%s1895 + $0xa0] sm:$0xff]
        %v1917 = vld [vmem:[%s1895 + $0xa8] sm:$0xff]
        %v1918 = vld [vmem:[%s1895 + $0xb0] sm:$0xff]
        %v1919 = vld [vmem:[%s1895 + $0xb8] sm:$0xff]
        %v1920 = vld [vmem:[%s1895 + $0xc0] sm:$0xff]
        %v1921 = vld [vmem:[%s1895 + $0xc8] sm:$0xff]
        %v1922 = vld [vmem:[%s1895 + $0xd0] sm:$0xff]
        %v1923 = vld [vmem:[%s1895 + $0xd8] sm:$0xff]
        %v1924 = vld [vmem:[%s1895 + $0xe0] sm:$0xff]
        %v1925 = vld [vmem:[%s1895 + $0xe8] sm:$0xff]
        %v1926 = vld [vmem:[%s1895 + $0xf0] sm:$0xff]
        %v1927 = vld [vmem:[%s1895 + $0xf8] sm:$0xff]
        %vm1932 = vcmask 1041408
        %v1933 = vrot.slane %v1891, 6
        %v1934 = vrot.slane %v1228, 6
        %v1935 = vsel %vm1932, %v1933, %v1934
        %v1936 = vrot.slane %v1892, 6
        %v1937 = vrot.slane %v1229, 6
        %v1938 = vsel %vm1932, %v1936, %v1937
        %v1939 = vrot.slane %v1893, 6
        %v1940 = vsel %vm1932, %v1934, %v1939
        %v1941 = vrot.slane %v1894, 6
        %v1942 = vsel %vm1932, %v1937, %v1941
        %1947 = vmatprep.subr.mxu0 0.0
        %1948 = vmatpush1.msra.mxu0 %v1896
        %1949 = vmatprep.subr.mxu0 0.0
        %1950 = vmatpush1.msra.mxu0 %v1897
        %1951 = vmatprep.subr.mxu0 0.0
        %1952 = vmatpush1.msra.mxu0 %v1898
        %1953 = vmatprep.subr.mxu0 0.0
        %1954 = vmatpush1.msra.mxu0 %v1899
        %1955 = vmatprep.subr.mxu0 0.0
        %1956 = vmatpush1.msra.mxu0 %v1900
        %1957 = vmatprep.subr.mxu0 0.0
        %1958 = vmatpush1.msra.mxu0 %v1901
        %1959 = vmatprep.subr.mxu0 0.0
        %1960 = vmatpush1.msra.mxu0 %v1902
        %1961 = vmatprep.subr.mxu0 0.0
        %1962 = vmatpush1.msra.mxu0 %v1903
        %1963 = vmatprep.subr.mxu0 0.0
        %1964 = vmatpush1.msra.mxu0 %v1904
        %1965 = vmatprep.subr.mxu0 0.0
        %1966 = vmatpush1.msra.mxu0 %v1905
        %1967 = vmatprep.subr.mxu0 0.0
        %1968 = vmatpush1.msra.mxu0 %v1906
        %1969 = vmatprep.subr.mxu0 0.0
        %1970 = vmatpush1.msra.mxu0 %v1907
        %1971 = vmatprep.subr.mxu0 0.0
        %1972 = vmatpush1.msra.mxu0 %v1908
        %1973 = vmatprep.subr.mxu0 0.0
        %1974 = vmatpush1.msra.mxu0 %v1909
        %1975 = vmatprep.subr.mxu0 0.0
        %1976 = vmatpush1.msra.mxu0 %v1910
        %1977 = vmatprep.subr.mxu0 0.0
        %1978 = vmatpush1.msra.mxu0 %v1911
        %1979 = vmatprep.subr.mxu0 0.0
        %1980 = vmatpush1.msra.mxu0 %v1912
        %1981 = vmatprep.subr.mxu0 0.0
        %1982 = vmatpush1.msra.mxu0 %v1913
        %1983 = vmatprep.subr.mxu0 0.0
        %1984 = vmatpush1.msra.mxu0 %v1914
        %1985 = vmatprep.subr.mxu0 0.0
        %1986 = vmatpush1.msra.mxu0 %v1915
        %1987 = vmatprep.subr.mxu0 0.0
        %1988 = vmatpush1.msra.mxu0 %v1916
        %1989 = vmatprep.subr.mxu0 0.0
        %1990 = vmatpush1.msra.mxu0 %v1917
        %1991 = vmatprep.subr.mxu0 0.0
        %1992 = vmatpush1.msra.mxu0 %v1918
        %1993 = vmatprep.subr.mxu0 0.0
        %1994 = vmatpush1.msra.mxu0 %v1919
        %1995 = vmatprep.subr.mxu0 0.0
        %1996 = vmatpush1.msra.mxu0 %v1920
        %1997 = vmatprep.subr.mxu0 0.0
        %1998 = vmatpush1.msra.mxu0 %v1921
        %1999 = vmatprep.subr.mxu0 0.0
        %2000 = vmatpush1.msra.mxu0 %v1922
        %2001 = vmatprep.subr.mxu0 0.0
        %2002 = vmatpush1.msra.mxu0 %v1923
        %2003 = vmatprep.subr.mxu0 0.0
        %2004 = vmatpush1.msra.mxu0 %v1924
        %2005 = vmatprep.subr.mxu0 0.0
        %2006 = vmatpush1.msra.mxu0 %v1925
        %2007 = vmatprep.subr.mxu0 0.0
        %2008 = vmatpush1.msra.mxu0 %v1926
        %2009 = vmatprep.subr.mxu0 0.0
        %2010 = vmatpush1.msra.mxu0 %v1927
        %2011 = vmatprep.mubr.f32.mxu0 %v1938
        %2012 = vmatmul.mubr.f32.gmra.mrb[0].mxu0 %v1935
        %v2013 = vpop.f32.mrb[0].mxu0
        %v2014 = vadd.f32 0.0, %v2013
        %v2015 = vpop.f32.mrb[0].mxu0
        %2016 = vmatprep.mubr.f32.mxu0 %v1942
        %2017 = vmatmul.mubr.f32.gmra.mrb[0].mxu0 %v1940
        %v2018 = vpop.f32.mrb[0].mxu0
        %v2019 = vadd.f32 0.0, %v2018
        %v2020 = vpop.f32.mrb[0].mxu0
        %2021 = vdwg.mxu0
        %v2022 = vadd.f32 %v1889, %v2014
        %v2023 = vadd.f32 %v1890, %v2019
        %v2024 = vxor.u32 %v2022, 2147483648
        %v2025 = vxor.u32 %v2023, 2147483648
        %v2026 = vmul.f32 %v2024, 1.442695
        %v2027 = vpow.pop %v2026
        %v2028 = vmul.f32 %v2025, 1.442695
        %v2029 = vpow.pop %v2028
        %v2030 = vadd.f32 %v2027, 1.0
        %v2031 = vadd.f32 %v2029, 1.0
        %v2032 = vrcp.pop %v2030
        %v2033 = vmul.f32 1.0, %v2032
        %v2034 = vrcp.pop %v2031
        %v2035 = vmul.f32 1.0, %v2034
        %v2036 = vld [vmem:[%s10] sm:$0xff]
        %v2037 = vld [vmem:[%s10 + $0x8] sm:$0xff]
        %vm2038 = vcmask 130048
        %v2040 = vsel %vm2038, %v2033, 0
        %v2043 = vsel %vm2038, %v2035, 0
        %2045 = vmatprep.subr.mxu0 0.0
        %2046 = vmatpush1.msra.mxu0 %v2036
        %2047 = vmatprep.subr.mxu0 0.0
        %2048 = vmatpush1.msra.mxu0 %v2037
        %2049 = vmatprep.subr.mxu0 0.0
        %2050 = vmatpush1.msra.mxu0 0.0
        %2051 = vmatprep.subr.mxu0 0.0
        %2052 = vmatpush1.msra.mxu0 0.0
        %2053 = vmatprep.subr.mxu0 0.0
        %2054 = vmatpush1.msra.mxu0 0.0
        %2055 = vmatprep.subr.mxu0 0.0
        %2056 = vmatpush1.msra.mxu0 0.0
        %2057 = vmatprep.subr.mxu0 0.0
        %2058 = vmatpush1.msra.mxu0 0.0
        %2059 = vmatprep.subr.mxu0 0.0
        %2060 = vmatpush1.msra.mxu0 0.0
        %2061 = vmatprep.subr.mxu0 0.0
        %2062 = vmatpush1.msra.mxu0 0.0
        %2063 = vmatprep.subr.mxu0 0.0
        %2064 = vmatpush1.msra.mxu0 0.0
        %2065 = vmatprep.subr.mxu0 0.0
        %2066 = vmatpush1.msra.mxu0 0.0
        %2067 = vmatprep.subr.mxu0 0.0
        %2068 = vmatpush1.msra.mxu0 0.0
        %2069 = vmatprep.subr.mxu0 0.0
        %2070 = vmatpush1.msra.mxu0 0.0
        %2071 = vmatprep.subr.mxu0 0.0
        %2072 = vmatpush1.msra.mxu0 0.0
        %2073 = vmatprep.subr.mxu0 0.0
        %2074 = vmatpush1.msra.mxu0 0.0
        %2075 = vmatprep.subr.mxu0 0.0
        %2076 = vmatpush1.msra.mxu0 0.0
        %2077 = vmatprep.subr.mxu0 0.0
        %2078 = vmatpush1.msra.mxu0 0.0
        %2079 = vmatprep.subr.mxu0 0.0
        %2080 = vmatpush1.msra.mxu0 0.0
        %2081 = vmatprep.subr.mxu0 0.0
        %2082 = vmatpush1.msra.mxu0 0.0
        %2083 = vmatprep.subr.mxu0 0.0
        %2084 = vmatpush1.msra.mxu0 0.0
        %2085 = vmatprep.subr.mxu0 0.0
        %2086 = vmatpush1.msra.mxu0 0.0
        %2087 = vmatprep.subr.mxu0 0.0
        %2088 = vmatpush1.msra.mxu0 0.0
        %2089 = vmatprep.subr.mxu0 0.0
        %2090 = vmatpush1.msra.mxu0 0.0
        %2091 = vmatprep.subr.mxu0 0.0
        %2092 = vmatpush1.msra.mxu0 0.0
        %2093 = vmatprep.subr.mxu0 0.0
        %2094 = vmatpush1.msra.mxu0 0.0
        %2095 = vmatprep.subr.mxu0 0.0
        %2096 = vmatpush1.msra.mxu0 0.0
        %2097 = vmatprep.subr.mxu0 0.0
        %2098 = vmatpush1.msra.mxu0 0.0
        %2099 = vmatprep.subr.mxu0 0.0
        %2100 = vmatpush1.msra.mxu0 0.0
        %2101 = vmatprep.subr.mxu0 0.0
        %2102 = vmatpush1.msra.mxu0 0.0
        %2103 = vmatprep.subr.mxu0 0.0
        %2104 = vmatpush1.msra.mxu0 0.0
        %2105 = vmatprep.subr.mxu0 0.0
        %2106 = vmatpush1.msra.mxu0 0.0
        %2107 = vmatprep.subr.mxu0 0.0
        %2108 = vmatpush1.msra.mxu0 0.0
        %2109 = vmatprep.mubr.f32.mxu0 0.0
        %2110 = vmatmul.mubr.f32.gmra.mrb[0].mxu0 %v2040
        %v2111 = vpop.f32.mrb[0].mxu0
        %v2112 = vadd.f32 0.0, %v2111
        %v2113 = vpop.f32.mrb[0].mxu0
        %2114 = vmatprep.mubr.f32.mxu0 0.0
        %2115 = vmatmul.mubr.f32.gmra.mrb[0].mxu0 %v2043
        %v2116 = vpop.f32.mrb[0].mxu0
        %v2117 = vadd.f32 0.0, %v2116
        %v2118 = vpop.f32.mrb[0].mxu0
        %2119 = vdwg.mxu0
        %v2121 = vlaneseq
        %v2122 = vshrl.u32 %v2121, 7
        %v2123 = vsub.s32 0, %v2122
        %v2124 = vrot.slane %v944, %v2123
        %v2126 = vmul.f32 %v2112, %v2124
        %v2127 = vmul.f32 %v2117, %v2124
        %v2128 = vmul.f32 %v461, %v2126
        %v2129 = vmul.f32 %v462, %v2127
        %v2132 = vrot.slane %v2128, 7
        %v2133 = vrot.slane %v2129, 7
        %v2134 = vsel %vm480, %v2132, %v2133
        %2138 = vst [vmem:[#allocation2] sm:$0xfe] %v2132
        %2139 = vst [vmem:[#allocation2 + $0x10] sm:$0xff] %v2134
        %2140 = vst [vmem:[#allocation2 + $0x20] sm:$0x1] %v2133
        %v2141 = vmul.f32 %v463, %v2126
        %v2142 = vmul.f32 %v464, %v2127
        %v2145 = vrot.slane %v2141, 7
        %v2146 = vrot.slane %v2142, 7
        %v2147 = vsel %vm480, %v2145, %v2146
        %2151 = vst [vmem:[#allocation2 + $0x8] sm:$0xfe] %v2145
        %2152 = vst [vmem:[#allocation2 + $0x18] sm:$0xff] %v2147
        %2153 = vst [vmem:[#allocation2 + $0x28] sm:$0x1] %v2146
        %v2154 = vld [vmem:[%s12] sm:$0x1]
        %v2156 = vlaneseq
        %v2157 = vshrl.u32 %v2156, 7
        %v2158 = vsub.s32 0, %v2157
        %v2159 = vrot.slane %v2154, %v2158
        %v2161 = vadd.f32 %v2159, 0.0
        %v2162 = vld [vmem:[#allocation2] sm:$0xff]
        %v2163 = vld [vmem:[#allocation2 + $0x8] sm:$0xff]
        %v2164 = vld [vmem:[#allocation2 + $0x10] sm:$0xff]
        %v2165 = vld [vmem:[#allocation2 + $0x18] sm:$0xff]
        %v2166 = vld [vmem:[%s11] sm:$0xff]
        %v2167 = vld [vmem:[%s11 + $0x8] sm:$0xff]
        %v2168 = vld [vmem:[%s11 + $0x10] sm:$0xff]
        %v2169 = vld [vmem:[%s11 + $0x18] sm:$0xff]
        %v2170 = vld [vmem:[%s11 + $0x20] sm:$0xff]
        %v2171 = vld [vmem:[%s11 + $0x28] sm:$0xff]
        %v2172 = vld [vmem:[%s11 + $0x30] sm:$0xff]
        %v2173 = vld [vmem:[%s11 + $0x38] sm:$0xff]
        %v2174 = vld [vmem:[%s11 + $0x40] sm:$0xff]
        %v2175 = vld [vmem:[%s11 + $0x48] sm:$0xff]
        %v2176 = vld [vmem:[%s11 + $0x50] sm:$0xff]
        %v2177 = vld [vmem:[%s11 + $0x58] sm:$0xff]
        %v2178 = vld [vmem:[%s11 + $0x60] sm:$0xff]
        %v2179 = vld [vmem:[%s11 + $0x68] sm:$0xff]
        %v2180 = vld [vmem:[%s11 + $0x70] sm:$0xff]
        %v2181 = vld [vmem:[%s11 + $0x78] sm:$0xff]
        %v2182 = vld [vmem:[%s11 + $0x80] sm:$0xff]
        %v2183 = vld [vmem:[%s11 + $0x88] sm:$0xff]
        %v2184 = vld [vmem:[%s11 + $0x90] sm:$0xff]
        %v2185 = vld [vmem:[%s11 + $0x98] sm:$0xff]
        %v2186 = vld [vmem:[%s11 + $0xa0] sm:$0xff]
        %v2187 = vld [vmem:[%s11 + $0xa8] sm:$0xff]
        %v2188 = vld [vmem:[%s11 + $0xb0] sm:$0xff]
        %v2189 = vld [vmem:[%s11 + $0xb8] sm:$0xff]
        %v2190 = vld [vmem:[%s11 + $0xc0] sm:$0xff]
        %v2191 = vld [vmem:[%s11 + $0xc8] sm:$0xff]
        %v2192 = vld [vmem:[%s11 + $0xd0] sm:$0xff]
        %v2193 = vld [vmem:[%s11 + $0xd8] sm:$0xff]
        %v2194 = vld [vmem:[%s11 + $0xe0] sm:$0xff]
        %v2195 = vld [vmem:[%s11 + $0xe8] sm:$0xff]
        %v2196 = vld [vmem:[%s11 + $0xf0] sm:$0xff]
        %v2197 = vld [vmem:[%s11 + $0xf8] sm:$0xff]
        %2198 = vmatprep.subr.mxu0 0.0
        %2199 = vmatpush1.msra.mxu0 %v2166
        %2200 = vmatprep.subr.mxu0 0.0
        %2201 = vmatpush1.msra.mxu0 %v2167
        %2202 = vmatprep.subr.mxu0 0.0
        %2203 = vmatpush1.msra.mxu0 %v2168
        %2204 = vmatprep.subr.mxu0 0.0
        %2205 = vmatpush1.msra.mxu0 %v2169
        %2206 = vmatprep.subr.mxu0 0.0
        %2207 = vmatpush1.msra.mxu0 %v2170
        %2208 = vmatprep.subr.mxu0 0.0
        %2209 = vmatpush1.msra.mxu0 %v2171
        %2210 = vmatprep.subr.mxu0 0.0
        %2211 = vmatpush1.msra.mxu0 %v2172
        %2212 = vmatprep.subr.mxu0 0.0
        %2213 = vmatpush1.msra.mxu0 %v2173
        %2214 = vmatprep.subr.mxu0 0.0
        %2215 = vmatpush1.msra.mxu0 %v2174
        %2216 = vmatprep.subr.mxu0 0.0
        %2217 = vmatpush1.msra.mxu0 %v2175
        %2218 = vmatprep.subr.mxu0 0.0
        %2219 = vmatpush1.msra.mxu0 %v2176
        %2220 = vmatprep.subr.mxu0 0.0
        %2221 = vmatpush1.msra.mxu0 %v2177
        %2222 = vmatprep.subr.mxu0 0.0
        %2223 = vmatpush1.msra.mxu0 %v2178
        %2224 = vmatprep.subr.mxu0 0.0
        %2225 = vmatpush1.msra.mxu0 %v2179
        %2226 = vmatprep.subr.mxu0 0.0
        %2227 = vmatpush1.msra.mxu0 %v2180
        %2228 = vmatprep.subr.mxu0 0.0
        %2229 = vmatpush1.msra.mxu0 %v2181
        %2230 = vmatprep.subr.mxu0 0.0
        %2231 = vmatpush1.msra.mxu0 %v2182
        %2232 = vmatprep.subr.mxu0 0.0
        %2233 = vmatpush1.msra.mxu0 %v2183
        %2234 = vmatprep.subr.mxu0 0.0
        %2235 = vmatpush1.msra.mxu0 %v2184
        %2236 = vmatprep.subr.mxu0 0.0
        %2237 = vmatpush1.msra.mxu0 %v2185
        %2238 = vmatprep.subr.mxu0 0.0
        %2239 = vmatpush1.msra.mxu0 %v2186
        %2240 = vmatprep.subr.mxu0 0.0
        %2241 = vmatpush1.msra.mxu0 %v2187
        %2242 = vmatprep.subr.mxu0 0.0
        %2243 = vmatpush1.msra.mxu0 %v2188
        %2244 = vmatprep.subr.mxu0 0.0
        %2245 = vmatpush1.msra.mxu0 %v2189
        %2246 = vmatprep.subr.mxu0 0.0
        %2247 = vmatpush1.msra.mxu0 %v2190
        %2248 = vmatprep.subr.mxu0 0.0
        %2249 = vmatpush1.msra.mxu0 %v2191
        %2250 = vmatprep.subr.mxu0 0.0
        %2251 = vmatpush1.msra.mxu0 %v2192
        %2252 = vmatprep.subr.mxu0 0.0
        %2253 = vmatpush1.msra.mxu0 %v2193
        %2254 = vmatprep.subr.mxu0 0.0
        %2255 = vmatpush1.msra.mxu0 %v2194
        %2256 = vmatprep.subr.mxu0 0.0
        %2257 = vmatpush1.msra.mxu0 %v2195
        %2258 = vmatprep.subr.mxu0 0.0
        %2259 = vmatpush1.msra.mxu0 %v2196
        %2260 = vmatprep.subr.mxu0 0.0
        %2261 = vmatpush1.msra.mxu0 %v2197
        %2262 = vmatprep.mubr.f32.mxu0 %v2163
        %2263 = vmatmul.mubr.f32.gmra.mrb[0].mxu0 %v2162
        %v2264 = vpop.f32.mrb[0].mxu0
        %v2265 = vadd.f32 0.0, %v2264
        %v2266 = vpop.f32.mrb[0].mxu0
        %2267 = vmatprep.mubr.f32.mxu0 %v2165
        %2268 = vmatmul.mubr.f32.gmra.mrb[0].mxu0 %v2164
        %v2269 = vpop.f32.mrb[0].mxu0
        %v2270 = vadd.f32 0.0, %v2269
        %v2271 = vpop.f32.mrb[0].mxu0
        %2272 = vdwg.mxu0
        %v2273 = vadd.f32 %v2161, %v2265
        %v2274 = vadd.f32 %v2161, %v2270
        %v2275 = vld [vmem:[#allocation2] sm:$0xfe]
        %v2276 = vld [vmem:[#allocation2 + $0x8] sm:$0xfe]
        %v2277 = vld [vmem:[#allocation2 + $0x10] sm:$0xff]
        %v2278 = vld [vmem:[#allocation2 + $0x18] sm:$0xff]
        %v2279 = vld [vmem:[#allocation2 + $0x20] sm:$0x1]
        %v2280 = vld [vmem:[#allocation2 + $0x28] sm:$0x1]
        %s2281 = scalar_lea.vmem %s11, 256
        %v2282 = vld [vmem:[%s2281] sm:$0xff]
        %v2283 = vld [vmem:[%s2281 + $0x8] sm:$0xff]
        %v2284 = vld [vmem:[%s2281 + $0x10] sm:$0xff]
        %v2285 = vld [vmem:[%s2281 + $0x18] sm:$0xff]
        %v2286 = vld [vmem:[%s2281 + $0x20] sm:$0xff]
        %v2287 = vld [vmem:[%s2281 + $0x28] sm:$0xff]
        %v2288 = vld [vmem:[%s2281 + $0x30] sm:$0xff]
        %v2289 = vld [vmem:[%s2281 + $0x38] sm:$0xff]
        %v2290 = vld [vmem:[%s2281 + $0x40] sm:$0xff]
        %v2291 = vld [vmem:[%s2281 + $0x48] sm:$0xff]
        %v2292 = vld [vmem:[%s2281 + $0x50] sm:$0xff]
        %v2293 = vld [vmem:[%s2281 + $0x58] sm:$0xff]
        %v2294 = vld [vmem:[%s2281 + $0x60] sm:$0xff]
        %v2295 = vld [vmem:[%s2281 + $0x68] sm:$0xff]
        %v2296 = vld [vmem:[%s2281 + $0x70] sm:$0xff]
        %v2297 = vld [vmem:[%s2281 + $0x78] sm:$0xff]
        %v2298 = vld [vmem:[%s2281 + $0x80] sm:$0xff]
        %v2299 = vld [vmem:[%s2281 + $0x88] sm:$0xff]
        %v2300 = vld [vmem:[%s2281 + $0x90] sm:$0xff]
        %v2301 = vld [vmem:[%s2281 + $0x98] sm:$0xff]
        %v2302 = vld [vmem:[%s2281 + $0xa0] sm:$0xff]
        %v2303 = vld [vmem:[%s2281 + $0xa8] sm:$0xff]
        %v2304 = vld [vmem:[%s2281 + $0xb0] sm:$0xff]
        %v2305 = vld [vmem:[%s2281 + $0xb8] sm:$0xff]
        %v2306 = vld [vmem:[%s2281 + $0xc0] sm:$0xff]
        %v2307 = vld [vmem:[%s2281 + $0xc8] sm:$0xff]
        %v2308 = vld [vmem:[%s2281 + $0xd0] sm:$0xff]
        %v2309 = vld [vmem:[%s2281 + $0xd8] sm:$0xff]
        %v2310 = vld [vmem:[%s2281 + $0xe0] sm:$0xff]
        %v2311 = vld [vmem:[%s2281 + $0xe8] sm:$0xff]
        %v2312 = vld [vmem:[%s2281 + $0xf0] sm:$0xff]
        %v2313 = vld [vmem:[%s2281 + $0xf8] sm:$0xff]
        %v2320 = vrot.slane %v2275, 1
        %v2321 = vrot.slane %v2277, 1
        %v2322 = vsel %vm667, %v2320, %v2321
        %v2323 = vrot.slane %v2276, 1
        %v2324 = vrot.slane %v2278, 1
        %v2325 = vsel %vm667, %v2323, %v2324
        %v2326 = vrot.slane %v2279, 1
        %v2327 = vsel %vm667, %v2321, %v2326
        %v2328 = vrot.slane %v2280, 1
        %v2329 = vsel %vm667, %v2324, %v2328
        %2334 = vmatprep.subr.mxu0 0.0
        %2335 = vmatpush1.msra.mxu0 %v2282
        %2336 = vmatprep.subr.mxu0 0.0
        %2337 = vmatpush1.msra.mxu0 %v2283
        %2338 = vmatprep.subr.mxu0 0.0
        %2339 = vmatpush1.msra.mxu0 %v2284
        %2340 = vmatprep.subr.mxu0 0.0
        %2341 = vmatpush1.msra.mxu0 %v2285
        %2342 = vmatprep.subr.mxu0 0.0
        %2343 = vmatpush1.msra.mxu0 %v2286
        %2344 = vmatprep.subr.mxu0 0.0
        %2345 = vmatpush1.msra.mxu0 %v2287
        %2346 = vmatprep.subr.mxu0 0.0
        %2347 = vmatpush1.msra.mxu0 %v2288
        %2348 = vmatprep.subr.mxu0 0.0
        %2349 = vmatpush1.msra.mxu0 %v2289
        %2350 = vmatprep.subr.mxu0 0.0
        %2351 = vmatpush1.msra.mxu0 %v2290
        %2352 = vmatprep.subr.mxu0 0.0
        %2353 = vmatpush1.msra.mxu0 %v2291
        %2354 = vmatprep.subr.mxu0 0.0
        %2355 = vmatpush1.msra.mxu0 %v2292
        %2356 = vmatprep.subr.mxu0 0.0
        %2357 = vmatpush1.msra.mxu0 %v2293
        %2358 = vmatprep.subr.mxu0 0.0
        %2359 = vmatpush1.msra.mxu0 %v2294
        %2360 = vmatprep.subr.mxu0 0.0
        %2361 = vmatpush1.msra.mxu0 %v2295
        %2362 = vmatprep.subr.mxu0 0.0
        %2363 = vmatpush1.msra.mxu0 %v2296
        %2364 = vmatprep.subr.mxu0 0.0
        %2365 = vmatpush1.msra.mxu0 %v2297
        %2366 = vmatprep.subr.mxu0 0.0
        %2367 = vmatpush1.msra.mxu0 %v2298
        %2368 = vmatprep.subr.mxu0 0.0
        %2369 = vmatpush1.msra.mxu0 %v2299
        %2370 = vmatprep.subr.mxu0 0.0
        %2371 = vmatpush1.msra.mxu0 %v2300
        %2372 = vmatprep.subr.mxu0 0.0
        %2373 = vmatpush1.msra.mxu0 %v2301
        %2374 = vmatprep.subr.mxu0 0.0
        %2375 = vmatpush1.msra.mxu0 %v2302
        %2376 = vmatprep.subr.mxu0 0.0
        %2377 = vmatpush1.msra.mxu0 %v2303
        %2378 = vmatprep.subr.mxu0 0.0
        %2379 = vmatpush1.msra.mxu0 %v2304
        %2380 = vmatprep.subr.mxu0 0.0
        %2381 = vmatpush1.msra.mxu0 %v2305
        %2382 = vmatprep.subr.mxu0 0.0
        %2383 = vmatpush1.msra.mxu0 %v2306
        %2384 = vmatprep.subr.mxu0 0.0
        %2385 = vmatpush1.msra.mxu0 %v2307
        %2386 = vmatprep.subr.mxu0 0.0
        %2387 = vmatpush1.msra.mxu0 %v2308
        %2388 = vmatprep.subr.mxu0 0.0
        %2389 = vmatpush1.msra.mxu0 %v2309
        %2390 = vmatprep.subr.mxu0 0.0
        %2391 = vmatpush1.msra.mxu0 %v2310
        %2392 = vmatprep.subr.mxu0 0.0
        %2393 = vmatpush1.msra.mxu0 %v2311
        %2394 = vmatprep.subr.mxu0 0.0
        %2395 = vmatpush1.msra.mxu0 %v2312
        %2396 = vmatprep.subr.mxu0 0.0
        %2397 = vmatpush1.msra.mxu0 %v2313
        %2398 = vmatprep.mubr.f32.mxu0 %v2325
        %2399 = vmatmul.mubr.f32.gmra.mrb[0].mxu0 %v2322
        %v2400 = vpop.f32.mrb[0].mxu0
        %v2401 = vadd.f32 0.0, %v2400
        %v2402 = vpop.f32.mrb[0].mxu0
        %2403 = vmatprep.mubr.f32.mxu0 %v2329
        %2404 = vmatmul.mubr.f32.gmra.mrb[0].mxu0 %v2327
        %v2405 = vpop.f32.mrb[0].mxu0
        %v2406 = vadd.f32 0.0, %v2405
        %v2407 = vpop.f32.mrb[0].mxu0
        %2408 = vdwg.mxu0
        %v2409 = vadd.f32 %v2273, %v2401
        %v2410 = vadd.f32 %v2274, %v2406
        %v2411 = vld [vmem:[#allocation2] sm:$0xfc]
        %v2412 = vld [vmem:[#allocation2 + $0x8] sm:$0xfc]
        %v2413 = vld [vmem:[#allocation2 + $0x20] sm:$0x3]
        %v2414 = vld [vmem:[#allocation2 + $0x28] sm:$0x3]
        %s2415 = scalar_lea.vmem %s11, 512
        %v2416 = vld [vmem:[%s2415] sm:$0xff]
        %v2417 = vld [vmem:[%s2415 + $0x8] sm:$0xff]
        %v2418 = vld [vmem:[%s2415 + $0x10] sm:$0xff]
        %v2419 = vld [vmem:[%s2415 + $0x18] sm:$0xff]
        %v2420 = vld [vmem:[%s2415 + $0x20] sm:$0xff]
        %v2421 = vld [vmem:[%s2415 + $0x28] sm:$0xff]
        %v2422 = vld [vmem:[%s2415 + $0x30] sm:$0xff]
        %v2423 = vld [vmem:[%s2415 + $0x38] sm:$0xff]
        %v2424 = vld [vmem:[%s2415 + $0x40] sm:$0xff]
        %v2425 = vld [vmem:[%s2415 + $0x48] sm:$0xff]
        %v2426 = vld [vmem:[%s2415 + $0x50] sm:$0xff]
        %v2427 = vld [vmem:[%s2415 + $0x58] sm:$0xff]
        %v2428 = vld [vmem:[%s2415 + $0x60] sm:$0xff]
        %v2429 = vld [vmem:[%s2415 + $0x68] sm:$0xff]
        %v2430 = vld [vmem:[%s2415 + $0x70] sm:$0xff]
        %v2431 = vld [vmem:[%s2415 + $0x78] sm:$0xff]
        %v2432 = vld [vmem:[%s2415 + $0x80] sm:$0xff]
        %v2433 = vld [vmem:[%s2415 + $0x88] sm:$0xff]
        %v2434 = vld [vmem:[%s2415 + $0x90] sm:$0xff]
        %v2435 = vld [vmem:[%s2415 + $0x98] sm:$0xff]
        %v2436 = vld [vmem:[%s2415 + $0xa0] sm:$0xff]
        %v2437 = vld [vmem:[%s2415 + $0xa8] sm:$0xff]
        %v2438 = vld [vmem:[%s2415 + $0xb0] sm:$0xff]
        %v2439 = vld [vmem:[%s2415 + $0xb8] sm:$0xff]
        %v2440 = vld [vmem:[%s2415 + $0xc0] sm:$0xff]
        %v2441 = vld [vmem:[%s2415 + $0xc8] sm:$0xff]
        %v2442 = vld [vmem:[%s2415 + $0xd0] sm:$0xff]
        %v2443 = vld [vmem:[%s2415 + $0xd8] sm:$0xff]
        %v2444 = vld [vmem:[%s2415 + $0xe0] sm:$0xff]
        %v2445 = vld [vmem:[%s2415 + $0xe8] sm:$0xff]
        %v2446 = vld [vmem:[%s2415 + $0xf0] sm:$0xff]
        %v2447 = vld [vmem:[%s2415 + $0xf8] sm:$0xff]
        %v2452 = vrot.slane %v2411, 2
        %v2453 = vrot.slane %v2277, 2
        %v2454 = vsel %vm800, %v2452, %v2453
        %v2455 = vrot.slane %v2412, 2
        %v2456 = vrot.slane %v2278, 2
        %v2457 = vsel %vm800, %v2455, %v2456
        %v2458 = vrot.slane %v2413, 2
        %v2459 = vsel %vm800, %v2453, %v2458
        %v2460 = vrot.slane %v2414, 2
        %v2461 = vsel %vm800, %v2456, %v2460
        %2466 = vmatprep.subr.mxu0 0.0
        %2467 = vmatpush1.msra.mxu0 %v2416
        %2468 = vmatprep.subr.mxu0 0.0
        %2469 = vmatpush1.msra.mxu0 %v2417
        %2470 = vmatprep.subr.mxu0 0.0
        %2471 = vmatpush1.msra.mxu0 %v2418
        %2472 = vmatprep.subr.mxu0 0.0
        %2473 = vmatpush1.msra.mxu0 %v2419
        %2474 = vmatprep.subr.mxu0 0.0
        %2475 = vmatpush1.msra.mxu0 %v2420
        %2476 = vmatprep.subr.mxu0 0.0
        %2477 = vmatpush1.msra.mxu0 %v2421
        %2478 = vmatprep.subr.mxu0 0.0
        %2479 = vmatpush1.msra.mxu0 %v2422
        %2480 = vmatprep.subr.mxu0 0.0
        %2481 = vmatpush1.msra.mxu0 %v2423
        %2482 = vmatprep.subr.mxu0 0.0
        %2483 = vmatpush1.msra.mxu0 %v2424
        %2484 = vmatprep.subr.mxu0 0.0
        %2485 = vmatpush1.msra.mxu0 %v2425
        %2486 = vmatprep.subr.mxu0 0.0
        %2487 = vmatpush1.msra.mxu0 %v2426
        %2488 = vmatprep.subr.mxu0 0.0
        %2489 = vmatpush1.msra.mxu0 %v2427
        %2490 = vmatprep.subr.mxu0 0.0
        %2491 = vmatpush1.msra.mxu0 %v2428
        %2492 = vmatprep.subr.mxu0 0.0
        %2493 = vmatpush1.msra.mxu0 %v2429
        %2494 = vmatprep.subr.mxu0 0.0
        %2495 = vmatpush1.msra.mxu0 %v2430
        %2496 = vmatprep.subr.mxu0 0.0
        %2497 = vmatpush1.msra.mxu0 %v2431
        %2498 = vmatprep.subr.mxu0 0.0
        %2499 = vmatpush1.msra.mxu0 %v2432
        %2500 = vmatprep.subr.mxu0 0.0
        %2501 = vmatpush1.msra.mxu0 %v2433
        %2502 = vmatprep.subr.mxu0 0.0
        %2503 = vmatpush1.msra.mxu0 %v2434
        %2504 = vmatprep.subr.mxu0 0.0
        %2505 = vmatpush1.msra.mxu0 %v2435
        %2506 = vmatprep.subr.mxu0 0.0
        %2507 = vmatpush1.msra.mxu0 %v2436
        %2508 = vmatprep.subr.mxu0 0.0
        %2509 = vmatpush1.msra.mxu0 %v2437
        %2510 = vmatprep.subr.mxu0 0.0
        %2511 = vmatpush1.msra.mxu0 %v2438
        %2512 = vmatprep.subr.mxu0 0.0
        %2513 = vmatpush1.msra.mxu0 %v2439
        %2514 = vmatprep.subr.mxu0 0.0
        %2515 = vmatpush1.msra.mxu0 %v2440
        %2516 = vmatprep.subr.mxu0 0.0
        %2517 = vmatpush1.msra.mxu0 %v2441
        %2518 = vmatprep.subr.mxu0 0.0
        %2519 = vmatpush1.msra.mxu0 %v2442
        %2520 = vmatprep.subr.mxu0 0.0
        %2521 = vmatpush1.msra.mxu0 %v2443
        %2522 = vmatprep.subr.mxu0 0.0
        %2523 = vmatpush1.msra.mxu0 %v2444
        %2524 = vmatprep.subr.mxu0 0.0
        %2525 = vmatpush1.msra.mxu0 %v2445
        %2526 = vmatprep.subr.mxu0 0.0
        %2527 = vmatpush1.msra.mxu0 %v2446
        %2528 = vmatprep.subr.mxu0 0.0
        %2529 = vmatpush1.msra.mxu0 %v2447
        %2530 = vmatprep.mubr.f32.mxu0 %v2457
        %2531 = vmatmul.mubr.f32.gmra.mrb[0].mxu0 %v2454
        %v2532 = vpop.f32.mrb[0].mxu0
        %v2533 = vadd.f32 0.0, %v2532
        %v2534 = vpop.f32.mrb[0].mxu0
        %2535 = vmatprep.mubr.f32.mxu0 %v2461
        %2536 = vmatmul.mubr.f32.gmra.mrb[0].mxu0 %v2459
        %v2537 = vpop.f32.mrb[0].mxu0
        %v2538 = vadd.f32 0.0, %v2537
        %v2539 = vpop.f32.mrb[0].mxu0
        %2540 = vdwg.mxu0
        %v2541 = vadd.f32 %v2409, %v2533
        %v2542 = vadd.f32 %v2410, %v2538
        %2543 = vst [vmem:[%s450] sm:$0xff] %v2541
        %2544 = vst [vmem:[%s450 + $0x8] sm:$0xff] %v2542
        %s2545 = sand.u32 %s320, 1
        %s2546 = scalar_lea.sflag [#allocation6], %s2545
        %s2547 = sand.u32 %s320, 1
        %s2548 = smul.addr %s2547, 16
        %s2549 = scalar_lea.vmem [#allocation5], %s2548
        // Predicated region
        $region73: #{tpu_custom_call.1} parent=71 // pred_check
          %p2550 = pneg %p330
        $region74: #{tpu_custom_call.1} parent=71 // pred_check_branch
          %2552 = sbr.rel (%p2550) target = $region76
        $region75: #{tpu_custom_call.1} parent=71 // pred_region
          %s2554 = ssub.s32 256, 256
          %2555 = vsyncadd %s2546, %s2554
          %s2556 = smul.addr %s29, 2
          %s2557 = smul.addr %s2556, 128
          %s2558 = scalar_lea.hbm %s13, %s2557
          %s2559 = sshll.u32 %s2549, 4
          %s2560 = int_to_ptr.vmem [resolvable:$true] %s2559
          %2565 = dma.vmem_to_hbm [thread:$0]  %s2560, 256, %s2558, %s2546, 128, 128, 8
        $region76: #{tpu_custom_call.1} parent=71 // pred_fallthru
          _
      $region72: #{tpu_custom_call.1} parent=5 // pred_fallthru
        _
      %p2566 = scmp.le.s32.totalorder 2, %s24
      // Predicated region
      $region77: #{tpu_custom_call.1} parent=5 // pred_check
        %p2567 = pneg %p2566
      $region78: #{tpu_custom_call.1} parent=5 // pred_check_branch
        %2569 = sbr.rel (%p2567) target = $region80
      $region79: #{tpu_custom_call.1} parent=5 // pred_region
        %s2570 = ssub.s32 %s24, 2
        // Predicated region
        $region81: #{tpu_custom_call.1} parent=79 // pred_check
          %p2571 = pneg %p336
        $region82: #{tpu_custom_call.1} parent=79 // pred_check_branch
          %2573 = sbr.rel (%p2571) target = $region84
        $region83: #{tpu_custom_call.1} parent=79 // pred_region
          %s2574 = sand.u32 %s321, 1
          %s2575 = scalar_lea.sflag [#allocation6], %s2574
          %s2576 = sand.u32 %s321, 1
          %s2577 = smul.addr %s2576, 16
          %s2578 = scalar_lea.vmem [#allocation5], %s2577
          %2579 = dma.done %s2575, 256
        $region84: #{tpu_custom_call.1} parent=79 // pred_fallthru
          _
      $region80: #{tpu_custom_call.1} parent=5 // pred_fallthru
        _
    $region6: #{tpu_custom_call.1} parent=1 // loop_footer
      %s28 = sadd.s32 1, %s24
    $region7: #{tpu_custom_call.1} parent=1 // loop_footer_branch
      %23 = sbr.rel target = $region3
    $region8: #{tpu_custom_call.1} parent=1 // loop_exit
      _
    %2580 = vsyncpa [#allocation6], 1
    %s2581 = scalar_lea.sflag [#allocation6], 1
    %2582 = vsyncpa %s2581, 1

</llo_original>
